<compile_context>
chip_gen: v7x
topology: tpu7x:2x2x1
jax: 0.10.0
libtpu: 0.0.40
codegen_flags: <defaults>
</compile_context>

<pallas_src>
import functools

import jax
import jax.numpy as jnp
from jax.experimental import pallas as pl
from jax.experimental.pallas import tpu as pltpu

KH = KW = 3  # kernel_size == preconv_kernel == 3, 'same' padding, stride 1


# -----------------------------------------------------------------------------
# Pallas kernel: one grid step = NB batch elements.  9 roll+dot conv taps,
# fused bias, sigmoid gating, reciprocal mixing, ReLU.  Everything is
# channels-on-sublanes / pixels-on-lanes.
# -----------------------------------------------------------------------------
def _rgc_kernel(comb_ref, w_ref, b_ref, out_ref, *, wp):
    # comb_ref: (1, CT, L)        bf16, channels [h | c | x] on sublanes,
    #                             lanes = [batch-in-block][padded pixel q]
    # w_ref:    (9, 5*Cout, CT)   bf16 per-tap fused weights (transposed),
    #                             out rows = [pre | ch | hc | hh | cc]
    # b_ref:    (5*Cout, 1)       f32 fused biases
    # out_ref:  (1, 2*Cout, L)    rows [h_next | c_next]
    L = comb_ref.shape[-1]
    Cout = out_ref.shape[1] // 2

    # Upcast once so the lane rolls run on the native 32-bit layout; operands
    # are packed back to bf16 just before each MXU dot (exact round-trip).
    comb = comb_ref[0].astype(jnp.float32)                       # (CT, L)

    acc = jnp.zeros((5 * Cout, L), jnp.float32)
    center = comb
    for t in range(KH * KW):
        ky, kx = divmod(t, KW)
        s = ky * wp + kx
        # shifted[:, q] = comb[:, q + s]  (wrap only touches non-extracted lanes)
        shifted = comb if s == 0 else pltpu.roll(comb, shift=L - s, axis=1)
        if (ky, kx) == (1, 1):
            center = shifted            # h/c rows aligned with output pixels
        acc = acc + jnp.dot(w_ref[t], shifted.astype(jnp.bfloat16),
                            preferred_element_type=jnp.float32)
    acc = acc + b_ref[...]              # (5*Cout, 1) broadcast over lanes

    x_pre = acc[0 * Cout:1 * Cout]                       # preconv(input)
    # 1 - sigmoid(z) == sigmoid(-z); gating epilogue stays in f32.
    g_ch = jax.nn.sigmoid(-acc[1 * Cout:2 * Cout])       # gates h_next's x term
    g_hc = jax.nn.sigmoid(-acc[2 * Cout:3 * Cout])       # gates c_next's x term
    g_hh = jax.nn.sigmoid(-acc[3 * Cout:4 * Cout])       # gates h_cur term
    g_cc = jax.nn.sigmoid(-acc[4 * Cout:5 * Cout])       # gates c_cur term
    h_cur = center[0:Cout]                               # already f32
    c_cur = center[Cout:2 * Cout]

    # activation = ReLU
    h_next = jnp.maximum(g_ch * x_pre + g_hh * h_cur, 0.0)
    c_next = jnp.maximum(g_hc * x_pre + g_cc * c_cur, 0.0)
    out_ref[0, 0:Cout, :] = h_next.astype(out_ref.dtype)
    out_ref[0, Cout:2 * Cout, :] = c_next.astype(out_ref.dtype)


# -----------------------------------------------------------------------------
# Fused weight/bias packing.  For a scan over timesteps, call this ONCE per
# sequence and reuse the result (the wrapper calls it inline for a single step).
# -----------------------------------------------------------------------------
def pack_rgc_params(params):
    Cin = params['w_pre'].shape[2]
    Cout = params['w_pre'].shape[3]
    CT = 2 * Cout + Cin

    def taps_t(w):                       # HWIO (3,3,Ci,Co) -> (9, Co, Ci)
        return jnp.transpose(w.reshape(KH * KW, w.shape[2], w.shape[3]), (0, 2, 1))

    # Input-channel columns ordered [h (0:Cout) | c (Cout:2Cout) | x (2Cout:CT)].
    w = jnp.zeros((KH * KW, 5 * Cout, CT), jnp.float32)
    w = w.at[:, 0 * Cout:1 * Cout, 2 * Cout:CT].set(taps_t(params['w_pre']))   # x
    w = w.at[:, 1 * Cout:2 * Cout, Cout:2 * Cout].set(taps_t(params['w_ch']))  # c
    w = w.at[:, 2 * Cout:3 * Cout, 0:Cout].set(taps_t(params['w_hc']))         # h
    w = w.at[:, 3 * Cout:4 * Cout, 0:Cout].set(taps_t(params['w_hh']))         # h
    w = w.at[:, 4 * Cout:5 * Cout, Cout:2 * Cout].set(taps_t(params['w_cc']))  # c
    b = jnp.concatenate([params['b_pre'], params['b_ch'], params['b_hc'],
                         params['b_hh'], params['b_cc']]).reshape(5 * Cout, 1)
    return w.astype(jnp.bfloat16), b.astype(jnp.float32)


# -----------------------------------------------------------------------------
# Wrapper: layout plumbing (all XLA-side, fused under jit) + pallas_call.
# -----------------------------------------------------------------------------
@functools.partial(jax.jit, static_argnames=("num_blocks",))
def reciprocal_gated_cell(x_nchw, hidden_state, params, num_blocks=None):
    """Forward matching ReciprocalGatedCell.forward (stride=1, no norm).

    x_nchw: (N, Cin, H, W); hidden_state: None or (h, c) each (N, Cout, H, W).
    num_blocks: number of grid steps (must divide N).  Default is a single fat
      step for small N (best on v5e/v6e); pass num_blocks=2 on v7x so both
      TensorCores get work.
    Returns (h_next, c_next), each (N, Cout, H, W).
    """
    N, Cin, H, W = x_nchw.shape
    Cout = params['b_pre'].shape[-1]
    CT = 2 * Cout + Cin
    Hp, Wp = H + 2, W + 2
    P = Hp * Wp
    Pp = ((P + 127) // 128) * 128        # lane-pad each element to 128*k

    if num_blocks is None:
        num_blocks = 2 if (N >= 4 and N % 2 == 0) else 1
    assert N % num_blocks == 0, "num_blocks must divide the batch size"
    NB = N // num_blocks
    L = NB * Pp

    if hidden_state is None:
        h_cur = jnp.zeros((N, Cout, H, W), x_nchw.dtype)
        c_cur = jnp.zeros((N, Cout, H, W), x_nchw.dtype)
    else:
        h_cur, c_cur = hidden_state

    # Channel order [h | c | x]: the epilogue h/c row slices are 16-aligned.
    comb = jnp.concatenate([h_cur, c_cur, x_nchw], axis=1)         # (N,CT,H,W)
    comb = jnp.pad(comb, ((0, 0), (0, 0), (1, 1), (1, 1)))         # (N,CT,Hp,Wp)
    comb = comb.reshape(N, CT, P)
    comb = jnp.pad(comb, ((0, 0), (0, 0), (0, Pp - P)))            # (N,CT,Pp)
    comb = comb.reshape(num_blocks, NB, CT, Pp).transpose(0, 2, 1, 3)
    comb = comb.reshape(num_blocks, CT, L).astype(jnp.bfloat16)    # bf16 DMA

    w_fused, b_fused = pack_rgc_params(params)

    out = pl.pallas_call(
        functools.partial(_rgc_kernel, wp=Wp),
        grid=(num_blocks,),
        in_specs=[
            pl.BlockSpec((1, CT, L), lambda g: (g, 0, 0)),
            pl.BlockSpec((KH * KW, 5 * Cout, CT), lambda g: (0, 0, 0)),
            pl.BlockSpec((5 * Cout, 1), lambda g: (0, 0)),
        ],
        out_specs=pl.BlockSpec((1, 2 * Cout, L), lambda g: (g, 0, 0)),
        out_shape=jax.ShapeDtypeStruct((num_blocks, 2 * Cout, L), x_nchw.dtype),
        compiler_params=pltpu.CompilerParams(
            dimension_semantics=("parallel",),
            vmem_limit_bytes=32 * 1024 * 1024),
    )(comb, w_fused, b_fused)

    # Undo the lane flattening; the result is already channel-major (NCHW).
    out = out.reshape(num_blocks, 2 * Cout, NB, Pp).transpose(0, 2, 1, 3)
    out = out.reshape(N, 2 * Cout, Pp)[:, :, :P]
    out = out.reshape(N, 2 * Cout, Hp, Wp)[:, :, :H, :W]
    return out[:, :Cout], out[:, Cout:]


# -----------------------------------------------------------------------------
# Pure-JAX reference (lax.conv, default precision).
# -----------------------------------------------------------------------------
def _ref_cell(x, hidden_state, params):
    def conv(inp, w, b):
        y = jax.lax.conv_general_dilated(
            inp, w, window_strides=(1, 1), padding='SAME',
            dimension_numbers=('NCHW', 'HWIO', 'NCHW'))
        return y + b.reshape(1, -1, 1, 1)

    h, c = hidden_state
    x_pre = conv(x, params['w_pre'], params['b_pre'])
    h_next = (1 - jax.nn.sigmoid(conv(c, params['w_ch'], params['b_ch']))) * x_pre \
           + (1 - jax.nn.sigmoid(conv(h, params['w_hh'], params['b_hh']))) * h
    c_next = (1 - jax.nn.sigmoid(conv(h, params['w_hc'], params['b_hc']))) * x_pre \
           + (1 - jax.nn.sigmoid(conv(c, params['w_cc'], params['b_cc']))) * c
    return jnp.maximum(h_next, 0.0), jnp.maximum(c_next, 0.0)


if __name__ == "__main__":
    N, Cin, Cout, H, W = 2, 4, 16, 16, 16
    key = jax.random.PRNGKey(0)
    keys = jax.random.split(key, 16)

    def init(k, shape, scale=0.1):
        return jax.random.normal(k, shape, jnp.float32) * scale

    # Deterministic parameter init (HWIO conv weights + per-channel biases).
    params = {
        'w_pre': init(keys[0], (KH, KW, Cin, Cout)),  'b_pre': init(keys[1], (Cout,)),
        'w_ch':  init(keys[2], (KH, KW, Cout, Cout)), 'b_ch':  init(keys[3], (Cout,)),
        'w_hh':  init(keys[4], (KH, KW, Cout, Cout)), 'b_hh':  init(keys[5], (Cout,)),
        'w_hc':  init(keys[6], (KH, KW, Cout, Cout)), 'b_hc':  init(keys[7], (Cout,)),
        'w_cc':  init(keys[8], (KH, KW, Cout, Cout)), 'b_cc':  init(keys[9], (Cout,)),
    }

    x = jax.random.normal(keys[10], (N, Cin, H, W), jnp.float32)
    h0 = jax.random.normal(keys[11], (N, Cout, H, W), jnp.float32) * 0.5
    c0 = jax.random.normal(keys[12], (N, Cout, H, W), jnp.float32) * 0.5

    # Tolerance for the bf16-operand / f32-accumulate MXU path.
    TOL = dict(atol=2e-2, rtol=2e-2)

    # --- provided hidden state, single fat grid step (default) ---
    h_next, c_next = reciprocal_gated_cell(x, (h0, c0), params)
    jax.block_until_ready((h_next, c_next))
    h_ref, c_ref = _ref_cell(x, (h0, c0), params)
    assert h_next.shape == (N, Cout, H, W) and c_next.shape == (N, Cout, H, W)
    assert jnp.allclose(h_next, h_ref, **TOL)
    assert jnp.allclose(c_next, c_ref, **TOL)

    # --- hidden_state=None path (zero-initialized h/c) ---
    h_next0, c_next0 = reciprocal_gated_cell(x, None, params)
    jax.block_until_ready((h_next0, c_next0))
    zeros = jnp.zeros((N, Cout, H, W), jnp.float32)
    h_ref0, c_ref0 = _ref_cell(x, (zeros, zeros), params)
    assert jnp.allclose(h_next0, h_ref0, **TOL)
    assert jnp.allclose(c_next0, c_ref0, **TOL)

    # --- two parallel grid blocks (v7x dual-TensorCore path) ---
    h_next2, c_next2 = reciprocal_gated_cell(x, (h0, c0), params, num_blocks=2)
    jax.block_until_ready((h_next2, c_next2))
    assert jnp.allclose(h_next2, h_ref, **TOL)
    assert jnp.allclose(c_next2, c_ref, **TOL)

    print("KERNEL_OK")
</pallas_src>

<mosaic_0001>
module attributes {stable_mosaic.version = 11 : i64} {
  func.func @_rgc_kernel(%arg0: i32, %arg1: memref<1x36x768xbf16, #tpu.memory_space<vmem>>, %arg2: memref<9x80x36xbf16, #tpu.memory_space<vmem>>, %arg3: memref<80x1xf32, #tpu.memory_space<vmem>>, %arg4: memref<1x32x768xf32, #tpu.memory_space<vmem>>) attributes {dimension_semantics = [#tpu.dimension_semantics<parallel>], iteration_bounds = array<i64: 1>, scalar_prefetch = 0 : i64, scratch_operands = 0 : i64, tpu.core_type = #tpu.core_type<tc>, window_params = [{transform_indices = @transform_0, window_bounds = array<i64: 1, 36, 768>}, {pipeline_mode = #tpu.pipeline_mode<synchronous>, transform_indices = @transform_1, window_bounds = array<i64: 9, 80, 36>}, {pipeline_mode = #tpu.pipeline_mode<synchronous>, transform_indices = @transform_2, window_bounds = array<i64: 80, 1>}, {transform_indices = @transform_3, window_bounds = array<i64: 1, 32, 768>}]} {
    %c0 = arith.constant 0 : index
    %c0_0 = arith.constant 0 : index
    %c0_1 = arith.constant 0 : index
    %0 = vector.load %arg1[%c0, %c0_0, %c0_1] : memref<1x36x768xbf16, #tpu.memory_space<vmem>>, vector<1x36x768xbf16>
    %1 = vector.shape_cast %0 : vector<1x36x768xbf16> to vector<36x768xbf16>
    %2 = arith.extf %1 : vector<36x768xbf16> to vector<36x768xf32>
    %cst = arith.constant 0.000000e+00 : f32
    %3 = vector.broadcast %cst : f32 to vector<80x768xf32>
    %c0_2 = arith.constant 0 : index
    %c0_3 = arith.constant 0 : index
    %c0_4 = arith.constant 0 : index
    %4 = vector.load %arg2[%c0_2, %c0_3, %c0_4] : memref<9x80x36xbf16, #tpu.memory_space<vmem>>, vector<1x80x36xbf16>
    %5 = vector.shape_cast %4 : vector<1x80x36xbf16> to vector<80x36xbf16>
    %6 = arith.truncf %2 : vector<36x768xf32> to vector<36x768xbf16>
    %cst_5 = arith.constant dense<0.000000e+00> : vector<80x768xf32>
    %7 = tpu.matmul %5, %6, %cst_5 {dimension_numbers = #tpu.dot_dimension_numbers<[1], [0], [0], [1], [0, 0, 1, 1], [], []>} : vector<80x36xbf16>, vector<36x768xbf16>, vector<80x768xf32> -> vector<80x768xf32>
    %8 = arith.addf %3, %7 : vector<80x768xf32>
    %c767_i32 = arith.constant 767 : i32
    %9 = tpu.dynamic_rotate %2 by %c767_i32 dim 1 : vector<36x768xf32>, i32 -> vector<36x768xf32>
    %c1 = arith.constant 1 : index
    %c0_6 = arith.constant 0 : index
    %c0_7 = arith.constant 0 : index
    %10 = vector.load %arg2[%c1, %c0_6, %c0_7] : memref<9x80x36xbf16, #tpu.memory_space<vmem>>, vector<1x80x36xbf16>
    %11 = vector.shape_cast %10 : vector<1x80x36xbf16> to vector<80x36xbf16>
    %12 = arith.truncf %9 : vector<36x768xf32> to vector<36x768xbf16>
    %cst_8 = arith.constant dense<0.000000e+00> : vector<80x768xf32>
    %13 = tpu.matmul %11, %12, %cst_8 {dimension_numbers = #tpu.dot_dimension_numbers<[1], [0], [0], [1], [0, 0, 1, 1], [], []>} : vector<80x36xbf16>, vector<36x768xbf16>, vector<80x768xf32> -> vector<80x768xf32>
    %14 = arith.addf %8, %13 : vector<80x768xf32>
    %c766_i32 = arith.constant 766 : i32
    %15 = tpu.dynamic_rotate %2 by %c766_i32 dim 1 : vector<36x768xf32>, i32 -> vector<36x768xf32>
    %c2 = arith.constant 2 : index
    %c0_9 = arith.constant 0 : index
    %c0_10 = arith.constant 0 : index
    %16 = vector.load %arg2[%c2, %c0_9, %c0_10] : memref<9x80x36xbf16, #tpu.memory_space<vmem>>, vector<1x80x36xbf16>
    %17 = vector.shape_cast %16 : vector<1x80x36xbf16> to vector<80x36xbf16>
    %18 = arith.truncf %15 : vector<36x768xf32> to vector<36x768xbf16>
    %cst_11 = arith.constant dense<0.000000e+00> : vector<80x768xf32>
    %19 = tpu.matmul %17, %18, %cst_11 {dimension_numbers = #tpu.dot_dimension_numbers<[1], [0], [0], [1], [0, 0, 1, 1], [], []>} : vector<80x36xbf16>, vector<36x768xbf16>, vector<80x768xf32> -> vector<80x768xf32>
    %20 = arith.addf %14, %19 : vector<80x768xf32>
    %c750_i32 = arith.constant 750 : i32
    %21 = tpu.dynamic_rotate %2 by %c750_i32 dim 1 : vector<36x768xf32>, i32 -> vector<36x768xf32>
    %c3 = arith.constant 3 : index
    %c0_12 = arith.constant 0 : index
    %c0_13 = arith.constant 0 : index
    %22 = vector.load %arg2[%c3, %c0_12, %c0_13] : memref<9x80x36xbf16, #tpu.memory_space<vmem>>, vector<1x80x36xbf16>
    %23 = vector.shape_cast %22 : vector<1x80x36xbf16> to vector<80x36xbf16>
    %24 = arith.truncf %21 : vector<36x768xf32> to vector<36x768xbf16>
    %cst_14 = arith.constant dense<0.000000e+00> : vector<80x768xf32>
    %25 = tpu.matmul %23, %24, %cst_14 {dimension_numbers = #tpu.dot_dimension_numbers<[1], [0], [0], [1], [0, 0, 1, 1], [], []>} : vector<80x36xbf16>, vector<36x768xbf16>, vector<80x768xf32> -> vector<80x768xf32>
    %26 = arith.addf %20, %25 : vector<80x768xf32>
    %c749_i32 = arith.constant 749 : i32
    %27 = tpu.dynamic_rotate %2 by %c749_i32 dim 1 : vector<36x768xf32>, i32 -> vector<36x768xf32>
    %c4 = arith.constant 4 : index
    %c0_15 = arith.constant 0 : index
    %c0_16 = arith.constant 0 : index
    %28 = vector.load %arg2[%c4, %c0_15, %c0_16] : memref<9x80x36xbf16, #tpu.memory_space<vmem>>, vector<1x80x36xbf16>
    %29 = vector.shape_cast %28 : vector<1x80x36xbf16> to vector<80x36xbf16>
    %30 = arith.truncf %27 : vector<36x768xf32> to vector<36x768xbf16>
    %cst_17 = arith.constant dense<0.000000e+00> : vector<80x768xf32>
    %31 = tpu.matmul %29, %30, %cst_17 {dimension_numbers = #tpu.dot_dimension_numbers<[1], [0], [0], [1], [0, 0, 1, 1], [], []>} : vector<80x36xbf16>, vector<36x768xbf16>, vector<80x768xf32> -> vector<80x768xf32>
    %32 = arith.addf %26, %31 : vector<80x768xf32>
    %c748_i32 = arith.constant 748 : i32
    %33 = tpu.dynamic_rotate %2 by %c748_i32 dim 1 : vector<36x768xf32>, i32 -> vector<36x768xf32>
    %c5 = arith.constant 5 : index
    %c0_18 = arith.constant 0 : index
    %c0_19 = arith.constant 0 : index
    %34 = vector.load %arg2[%c5, %c0_18, %c0_19] : memref<9x80x36xbf16, #tpu.memory_space<vmem>>, vector<1x80x36xbf16>
    %35 = vector.shape_cast %34 : vector<1x80x36xbf16> to vector<80x36xbf16>
    %36 = arith.truncf %33 : vector<36x768xf32> to vector<36x768xbf16>
    %cst_20 = arith.constant dense<0.000000e+00> : vector<80x768xf32>
    %37 = tpu.matmul %35, %36, %cst_20 {dimension_numbers = #tpu.dot_dimension_numbers<[1], [0], [0], [1], [0, 0, 1, 1], [], []>} : vector<80x36xbf16>, vector<36x768xbf16>, vector<80x768xf32> -> vector<80x768xf32>
    %38 = arith.addf %32, %37 : vector<80x768xf32>
    %c732_i32 = arith.constant 732 : i32
    %39 = tpu.dynamic_rotate %2 by %c732_i32 dim 1 : vector<36x768xf32>, i32 -> vector<36x768xf32>
    %c6 = arith.constant 6 : index
    %c0_21 = arith.constant 0 : index
    %c0_22 = arith.constant 0 : index
    %40 = vector.load %arg2[%c6, %c0_21, %c0_22] : memref<9x80x36xbf16, #tpu.memory_space<vmem>>, vector<1x80x36xbf16>
    %41 = vector.shape_cast %40 : vector<1x80x36xbf16> to vector<80x36xbf16>
    %42 = arith.truncf %39 : vector<36x768xf32> to vector<36x768xbf16>
    %cst_23 = arith.constant dense<0.000000e+00> : vector<80x768xf32>
    %43 = tpu.matmul %41, %42, %cst_23 {dimension_numbers = #tpu.dot_dimension_numbers<[1], [0], [0], [1], [0, 0, 1, 1], [], []>} : vector<80x36xbf16>, vector<36x768xbf16>, vector<80x768xf32> -> vector<80x768xf32>
    %44 = arith.addf %38, %43 : vector<80x768xf32>
    %c731_i32 = arith.constant 731 : i32
    %45 = tpu.dynamic_rotate %2 by %c731_i32 dim 1 : vector<36x768xf32>, i32 -> vector<36x768xf32>
    %c7 = arith.constant 7 : index
    %c0_24 = arith.constant 0 : index
    %c0_25 = arith.constant 0 : index
    %46 = vector.load %arg2[%c7, %c0_24, %c0_25] : memref<9x80x36xbf16, #tpu.memory_space<vmem>>, vector<1x80x36xbf16>
    %47 = vector.shape_cast %46 : vector<1x80x36xbf16> to vector<80x36xbf16>
    %48 = arith.truncf %45 : vector<36x768xf32> to vector<36x768xbf16>
    %cst_26 = arith.constant dense<0.000000e+00> : vector<80x768xf32>
    %49 = tpu.matmul %47, %48, %cst_26 {dimension_numbers = #tpu.dot_dimension_numbers<[1], [0], [0], [1], [0, 0, 1, 1], [], []>} : vector<80x36xbf16>, vector<36x768xbf16>, vector<80x768xf32> -> vector<80x768xf32>
    %50 = arith.addf %44, %49 : vector<80x768xf32>
    %c730_i32 = arith.constant 730 : i32
    %51 = tpu.dynamic_rotate %2 by %c730_i32 dim 1 : vector<36x768xf32>, i32 -> vector<36x768xf32>
    %c8 = arith.constant 8 : index
    %c0_27 = arith.constant 0 : index
    %c0_28 = arith.constant 0 : index
    %52 = vector.load %arg2[%c8, %c0_27, %c0_28] : memref<9x80x36xbf16, #tpu.memory_space<vmem>>, vector<1x80x36xbf16>
    %53 = vector.shape_cast %52 : vector<1x80x36xbf16> to vector<80x36xbf16>
    %54 = arith.truncf %51 : vector<36x768xf32> to vector<36x768xbf16>
    %cst_29 = arith.constant dense<0.000000e+00> : vector<80x768xf32>
    %55 = tpu.matmul %53, %54, %cst_29 {dimension_numbers = #tpu.dot_dimension_numbers<[1], [0], [0], [1], [0, 0, 1, 1], [], []>} : vector<80x36xbf16>, vector<36x768xbf16>, vector<80x768xf32> -> vector<80x768xf32>
    %56 = arith.addf %50, %55 : vector<80x768xf32>
    %c0_30 = arith.constant 0 : index
    %c0_31 = arith.constant 0 : index
    %57 = vector.load %arg3[%c0_30, %c0_31] : memref<80x1xf32, #tpu.memory_space<vmem>>, vector<80x1xf32>
    %58 = vector.broadcast %57 : vector<80x1xf32> to vector<80x768xf32>
    %59 = arith.addf %56, %58 : vector<80x768xf32>
    %60 = vector.extract_strided_slice %59 {offsets = [0, 0], sizes = [16, 768], strides = [1, 1]} : vector<80x768xf32> to vector<16x768xf32>
    %61 = vector.extract_strided_slice %59 {offsets = [16, 0], sizes = [16, 768], strides = [1, 1]} : vector<80x768xf32> to vector<16x768xf32>
    %cst_32 = arith.constant 0.000000e+00 : f32
    %62 = vector.broadcast %cst_32 : f32 to vector<16x768xf32>
    %63 = arith.subf %62, %61 : vector<16x768xf32>
    %64 = arith.negf %63 : vector<16x768xf32>
    %65 = math.exp %64 : vector<16x768xf32>
    %cst_33 = arith.constant 1.000000e+00 : f32
    %66 = vector.broadcast %cst_33 : f32 to vector<16x768xf32>
    %67 = arith.addf %66, %65 : vector<16x768xf32>
    %68 = arith.divf %66, %67 : vector<16x768xf32>
    %69 = vector.extract_strided_slice %59 {offsets = [32, 0], sizes = [16, 768], strides = [1, 1]} : vector<80x768xf32> to vector<16x768xf32>
    %cst_34 = arith.constant 0.000000e+00 : f32
    %70 = vector.broadcast %cst_34 : f32 to vector<16x768xf32>
    %71 = arith.subf %70, %69 : vector<16x768xf32>
    %72 = arith.negf %71 : vector<16x768xf32>
    %73 = math.exp %72 : vector<16x768xf32>
    %cst_35 = arith.constant 1.000000e+00 : f32
    %74 = vector.broadcast %cst_35 : f32 to vector<16x768xf32>
    %75 = arith.addf %74, %73 : vector<16x768xf32>
    %76 = arith.divf %74, %75 : vector<16x768xf32>
    %77 = vector.extract_strided_slice %59 {offsets = [48, 0], sizes = [16, 768], strides = [1, 1]} : vector<80x768xf32> to vector<16x768xf32>
    %cst_36 = arith.constant 0.000000e+00 : f32
    %78 = vector.broadcast %cst_36 : f32 to vector<16x768xf32>
    %79 = arith.subf %78, %77 : vector<16x768xf32>
    %80 = arith.negf %79 : vector<16x768xf32>
    %81 = math.exp %80 : vector<16x768xf32>
    %cst_37 = arith.constant 1.000000e+00 : f32
    %82 = vector.broadcast %cst_37 : f32 to vector<16x768xf32>
    %83 = arith.addf %82, %81 : vector<16x768xf32>
    %84 = arith.divf %82, %83 : vector<16x768xf32>
    %85 = vector.extract_strided_slice %59 {offsets = [64, 0], sizes = [16, 768], strides = [1, 1]} : vector<80x768xf32> to vector<16x768xf32>
    %cst_38 = arith.constant 0.000000e+00 : f32
    %86 = vector.broadcast %cst_38 : f32 to vector<16x768xf32>
    %87 = arith.subf %86, %85 : vector<16x768xf32>
    %88 = arith.negf %87 : vector<16x768xf32>
    %89 = math.exp %88 : vector<16x768xf32>
    %cst_39 = arith.constant 1.000000e+00 : f32
    %90 = vector.broadcast %cst_39 : f32 to vector<16x768xf32>
    %91 = arith.addf %90, %89 : vector<16x768xf32>
    %92 = arith.divf %90, %91 : vector<16x768xf32>
    %93 = vector.extract_strided_slice %27 {offsets = [0, 0], sizes = [16, 768], strides = [1, 1]} : vector<36x768xf32> to vector<16x768xf32>
    %94 = vector.extract_strided_slice %27 {offsets = [16, 0], sizes = [16, 768], strides = [1, 1]} : vector<36x768xf32> to vector<16x768xf32>
    %95 = arith.mulf %68, %60 : vector<16x768xf32>
    %96 = arith.mulf %84, %93 : vector<16x768xf32>
    %97 = arith.addf %95, %96 : vector<16x768xf32>
    %cst_40 = arith.constant 0.000000e+00 : f32
    %98 = vector.broadcast %cst_40 : f32 to vector<16x768xf32>
    %99 = arith.maximumf %97, %98 : vector<16x768xf32>
    %100 = arith.mulf %76, %60 : vector<16x768xf32>
    %101 = arith.mulf %92, %94 : vector<16x768xf32>
    %102 = arith.addf %100, %101 : vector<16x768xf32>
    %cst_41 = arith.constant 0.000000e+00 : f32
    %103 = vector.broadcast %cst_41 : f32 to vector<16x768xf32>
    %104 = arith.maximumf %102, %103 : vector<16x768xf32>
    %c0_42 = arith.constant 0 : index
    %c0_43 = arith.constant 0 : index
    %c0_44 = arith.constant 0 : index
    %105 = vector.load %arg4[%c0_42, %c0_43, %c0_44] : memref<1x32x768xf32, #tpu.memory_space<vmem>>, vector<1x16x768xf32>
    %106 = vector.shape_cast %105 : vector<1x16x768xf32> to vector<16x768xf32>
    %107 = vector.shape_cast %99 : vector<16x768xf32> to vector<1x16x768xf32>
    tpu.vector_store %arg4[%c0_42, %c0_43, %c0_44], %107 {strides = array<i32>} : memref<1x32x768xf32, #tpu.memory_space<vmem>>, vector<1x16x768xf32>,
    %c0_45 = arith.constant 0 : index
    %c16 = arith.constant 16 : index
    %c0_46 = arith.constant 0 : index
    %108 = vector.load %arg4[%c0_45, %c16, %c0_46] : memref<1x32x768xf32, #tpu.memory_space<vmem>>, vector<1x16x768xf32>
    %109 = vector.shape_cast %108 : vector<1x16x768xf32> to vector<16x768xf32>
    %110 = vector.shape_cast %104 : vector<16x768xf32> to vector<1x16x768xf32>
    tpu.vector_store %arg4[%c0_45, %c16, %c0_46], %110 {strides = array<i32>} : memref<1x32x768xf32, #tpu.memory_space<vmem>>, vector<1x16x768xf32>,
    return
  }
  func.func @transform_0(%arg0: i32) -> (i32, i32, i32) {
    %c0_i32 = arith.constant 0 : i32
    %c0_i32_0 = arith.constant 0 : i32
    %c0_i32_1 = arith.constant 0 : i32
    return %arg0, %c0_i32, %c0_i32_0 : i32, i32, i32
  }
  func.func @transform_1(%arg0: i32) -> (i32, i32, i32) {
    %c0_i32 = arith.constant 0 : i32
    %c0_i32_0 = arith.constant 0 : i32
    %c0_i32_1 = arith.constant 0 : i32
    %c0_i32_2 = arith.constant 0 : i32
    return %c0_i32, %c0_i32_0, %c0_i32_1 : i32, i32, i32
  }
  func.func @transform_2(%arg0: i32) -> (i32, i32) {
    %c0_i32 = arith.constant 0 : i32
    %c0_i32_0 = arith.constant 0 : i32
    %c0_i32_1 = arith.constant 0 : i32
    return %c0_i32, %c0_i32_0 : i32, i32
  }
  func.func @transform_3(%arg0: i32) -> (i32, i32, i32) {
    %c0_i32 = arith.constant 0 : i32
    %c0_i32_0 = arith.constant 0 : i32
    %c0_i32_1 = arith.constant 0 : i32
    return %arg0, %c0_i32, %c0_i32_0 : i32, i32, i32
  }
}

</mosaic_0001>

<llo_original>
// kernel: reciprocal_gated_cell.1
$region0: #{reciprocal_gated_cell.1}
  #allocation0 [shape = 'u32[]', space=smem, size = 0x4, offset = 0x4, fixed_abs, tag = 'smem constant byte address 0x4 - core index']
  #allocation1 [shape = 'u32[144,128]{1,0:T(1,128)}', space=vmem, size = 0x12000, scoped, tag = 'internal scratch']
  %s0 = inlined_call_operand.vmem [shape: bf16[1,36,768], index: 0, kind: input, shape index: {}]
  %s1 = inlined_call_operand.vmem [shape: bf16[9,80,36], index: 1, kind: input, shape index: {}]
  %s2 = inlined_call_operand.vmem [shape: f32[80,1], index: 2, kind: input, shape index: {}]
  %s3 = inlined_call_operand.vmem [shape: f32[1,32,768], index: 3, kind: output, shape index: {}]
  %s4 = sld [smem:[#allocation0]]
  $region22: #{reciprocal_gated_cell.1} parent=0
    _
  %s6 = ssub.s32 1, %s4
  %s7 = scalar_select 0, %s6, %s4
  // Predicated region
  $region2: #{reciprocal_gated_cell.1} parent=0 // pred_check
    _
  $region3: #{reciprocal_gated_cell.1} parent=0 // pred_check_branch
    %9 = sbr.rel (0) target = $region5
  $region4: #{reciprocal_gated_cell.1} parent=0 // pred_region
    _
  $region5: #{reciprocal_gated_cell.1} parent=0 // pred_fallthru
    _
  // Predicated region
  $region6: #{reciprocal_gated_cell.1} parent=0 // pred_check
    _
  $region7: #{reciprocal_gated_cell.1} parent=0 // pred_check_branch
    %11 = sbr.rel (0) target = $region9
  $region8: #{reciprocal_gated_cell.1} parent=0 // pred_region
    _
  $region9: #{reciprocal_gated_cell.1} parent=0 // pred_fallthru
    _
  // Predicated region
  $region10: #{reciprocal_gated_cell.1} parent=0 // pred_check
    _
  $region11: #{reciprocal_gated_cell.1} parent=0 // pred_check_branch
    %13 = sbr.rel (0) target = $region13
  $region12: #{reciprocal_gated_cell.1} parent=0 // pred_region
    _
  $region13: #{reciprocal_gated_cell.1} parent=0 // pred_fallthru
    _
  %v15 = vld [vmem:[%s0] sm:$0xff]
  %v16 = vld [vmem:[%s0 + $0x8] sm:$0xff]
  %v17 = vld [vmem:[%s0 + $0x10] sm:$0xff]
  %v18 = vld [vmem:[%s0 + $0x18] sm:$0xff]
  %v19 = vld [vmem:[%s0 + $0x20] sm:$0xff]
  %v20 = vld [vmem:[%s0 + $0x28] sm:$0xff]
  %v21 = vld [vmem:[%s0 + $0x30] sm:$0xff]
  %v22 = vld [vmem:[%s0 + $0x38] sm:$0xff]
  %v23 = vld [vmem:[%s0 + $0x40] sm:$0xff]
  %v24 = vld [vmem:[%s0 + $0x48] sm:$0xff]
  %v25 = vld [vmem:[%s0 + $0x50] sm:$0xff]
  %v26 = vld [vmem:[%s0 + $0x58] sm:$0xff]
  %v27 = vld [vmem:[%s0 + $0x60] sm:$0x33]
  %v28 = vld [vmem:[%s0 + $0x68] sm:$0x33]
  %v29 = vld [vmem:[%s0 + $0x70] sm:$0x33]
  %v30 = vunpack.c.l.bf16 %v15
  %v31 = vunpack.c.h.bf16 %v15
  %v32 = vunpack.c.l.bf16 %v16
  %v33 = vunpack.c.h.bf16 %v16
  %v34 = vunpack.c.l.bf16 %v17
  %v35 = vunpack.c.h.bf16 %v17
  %v36 = vunpack.c.l.bf16 %v18
  %v37 = vunpack.c.h.bf16 %v18
  %v38 = vunpack.c.l.bf16 %v19
  %v39 = vunpack.c.h.bf16 %v19
  %v40 = vunpack.c.l.bf16 %v20
  %v41 = vunpack.c.h.bf16 %v20
  %v42 = vunpack.c.l.bf16 %v21
  %v43 = vunpack.c.h.bf16 %v21
  %v44 = vunpack.c.l.bf16 %v22
  %v45 = vunpack.c.h.bf16 %v22
  %v46 = vunpack.c.l.bf16 %v23
  %v47 = vunpack.c.h.bf16 %v23
  %v48 = vunpack.c.l.bf16 %v24
  %v49 = vunpack.c.h.bf16 %v24
  %v50 = vunpack.c.l.bf16 %v25
  %v51 = vunpack.c.h.bf16 %v25
  %v52 = vunpack.c.l.bf16 %v26
  %v53 = vunpack.c.h.bf16 %v26
  %v54 = vunpack.c.l.bf16 %v27
  %v55 = vunpack.c.h.bf16 %v27
  %v56 = vunpack.c.l.bf16 %v28
  %v57 = vunpack.c.h.bf16 %v28
  %v58 = vunpack.c.l.bf16 %v29
  %v59 = vunpack.c.h.bf16 %v29
  %v60 = vld [vmem:[%s1] sm:$0xf]
  %v61 = vld [vmem:[%s1 + $0x4] sm:$0xf]
  %v62 = vld [vmem:[%s1 + $0x8] sm:$0xf]
  %v63 = vld [vmem:[%s1 + $0xc] sm:$0xf]
  %v64 = vld [vmem:[%s1 + $0x10] sm:$0xf]
  %v65 = vld [vmem:[%s1 + $0x14] sm:$0xf]
  %v66 = vld [vmem:[%s1 + $0x18] sm:$0xf]
  %v67 = vld [vmem:[%s1 + $0x1c] sm:$0xf]
  %v68 = vld [vmem:[%s1 + $0x20] sm:$0xf]
  %v69 = vld [vmem:[%s1 + $0x24] sm:$0xf]
  %70 = vrot.lane.b32.xlu0 %v30, 127
  %v71 = vpop.permute.xlu0 %70
  %72 = vrot.lane.b32.xlu0 %v36, 127
  %v73 = vpop.permute.xlu0 %72
  %74 = vrot.lane.b32.xlu0 %v42, 127
  %v75 = vpop.permute.xlu0 %74
  %76 = vrot.lane.b32.xlu0 %v48, 127
  %v77 = vpop.permute.xlu0 %76
  %78 = vrot.lane.b32.xlu0 %v54, 127
  %v79 = vpop.permute.xlu0 %78
  %80 = vrot.lane.b32.xlu0 %v31, 127
  %v81 = vpop.permute.xlu0 %80
  %82 = vrot.lane.b32.xlu0 %v37, 127
  %v83 = vpop.permute.xlu0 %82
  %84 = vrot.lane.b32.xlu0 %v43, 127
  %v85 = vpop.permute.xlu0 %84
  %86 = vrot.lane.b32.xlu0 %v49, 127
  %v87 = vpop.permute.xlu0 %86
  %88 = vrot.lane.b32.xlu0 %v55, 127
  %v89 = vpop.permute.xlu0 %88
  %90 = vrot.lane.b32.xlu0 %v32, 127
  %v91 = vpop.permute.xlu0 %90
  %92 = vrot.lane.b32.xlu0 %v38, 127
  %v93 = vpop.permute.xlu0 %92
  %94 = vrot.lane.b32.xlu0 %v44, 127
  %v95 = vpop.permute.xlu0 %94
  %96 = vrot.lane.b32.xlu0 %v50, 127
  %v97 = vpop.permute.xlu0 %96
  %98 = vrot.lane.b32.xlu0 %v56, 127
  %v99 = vpop.permute.xlu0 %98
  %100 = vrot.lane.b32.xlu0 %v33, 127
  %v101 = vpop.permute.xlu0 %100
  %102 = vrot.lane.b32.xlu0 %v39, 127
  %v103 = vpop.permute.xlu0 %102
  %104 = vrot.lane.b32.xlu0 %v45, 127
  %v105 = vpop.permute.xlu0 %104
  %106 = vrot.lane.b32.xlu0 %v51, 127
  %v107 = vpop.permute.xlu0 %106
  %108 = vrot.lane.b32.xlu0 %v57, 127
  %v109 = vpop.permute.xlu0 %108
  %110 = vrot.lane.b32.xlu0 %v34, 127
  %v111 = vpop.permute.xlu0 %110
  %112 = vrot.lane.b32.xlu0 %v40, 127
  %v113 = vpop.permute.xlu0 %112
  %114 = vrot.lane.b32.xlu0 %v46, 127
  %v115 = vpop.permute.xlu0 %114
  %116 = vrot.lane.b32.xlu0 %v52, 127
  %v117 = vpop.permute.xlu0 %116
  %118 = vrot.lane.b32.xlu0 %v58, 127
  %v119 = vpop.permute.xlu0 %118
  %120 = vrot.lane.b32.xlu0 %v35, 127
  %v121 = vpop.permute.xlu0 %120
  %122 = vrot.lane.b32.xlu0 %v41, 127
  %v123 = vpop.permute.xlu0 %122
  %124 = vrot.lane.b32.xlu0 %v47, 127
  %v125 = vpop.permute.xlu0 %124
  %126 = vrot.lane.b32.xlu0 %v53, 127
  %v127 = vpop.permute.xlu0 %126
  %128 = vrot.lane.b32.xlu0 %v59, 127
  %v129 = vpop.permute.xlu0 %128
  %v130 = vlaneseq
  %v131 = vand.u32 %v130, 127
  %vm132 = vcmp.lt.s32.totalorder %v131, 127
  %v133 = vsel %vm132, %v111, %v121
  %v134 = vsel %vm132, %v113, %v123
  %v135 = vsel %vm132, %v115, %v125
  %v136 = vsel %vm132, %v117, %v127
  %v137 = vsel %vm132, %v119, %v129
  %v138 = vsel %vm132, %v101, %v111
  %v139 = vsel %vm132, %v103, %v113
  %v140 = vsel %vm132, %v105, %v115
  %v141 = vsel %vm132, %v107, %v117
  %v142 = vsel %vm132, %v109, %v119
  %v143 = vsel %vm132, %v91, %v101
  %v144 = vsel %vm132, %v93, %v103
  %v145 = vsel %vm132, %v95, %v105
  %v146 = vsel %vm132, %v97, %v107
  %v147 = vsel %vm132, %v99, %v109
  %v148 = vsel %vm132, %v81, %v91
  %v149 = vsel %vm132, %v83, %v93
  %v150 = vsel %vm132, %v85, %v95
  %v151 = vsel %vm132, %v87, %v97
  %v152 = vsel %vm132, %v89, %v99
  %v153 = vsel %vm132, %v71, %v81
  %v154 = vsel %vm132, %v73, %v83
  %v155 = vsel %vm132, %v75, %v85
  %v156 = vsel %vm132, %v77, %v87
  %v157 = vsel %vm132, %v79, %v89
  %v158 = vsel %vm132, %v121, %v71
  %v159 = vsel %vm132, %v123, %v73
  %v160 = vsel %vm132, %v125, %v75
  %v161 = vsel %vm132, %v127, %v77
  %v162 = vsel %vm132, %v129, %v79
  %s163 = scalar_lea.vmem %s1, 40
  %v164 = vld [vmem:[%s163] sm:$0xf]
  %v165 = vld [vmem:[%s163 + $0x4] sm:$0xf]
  %v166 = vld [vmem:[%s163 + $0x8] sm:$0xf]
  %v167 = vld [vmem:[%s163 + $0xc] sm:$0xf]
  %v168 = vld [vmem:[%s163 + $0x10] sm:$0xf]
  %v169 = vld [vmem:[%s163 + $0x14] sm:$0xf]
  %v170 = vld [vmem:[%s163 + $0x18] sm:$0xf]
  %v171 = vld [vmem:[%s163 + $0x1c] sm:$0xf]
  %v172 = vld [vmem:[%s163 + $0x20] sm:$0xf]
  %v173 = vld [vmem:[%s163 + $0x24] sm:$0xf]
  %v174 = vpack.c.bf16 %v154, %v153
  %v175 = vpack.c.bf16 %v149, %v148
  %v176 = vpack.c.bf16 %v144, %v143
  %v177 = vpack.c.bf16 %v139, %v138
  %v178 = vpack.c.bf16 %v134, %v133
  %v179 = vpack.c.bf16 %v159, %v158
  %v180 = vpack.c.bf16 %v156, %v155
  %v181 = vpack.c.bf16 %v151, %v150
  %v182 = vpack.c.bf16 %v146, %v145
  %v183 = vpack.c.bf16 %v141, %v140
  %v184 = vpack.c.bf16 %v136, %v135
  %v185 = vpack.c.bf16 %v161, %v160
  %v186 = vpack.c.bf16 %v157, %v157
  %v187 = vpack.c.bf16 %v152, %v152
  %v188 = vpack.c.bf16 %v147, %v147
  %v189 = vpack.c.bf16 %v142, %v142
  %v190 = vpack.c.bf16 %v137, %v137
  %v191 = vpack.c.bf16 %v162, %v162
  %v202 = vunpack.c.l.b16 %v164
  %v203 = vunpack.c.l.b16 %v165
  %v204 = vunpack.c.l.b16 %v166
  %v205 = vunpack.c.l.b16 %v167
  %v206 = vunpack.c.l.b16 %v168
  %v207 = vunpack.c.l.b16 %v169
  %v208 = vunpack.c.l.b16 %v170
  %v209 = vunpack.c.l.b16 %v171
  %v210 = vunpack.c.l.b16 %v172
  %v211 = vunpack.c.l.b16 %v173
  %v212 = vpack.c.b16 %v203, %v202
  %v213 = vpack.c.b16 %v205, %v204
  %v214 = vpack.c.b16 %v207, %v206
  %v215 = vpack.c.b16 %v209, %v208
  %v216 = vpack.c.b16 %v211, %v210
  %vm217 = vcmask 293888
  %v219 = vsel %vm217, %v212, 0
  %v222 = vsel %vm217, %v213, 0
  %v225 = vsel %vm217, %v214, 0
  %v228 = vsel %vm217, %v215, 0
  %v231 = vsel %vm217, %v216, 0
  %vm233 = vcmask 1041408
  %v235 = vsel %vm233, %v186, 0
  %v238 = vsel %vm233, %v187, 0
  %v241 = vsel %vm233, %v188, 0
  %v244 = vsel %vm233, %v189, 0
  %v247 = vsel %vm233, %v190, 0
  %v250 = vsel %vm233, %v191, 0
  %252 = vmatprep.subr.bf16.mxu0 %v175
  %253 = vmatpush1.bf16.msra.mxu0 %v174
  %254 = vmatprep.subr.bf16.mxu0 %v181
  %255 = vmatpush1.bf16.msra.mxu0 %v180
  %256 = vmatprep.subr.bf16.mxu0 %v238
  %257 = vmatpush1.bf16.msra.mxu0 %v235
  %258 = vmatprep.subr.bf16.mxu0 0
  %259 = vmatpush1.bf16.msra.mxu0 0
  %260 = vmatprep.subr.bf16.mxu0 0
  %261 = vmatpush1.bf16.msra.mxu0 0
  %262 = vmatprep.subr.bf16.mxu0 0
  %263 = vmatpush1.bf16.msra.mxu0 0
  %264 = vmatprep.subr.bf16.mxu0 0
  %265 = vmatpush1.bf16.msra.mxu0 0
  %266 = vmatprep.subr.bf16.mxu0 0
  %267 = vmatpush1.bf16.msra.mxu0 0
  %268 = vmatprep.subr.bf16.mxu0 0
  %269 = vmatpush1.bf16.msra.mxu0 0
  %270 = vmatprep.subr.bf16.mxu0 0
  %271 = vmatpush1.bf16.msra.mxu0 0
  %272 = vmatprep.subr.bf16.mxu0 0
  %273 = vmatpush1.bf16.msra.mxu0 0
  %274 = vmatprep.subr.bf16.mxu0 0
  %275 = vmatpush1.bf16.msra.mxu0 0
  %276 = vmatprep.subr.bf16.mxu0 0
  %277 = vmatpush1.bf16.msra.mxu0 0
  %278 = vmatprep.subr.bf16.mxu0 0
  %279 = vmatpush1.bf16.msra.mxu0 0
  %280 = vmatprep.subr.bf16.mxu0 0
  %281 = vmatpush1.bf16.msra.mxu0 0
  %282 = vmatprep.subr.bf16.mxu0 0
  %283 = vmatpush1.bf16.msra.mxu0 0
  %284 = vmatprep.mubr.bf16.mxu0 0
  %285 = vmatmul.mubr.bf16.gmra.mrb[0].mxu0 %v219
  %v286 = vpop.f32.mrb[0].mxu0
  %v287 = vadd.f32 0.0, %v286
  %v288 = vpop.f32.mrb[0].mxu0
  %v289 = vadd.f32 0.0, %v288
  %v290 = vpop.f32.mrb[0].mxu0
  %v291 = vadd.f32 0.0, %v290
  %v292 = vpop.f32.mrb[0].mxu0
  %v293 = vadd.f32 0.0, %v292
  %294 = vmatprep.mubr.bf16.mxu0 0
  %295 = vmatmul.mubr.bf16.gmra.mrb[0].mxu0 %v222
  %v296 = vpop.f32.mrb[0].mxu0
  %v297 = vadd.f32 0.0, %v296
  %v298 = vpop.f32.mrb[0].mxu0
  %v299 = vadd.f32 0.0, %v298
  %v300 = vpop.f32.mrb[0].mxu0
  %v301 = vadd.f32 0.0, %v300
  %v302 = vpop.f32.mrb[0].mxu0
  %v303 = vadd.f32 0.0, %v302
  %304 = vmatprep.mubr.bf16.mxu0 0
  %305 = vmatmul.mubr.bf16.gmra.mrb[0].mxu0 %v225
  %v306 = vpop.f32.mrb[0].mxu0
  %v307 = vadd.f32 0.0, %v306
  %v308 = vpop.f32.mrb[0].mxu0
  %v309 = vadd.f32 0.0, %v308
  %v310 = vpop.f32.mrb[0].mxu0
  %v311 = vadd.f32 0.0, %v310
  %v312 = vpop.f32.mrb[0].mxu0
  %v313 = vadd.f32 0.0, %v312
  %314 = vmatprep.mubr.bf16.mxu0 0
  %315 = vmatmul.mubr.bf16.gmra.mrb[0].mxu0 %v228
  %v316 = vpop.f32.mrb[0].mxu0
  %v317 = vadd.f32 0.0, %v316
  %v318 = vpop.f32.mrb[0].mxu0
  %v319 = vadd.f32 0.0, %v318
  %v320 = vpop.f32.mrb[0].mxu0
  %v321 = vadd.f32 0.0, %v320
  %v322 = vpop.f32.mrb[0].mxu0
  %v323 = vadd.f32 0.0, %v322
  %324 = vmatprep.mubr.bf16.mxu0 0
  %325 = vmatmul.mubr.bf16.gmra.mrb[0].mxu0 %v231
  %v326 = vpop.f32.mrb[0].mxu0
  %v327 = vadd.f32 0.0, %v326
  %v328 = vpop.f32.mrb[0].mxu0
  %v329 = vadd.f32 0.0, %v328
  %v330 = vpop.f32.mrb[0].mxu0
  %v331 = vadd.f32 0.0, %v330
  %v332 = vpop.f32.mrb[0].mxu0
  %v333 = vadd.f32 0.0, %v332
  %334 = vdwg.mxu0
  %335 = vmatprep.subr.bf16.mxu0 %v177
  %336 = vmatpush1.bf16.msra.mxu0 %v176
  %337 = vmatprep.subr.bf16.mxu0 %v183
  %338 = vmatpush1.bf16.msra.mxu0 %v182
  %339 = vmatprep.subr.bf16.mxu0 %v244
  %340 = vmatpush1.bf16.msra.mxu0 %v241
  %341 = vmatprep.subr.bf16.mxu0 0
  %342 = vmatpush1.bf16.msra.mxu0 0
  %343 = vmatprep.subr.bf16.mxu0 0
  %344 = vmatpush1.bf16.msra.mxu0 0
  %345 = vmatprep.subr.bf16.mxu0 0
  %346 = vmatpush1.bf16.msra.mxu0 0
  %347 = vmatprep.subr.bf16.mxu0 0
  %348 = vmatpush1.bf16.msra.mxu0 0
  %349 = vmatprep.subr.bf16.mxu0 0
  %350 = vmatpush1.bf16.msra.mxu0 0
  %351 = vmatprep.subr.bf16.mxu0 0
  %352 = vmatpush1.bf16.msra.mxu0 0
  %353 = vmatprep.subr.bf16.mxu0 0
  %354 = vmatpush1.bf16.msra.mxu0 0
  %355 = vmatprep.subr.bf16.mxu0 0
  %356 = vmatpush1.bf16.msra.mxu0 0
  %357 = vmatprep.subr.bf16.mxu0 0
  %358 = vmatpush1.bf16.msra.mxu0 0
  %359 = vmatprep.subr.bf16.mxu0 0
  %360 = vmatpush1.bf16.msra.mxu0 0
  %361 = vmatprep.subr.bf16.mxu0 0
  %362 = vmatpush1.bf16.msra.mxu0 0
  %363 = vmatprep.subr.bf16.mxu0 0
  %364 = vmatpush1.bf16.msra.mxu0 0
  %365 = vmatprep.subr.bf16.mxu0 0
  %366 = vmatpush1.bf16.msra.mxu0 0
  %367 = vmatprep.mubr.bf16.mxu0 0
  %368 = vmatmul.mubr.bf16.gmra.mrb[0].mxu0 %v219
  %v369 = vpop.f32.mrb[0].mxu0
  %v370 = vadd.f32 0.0, %v369
  %v371 = vpop.f32.mrb[0].mxu0
  %v372 = vadd.f32 0.0, %v371
  %v373 = vpop.f32.mrb[0].mxu0
  %v374 = vadd.f32 0.0, %v373
  %v375 = vpop.f32.mrb[0].mxu0
  %v376 = vadd.f32 0.0, %v375
  %377 = vmatprep.mubr.bf16.mxu0 0
  %378 = vmatmul.mubr.bf16.gmra.mrb[0].mxu0 %v222
  %v379 = vpop.f32.mrb[0].mxu0
  %v380 = vadd.f32 0.0, %v379
  %v381 = vpop.f32.mrb[0].mxu0
  %v382 = vadd.f32 0.0, %v381
  %v383 = vpop.f32.mrb[0].mxu0
  %v384 = vadd.f32 0.0, %v383
  %v385 = vpop.f32.mrb[0].mxu0
  %v386 = vadd.f32 0.0, %v385
  %387 = vmatprep.mubr.bf16.mxu0 0
  %388 = vmatmul.mubr.bf16.gmra.mrb[0].mxu0 %v225
  %v389 = vpop.f32.mrb[0].mxu0
  %v390 = vadd.f32 0.0, %v389
  %v391 = vpop.f32.mrb[0].mxu0
  %v392 = vadd.f32 0.0, %v391
  %v393 = vpop.f32.mrb[0].mxu0
  %v394 = vadd.f32 0.0, %v393
  %v395 = vpop.f32.mrb[0].mxu0
  %v396 = vadd.f32 0.0, %v395
  %397 = vmatprep.mubr.bf16.mxu0 0
  %398 = vmatmul.mubr.bf16.gmra.mrb[0].mxu0 %v228
  %v399 = vpop.f32.mrb[0].mxu0
  %v400 = vadd.f32 0.0, %v399
  %v401 = vpop.f32.mrb[0].mxu0
  %v402 = vadd.f32 0.0, %v401
  %v403 = vpop.f32.mrb[0].mxu0
  %v404 = vadd.f32 0.0, %v403
  %v405 = vpop.f32.mrb[0].mxu0
  %v406 = vadd.f32 0.0, %v405
  %407 = vmatprep.mubr.bf16.mxu0 0
  %408 = vmatmul.mubr.bf16.gmra.mrb[0].mxu0 %v231
  %v409 = vpop.f32.mrb[0].mxu0
  %v410 = vadd.f32 0.0, %v409
  %v411 = vpop.f32.mrb[0].mxu0
  %v412 = vadd.f32 0.0, %v411
  %v413 = vpop.f32.mrb[0].mxu0
  %v414 = vadd.f32 0.0, %v413
  %v415 = vpop.f32.mrb[0].mxu0
  %v416 = vadd.f32 0.0, %v415
  %417 = vdwg.mxu0
  %418 = vmatprep.subr.bf16.mxu0 %v179
  %419 = vmatpush1.bf16.msra.mxu0 %v178
  %420 = vmatprep.subr.bf16.mxu0 %v185
  %421 = vmatpush1.bf16.msra.mxu0 %v184
  %422 = vmatprep.subr.bf16.mxu0 %v250
  %423 = vmatpush1.bf16.msra.mxu0 %v247
  %424 = vmatprep.subr.bf16.mxu0 0
  %425 = vmatpush1.bf16.msra.mxu0 0
  %426 = vmatprep.subr.bf16.mxu0 0
  %427 = vmatpush1.bf16.msra.mxu0 0
  %428 = vmatprep.subr.bf16.mxu0 0
  %429 = vmatpush1.bf16.msra.mxu0 0
  %430 = vmatprep.subr.bf16.mxu0 0
  %431 = vmatpush1.bf16.msra.mxu0 0
  %432 = vmatprep.subr.bf16.mxu0 0
  %433 = vmatpush1.bf16.msra.mxu0 0
  %434 = vmatprep.subr.bf16.mxu0 0
  %435 = vmatpush1.bf16.msra.mxu0 0
  %436 = vmatprep.subr.bf16.mxu0 0
  %437 = vmatpush1.bf16.msra.mxu0 0
  %438 = vmatprep.subr.bf16.mxu0 0
  %439 = vmatpush1.bf16.msra.mxu0 0
  %440 = vmatprep.subr.bf16.mxu0 0
  %441 = vmatpush1.bf16.msra.mxu0 0
  %442 = vmatprep.subr.bf16.mxu0 0
  %443 = vmatpush1.bf16.msra.mxu0 0
  %444 = vmatprep.subr.bf16.mxu0 0
  %445 = vmatpush1.bf16.msra.mxu0 0
  %446 = vmatprep.subr.bf16.mxu0 0
  %447 = vmatpush1.bf16.msra.mxu0 0
  %448 = vmatprep.subr.bf16.mxu0 0
  %449 = vmatpush1.bf16.msra.mxu0 0
  %450 = vmatprep.mubr.bf16.mxu0 0
  %451 = vmatmul.mubr.bf16.gmra.mrb[0].mxu0 %v219
  %v452 = vpop.f32.mrb[0].mxu0
  %v453 = vadd.f32 0.0, %v452
  %v454 = vpop.f32.mrb[0].mxu0
  %v455 = vadd.f32 0.0, %v454
  %v456 = vpop.f32.mrb[0].mxu0
  %v457 = vadd.f32 0.0, %v456
  %v458 = vpop.f32.mrb[0].mxu0
  %v459 = vadd.f32 0.0, %v458
  %460 = vmatprep.mubr.bf16.mxu0 0
  %461 = vmatmul.mubr.bf16.gmra.mrb[0].mxu0 %v222
  %v462 = vpop.f32.mrb[0].mxu0
  %v463 = vadd.f32 0.0, %v462
  %v464 = vpop.f32.mrb[0].mxu0
  %v465 = vadd.f32 0.0, %v464
  %v466 = vpop.f32.mrb[0].mxu0
  %v467 = vadd.f32 0.0, %v466
  %v468 = vpop.f32.mrb[0].mxu0
  %v469 = vadd.f32 0.0, %v468
  %470 = vmatprep.mubr.bf16.mxu0 0
  %471 = vmatmul.mubr.bf16.gmra.mrb[0].mxu0 %v225
  %v472 = vpop.f32.mrb[0].mxu0
  %v473 = vadd.f32 0.0, %v472
  %v474 = vpop.f32.mrb[0].mxu0
  %v475 = vadd.f32 0.0, %v474
  %v476 = vpop.f32.mrb[0].mxu0
  %v477 = vadd.f32 0.0, %v476
  %v478 = vpop.f32.mrb[0].mxu0
  %v479 = vadd.f32 0.0, %v478
  %480 = vmatprep.mubr.bf16.mxu0 0
  %481 = vmatmul.mubr.bf16.gmra.mrb[0].mxu0 %v228
  %v482 = vpop.f32.mrb[0].mxu0
  %v483 = vadd.f32 0.0, %v482
  %v484 = vpop.f32.mrb[0].mxu0
  %v485 = vadd.f32 0.0, %v484
  %v486 = vpop.f32.mrb[0].mxu0
  %v487 = vadd.f32 0.0, %v486
  %v488 = vpop.f32.mrb[0].mxu0
  %v489 = vadd.f32 0.0, %v488
  %490 = vmatprep.mubr.bf16.mxu0 0
  %491 = vmatmul.mubr.bf16.gmra.mrb[0].mxu0 %v231
  %v492 = vpop.f32.mrb[0].mxu0
  %v493 = vadd.f32 0.0, %v492
  %v494 = vpop.f32.mrb[0].mxu0
  %v495 = vadd.f32 0.0, %v494
  %v496 = vpop.f32.mrb[0].mxu0
  %v497 = vadd.f32 0.0, %v496
  %v498 = vpop.f32.mrb[0].mxu0
  %v499 = vadd.f32 0.0, %v498
  %500 = vdwg.mxu0
  %v511 = vunpack.c.l.b16 %v60
  %v512 = vunpack.c.l.b16 %v61
  %v513 = vunpack.c.l.b16 %v62
  %v514 = vunpack.c.l.b16 %v63
  %v515 = vunpack.c.l.b16 %v64
  %v516 = vunpack.c.l.b16 %v65
  %v517 = vunpack.c.l.b16 %v66
  %v518 = vunpack.c.l.b16 %v67
  %v519 = vunpack.c.l.b16 %v68
  %v520 = vunpack.c.l.b16 %v69
  %v521 = vpack.c.b16 %v512, %v511
  %v522 = vpack.c.b16 %v514, %v513
  %v523 = vpack.c.b16 %v516, %v515
  %v524 = vpack.c.b16 %v518, %v517
  %v525 = vpack.c.b16 %v520, %v519
  %v541 = vunpack.c.l.b16 %v15
  %v542 = vunpack.c.h.b16 %v15
  %v543 = vunpack.c.l.b16 %v16
  %v544 = vunpack.c.h.b16 %v16
  %v545 = vunpack.c.l.b16 %v17
  %v546 = vunpack.c.h.b16 %v17
  %v547 = vunpack.c.l.b16 %v18
  %v548 = vunpack.c.h.b16 %v18
  %v549 = vunpack.c.l.b16 %v19
  %v550 = vunpack.c.h.b16 %v19
  %v551 = vunpack.c.l.b16 %v20
  %v552 = vunpack.c.h.b16 %v20
  %v553 = vunpack.c.l.b16 %v21
  %v554 = vunpack.c.h.b16 %v21
  %v555 = vunpack.c.l.b16 %v22
  %v556 = vunpack.c.h.b16 %v22
  %v557 = vunpack.c.l.b16 %v23
  %v558 = vunpack.c.h.b16 %v23
  %v559 = vunpack.c.l.b16 %v24
  %v560 = vunpack.c.h.b16 %v24
  %v561 = vunpack.c.l.b16 %v25
  %v562 = vunpack.c.h.b16 %v25
  %v563 = vunpack.c.l.b16 %v26
  %v564 = vunpack.c.h.b16 %v26
  %v565 = vunpack.c.l.b16 %v27
  %v566 = vunpack.c.h.b16 %v27
  %v567 = vunpack.c.l.b16 %v28
  %v568 = vunpack.c.h.b16 %v28
  %v569 = vunpack.c.l.b16 %v29
  %v570 = vunpack.c.h.b16 %v29
  %v571 = vpack.c.b16 %v547, %v541
  %v572 = vpack.c.b16 %v548, %v542
  %v573 = vpack.c.b16 %v549, %v543
  %v574 = vpack.c.b16 %v550, %v544
  %v575 = vpack.c.b16 %v551, %v545
  %v576 = vpack.c.b16 %v552, %v546
  %v577 = vpack.c.b16 %v559, %v553
  %v578 = vpack.c.b16 %v560, %v554
  %v579 = vpack.c.b16 %v561, %v555
  %v580 = vpack.c.b16 %v562, %v556
  %v581 = vpack.c.b16 %v563, %v557
  %v582 = vpack.c.b16 %v564, %v558
  %v583 = vpack.c.b16 %v565, %v565
  %v584 = vpack.c.b16 %v566, %v566
  %v585 = vpack.c.b16 %v567, %v567
  %v586 = vpack.c.b16 %v568, %v568
  %v587 = vpack.c.b16 %v569, %v569
  %v588 = vpack.c.b16 %v570, %v570
  %v602 = vsel %vm217, %v521, 0
  %v605 = vsel %vm217, %v522, 0
  %v608 = vsel %vm217, %v523, 0
  %v611 = vsel %vm217, %v524, 0
  %v614 = vsel %vm217, %v525, 0
  %v617 = vsel %vm233, %v583, 0
  %v620 = vsel %vm233, %v584, 0
  %v623 = vsel %vm233, %v585, 0
  %v626 = vsel %vm233, %v586, 0
  %v629 = vsel %vm233, %v587, 0
  %v632 = vsel %vm233, %v588, 0
  %634 = vmatprep.subr.bf16.mxu0 %v572
  %635 = vmatpush1.bf16.msra.mxu0 %v571
  %636 = vmatprep.subr.bf16.mxu0 %v578
  %637 = vmatpush1.bf16.msra.mxu0 %v577
  %638 = vmatprep.subr.bf16.mxu0 %v620
  %639 = vmatpush1.bf16.msra.mxu0 %v617
  %640 = vmatprep.subr.bf16.mxu0 0
  %641 = vmatpush1.bf16.msra.mxu0 0
  %642 = vmatprep.subr.bf16.mxu0 0
  %643 = vmatpush1.bf16.msra.mxu0 0
  %644 = vmatprep.subr.bf16.mxu0 0
  %645 = vmatpush1.bf16.msra.mxu0 0
  %646 = vmatprep.subr.bf16.mxu0 0
  %647 = vmatpush1.bf16.msra.mxu0 0
  %648 = vmatprep.subr.bf16.mxu0 0
  %649 = vmatpush1.bf16.msra.mxu0 0
  %650 = vmatprep.subr.bf16.mxu0 0
  %651 = vmatpush1.bf16.msra.mxu0 0
  %652 = vmatprep.subr.bf16.mxu0 0
  %653 = vmatpush1.bf16.msra.mxu0 0
  %654 = vmatprep.subr.bf16.mxu0 0
  %655 = vmatpush1.bf16.msra.mxu0 0
  %656 = vmatprep.subr.bf16.mxu0 0
  %657 = vmatpush1.bf16.msra.mxu0 0
  %658 = vmatprep.subr.bf16.mxu0 0
  %659 = vmatpush1.bf16.msra.mxu0 0
  %660 = vmatprep.subr.bf16.mxu0 0
  %661 = vmatpush1.bf16.msra.mxu0 0
  %662 = vmatprep.subr.bf16.mxu0 0
  %663 = vmatpush1.bf16.msra.mxu0 0
  %664 = vmatprep.subr.bf16.mxu0 0
  %665 = vmatpush1.bf16.msra.mxu0 0
  %666 = vmatprep.mubr.bf16.mxu0 0
  %667 = vmatmul.mubr.bf16.gmra.mrb[0].mxu0 %v602
  %v668 = vpop.f32.mrb[0].mxu0
  %v669 = vadd.f32 %v287, %v668
  %v670 = vpop.f32.mrb[0].mxu0
  %v671 = vadd.f32 %v289, %v670
  %v672 = vpop.f32.mrb[0].mxu0
  %v673 = vadd.f32 %v291, %v672
  %v674 = vpop.f32.mrb[0].mxu0
  %v675 = vadd.f32 %v293, %v674
  %676 = vmatprep.mubr.bf16.mxu0 0
  %677 = vmatmul.mubr.bf16.gmra.mrb[0].mxu0 %v605
  %v678 = vpop.f32.mrb[0].mxu0
  %v679 = vadd.f32 %v297, %v678
  %v680 = vpop.f32.mrb[0].mxu0
  %v681 = vadd.f32 %v299, %v680
  %v682 = vpop.f32.mrb[0].mxu0
  %v683 = vadd.f32 %v301, %v682
  %v684 = vpop.f32.mrb[0].mxu0
  %v685 = vadd.f32 %v303, %v684
  %686 = vmatprep.mubr.bf16.mxu0 0
  %687 = vmatmul.mubr.bf16.gmra.mrb[0].mxu0 %v608
  %v688 = vpop.f32.mrb[0].mxu0
  %v689 = vadd.f32 %v307, %v688
  %v690 = vpop.f32.mrb[0].mxu0
  %v691 = vadd.f32 %v309, %v690
  %v692 = vpop.f32.mrb[0].mxu0
  %v693 = vadd.f32 %v311, %v692
  %v694 = vpop.f32.mrb[0].mxu0
  %v695 = vadd.f32 %v313, %v694
  %696 = vmatprep.mubr.bf16.mxu0 0
  %697 = vmatmul.mubr.bf16.gmra.mrb[0].mxu0 %v611
  %v698 = vpop.f32.mrb[0].mxu0
  %v699 = vadd.f32 %v317, %v698
  %v700 = vpop.f32.mrb[0].mxu0
  %v701 = vadd.f32 %v319, %v700
  %v702 = vpop.f32.mrb[0].mxu0
  %v703 = vadd.f32 %v321, %v702
  %v704 = vpop.f32.mrb[0].mxu0
  %v705 = vadd.f32 %v323, %v704
  %706 = vmatprep.mubr.bf16.mxu0 0
  %707 = vmatmul.mubr.bf16.gmra.mrb[0].mxu0 %v614
  %v708 = vpop.f32.mrb[0].mxu0
  %v709 = vadd.f32 %v327, %v708
  %v710 = vpop.f32.mrb[0].mxu0
  %v711 = vadd.f32 %v329, %v710
  %v712 = vpop.f32.mrb[0].mxu0
  %v713 = vadd.f32 %v331, %v712
  %v714 = vpop.f32.mrb[0].mxu0
  %v715 = vadd.f32 %v333, %v714
  %716 = vdwg.mxu0
  %717 = vmatprep.subr.bf16.mxu0 %v574
  %718 = vmatpush1.bf16.msra.mxu0 %v573
  %719 = vmatprep.subr.bf16.mxu0 %v580
  %720 = vmatpush1.bf16.msra.mxu0 %v579
  %721 = vmatprep.subr.bf16.mxu0 %v626
  %722 = vmatpush1.bf16.msra.mxu0 %v623
  %723 = vmatprep.subr.bf16.mxu0 0
  %724 = vmatpush1.bf16.msra.mxu0 0
  %725 = vmatprep.subr.bf16.mxu0 0
  %726 = vmatpush1.bf16.msra.mxu0 0
  %727 = vmatprep.subr.bf16.mxu0 0
  %728 = vmatpush1.bf16.msra.mxu0 0
  %729 = vmatprep.subr.bf16.mxu0 0
  %730 = vmatpush1.bf16.msra.mxu0 0
  %731 = vmatprep.subr.bf16.mxu0 0
  %732 = vmatpush1.bf16.msra.mxu0 0
  %733 = vmatprep.subr.bf16.mxu0 0
  %734 = vmatpush1.bf16.msra.mxu0 0
  %735 = vmatprep.subr.bf16.mxu0 0
  %736 = vmatpush1.bf16.msra.mxu0 0
  %737 = vmatprep.subr.bf16.mxu0 0
  %738 = vmatpush1.bf16.msra.mxu0 0
  %739 = vmatprep.subr.bf16.mxu0 0
  %740 = vmatpush1.bf16.msra.mxu0 0
  %741 = vmatprep.subr.bf16.mxu0 0
  %742 = vmatpush1.bf16.msra.mxu0 0
  %743 = vmatprep.subr.bf16.mxu0 0
  %744 = vmatpush1.bf16.msra.mxu0 0
  %745 = vmatprep.subr.bf16.mxu0 0
  %746 = vmatpush1.bf16.msra.mxu0 0
  %747 = vmatprep.subr.bf16.mxu0 0
  %748 = vmatpush1.bf16.msra.mxu0 0
  %749 = vmatprep.mubr.bf16.mxu0 0
  %750 = vmatmul.mubr.bf16.gmra.mrb[0].mxu0 %v602
  %v751 = vpop.f32.mrb[0].mxu0
  %v752 = vadd.f32 %v370, %v751
  %v753 = vpop.f32.mrb[0].mxu0
  %v754 = vadd.f32 %v372, %v753
  %v755 = vpop.f32.mrb[0].mxu0
  %v756 = vadd.f32 %v374, %v755
  %v757 = vpop.f32.mrb[0].mxu0
  %v758 = vadd.f32 %v376, %v757
  %759 = vmatprep.mubr.bf16.mxu0 0
  %760 = vmatmul.mubr.bf16.gmra.mrb[0].mxu0 %v605
  %v761 = vpop.f32.mrb[0].mxu0
  %v762 = vadd.f32 %v380, %v761
  %v763 = vpop.f32.mrb[0].mxu0
  %v764 = vadd.f32 %v382, %v763
  %v765 = vpop.f32.mrb[0].mxu0
  %v766 = vadd.f32 %v384, %v765
  %v767 = vpop.f32.mrb[0].mxu0
  %v768 = vadd.f32 %v386, %v767
  %769 = vmatprep.mubr.bf16.mxu0 0
  %770 = vmatmul.mubr.bf16.gmra.mrb[0].mxu0 %v608
  %v771 = vpop.f32.mrb[0].mxu0
  %v772 = vadd.f32 %v390, %v771
  %v773 = vpop.f32.mrb[0].mxu0
  %v774 = vadd.f32 %v392, %v773
  %v775 = vpop.f32.mrb[0].mxu0
  %v776 = vadd.f32 %v394, %v775
  %v777 = vpop.f32.mrb[0].mxu0
  %v778 = vadd.f32 %v396, %v777
  %779 = vmatprep.mubr.bf16.mxu0 0
  %780 = vmatmul.mubr.bf16.gmra.mrb[0].mxu0 %v611
  %v781 = vpop.f32.mrb[0].mxu0
  %v782 = vadd.f32 %v400, %v781
  %v783 = vpop.f32.mrb[0].mxu0
  %v784 = vadd.f32 %v402, %v783
  %v785 = vpop.f32.mrb[0].mxu0
  %v786 = vadd.f32 %v404, %v785
  %v787 = vpop.f32.mrb[0].mxu0
  %v788 = vadd.f32 %v406, %v787
  %789 = vmatprep.mubr.bf16.mxu0 0
  %790 = vmatmul.mubr.bf16.gmra.mrb[0].mxu0 %v614
  %v791 = vpop.f32.mrb[0].mxu0
  %v792 = vadd.f32 %v410, %v791
  %v793 = vpop.f32.mrb[0].mxu0
  %v794 = vadd.f32 %v412, %v793
  %v795 = vpop.f32.mrb[0].mxu0
  %v796 = vadd.f32 %v414, %v795
  %v797 = vpop.f32.mrb[0].mxu0
  %v798 = vadd.f32 %v416, %v797
  %799 = vdwg.mxu0
  %800 = vmatprep.subr.bf16.mxu0 %v576
  %801 = vmatpush1.bf16.msra.mxu0 %v575
  %802 = vmatprep.subr.bf16.mxu0 %v582
  %803 = vmatpush1.bf16.msra.mxu0 %v581
  %804 = vmatprep.subr.bf16.mxu0 %v632
  %805 = vmatpush1.bf16.msra.mxu0 %v629
  %806 = vmatprep.subr.bf16.mxu0 0
  %807 = vmatpush1.bf16.msra.mxu0 0
  %808 = vmatprep.subr.bf16.mxu0 0
  %809 = vmatpush1.bf16.msra.mxu0 0
  %810 = vmatprep.subr.bf16.mxu0 0
  %811 = vmatpush1.bf16.msra.mxu0 0
  %812 = vmatprep.subr.bf16.mxu0 0
  %813 = vmatpush1.bf16.msra.mxu0 0
  %814 = vmatprep.subr.bf16.mxu0 0
  %815 = vmatpush1.bf16.msra.mxu0 0
  %816 = vmatprep.subr.bf16.mxu0 0
  %817 = vmatpush1.bf16.msra.mxu0 0
  %818 = vmatprep.subr.bf16.mxu0 0
  %819 = vmatpush1.bf16.msra.mxu0 0
  %820 = vmatprep.subr.bf16.mxu0 0
  %821 = vmatpush1.bf16.msra.mxu0 0
  %822 = vmatprep.subr.bf16.mxu0 0
  %823 = vmatpush1.bf16.msra.mxu0 0
  %824 = vmatprep.subr.bf16.mxu0 0
  %825 = vmatpush1.bf16.msra.mxu0 0
  %826 = vmatprep.subr.bf16.mxu0 0
  %827 = vmatpush1.bf16.msra.mxu0 0
  %828 = vmatprep.subr.bf16.mxu0 0
  %829 = vmatpush1.bf16.msra.mxu0 0
  %830 = vmatprep.subr.bf16.mxu0 0
  %831 = vmatpush1.bf16.msra.mxu0 0
  %832 = vmatprep.mubr.bf16.mxu0 0
  %833 = vmatmul.mubr.bf16.gmra.mrb[0].mxu0 %v602
  %v834 = vpop.f32.mrb[0].mxu0
  %v835 = vadd.f32 %v453, %v834
  %v836 = vpop.f32.mrb[0].mxu0
  %v837 = vadd.f32 %v455, %v836
  %v838 = vpop.f32.mrb[0].mxu0
  %v839 = vadd.f32 %v457, %v838
  %v840 = vpop.f32.mrb[0].mxu0
  %v841 = vadd.f32 %v459, %v840
  %842 = vmatprep.mubr.bf16.mxu0 0
  %843 = vmatmul.mubr.bf16.gmra.mrb[0].mxu0 %v605
  %v844 = vpop.f32.mrb[0].mxu0
  %v845 = vadd.f32 %v463, %v844
  %v846 = vpop.f32.mrb[0].mxu0
  %v847 = vadd.f32 %v465, %v846
  %v848 = vpop.f32.mrb[0].mxu0
  %v849 = vadd.f32 %v467, %v848
  %v850 = vpop.f32.mrb[0].mxu0
  %v851 = vadd.f32 %v469, %v850
  %852 = vmatprep.mubr.bf16.mxu0 0
  %853 = vmatmul.mubr.bf16.gmra.mrb[0].mxu0 %v608
  %v854 = vpop.f32.mrb[0].mxu0
  %v855 = vadd.f32 %v473, %v854
  %v856 = vpop.f32.mrb[0].mxu0
  %v857 = vadd.f32 %v475, %v856
  %v858 = vpop.f32.mrb[0].mxu0
  %v859 = vadd.f32 %v477, %v858
  %v860 = vpop.f32.mrb[0].mxu0
  %v861 = vadd.f32 %v479, %v860
  %862 = vmatprep.mubr.bf16.mxu0 0
  %863 = vmatmul.mubr.bf16.gmra.mrb[0].mxu0 %v611
  %v864 = vpop.f32.mrb[0].mxu0
  %v865 = vadd.f32 %v483, %v864
  %v866 = vpop.f32.mrb[0].mxu0
  %v867 = vadd.f32 %v485, %v866
  %v868 = vpop.f32.mrb[0].mxu0
  %v869 = vadd.f32 %v487, %v868
  %v870 = vpop.f32.mrb[0].mxu0
  %v871 = vadd.f32 %v489, %v870
  %872 = vmatprep.mubr.bf16.mxu0 0
  %873 = vmatmul.mubr.bf16.gmra.mrb[0].mxu0 %v614
  %v874 = vpop.f32.mrb[0].mxu0
  %v875 = vadd.f32 %v493, %v874
  %v876 = vpop.f32.mrb[0].mxu0
  %v877 = vadd.f32 %v495, %v876
  %v878 = vpop.f32.mrb[0].mxu0
  %v879 = vadd.f32 %v497, %v878
  %v880 = vpop.f32.mrb[0].mxu0
  %v881 = vadd.f32 %v499, %v880
  %882 = vdwg.mxu0
  %883 = vrot.lane.b32.xlu0 %v30, 126
  %v884 = vpop.permute.xlu0 %883
  %885 = vrot.lane.b32.xlu0 %v36, 126
  %v886 = vpop.permute.xlu0 %885
  %887 = vrot.lane.b32.xlu0 %v42, 126
  %v888 = vpop.permute.xlu0 %887
  %889 = vrot.lane.b32.xlu0 %v48, 126
  %v890 = vpop.permute.xlu0 %889
  %891 = vrot.lane.b32.xlu0 %v54, 126
  %v892 = vpop.permute.xlu0 %891
  %893 = vrot.lane.b32.xlu0 %v31, 126
  %v894 = vpop.permute.xlu0 %893
  %895 = vrot.lane.b32.xlu0 %v37, 126
  %v896 = vpop.permute.xlu0 %895
  %897 = vrot.lane.b32.xlu0 %v43, 126
  %v898 = vpop.permute.xlu0 %897
  %899 = vrot.lane.b32.xlu0 %v49, 126
  %v900 = vpop.permute.xlu0 %899
  %901 = vrot.lane.b32.xlu0 %v55, 126
  %v902 = vpop.permute.xlu0 %901
  %903 = vrot.lane.b32.xlu0 %v32, 126
  %v904 = vpop.permute.xlu0 %903
  %905 = vrot.lane.b32.xlu0 %v38, 126
  %v906 = vpop.permute.xlu0 %905
  %907 = vrot.lane.b32.xlu0 %v44, 126
  %v908 = vpop.permute.xlu0 %907
  %909 = vrot.lane.b32.xlu0 %v50, 126
  %v910 = vpop.permute.xlu0 %909
  %911 = vrot.lane.b32.xlu0 %v56, 126
  %v912 = vpop.permute.xlu0 %911
  %913 = vrot.lane.b32.xlu0 %v33, 126
  %v914 = vpop.permute.xlu0 %913
  %915 = vrot.lane.b32.xlu0 %v39, 126
  %v916 = vpop.permute.xlu0 %915
  %917 = vrot.lane.b32.xlu0 %v45, 126
  %v918 = vpop.permute.xlu0 %917
  %919 = vrot.lane.b32.xlu0 %v51, 126
  %v920 = vpop.permute.xlu0 %919
  %921 = vrot.lane.b32.xlu0 %v57, 126
  %v922 = vpop.permute.xlu0 %921
  %923 = vrot.lane.b32.xlu0 %v34, 126
  %v924 = vpop.permute.xlu0 %923
  %925 = vrot.lane.b32.xlu0 %v40, 126
  %v926 = vpop.permute.xlu0 %925
  %927 = vrot.lane.b32.xlu0 %v46, 126
  %v928 = vpop.permute.xlu0 %927
  %929 = vrot.lane.b32.xlu0 %v52, 126
  %v930 = vpop.permute.xlu0 %929
  %931 = vrot.lane.b32.xlu0 %v58, 126
  %v932 = vpop.permute.xlu0 %931
  %933 = vrot.lane.b32.xlu0 %v35, 126
  %v934 = vpop.permute.xlu0 %933
  %935 = vrot.lane.b32.xlu0 %v41, 126
  %v936 = vpop.permute.xlu0 %935
  %937 = vrot.lane.b32.xlu0 %v47, 126
  %v938 = vpop.permute.xlu0 %937
  %939 = vrot.lane.b32.xlu0 %v53, 126
  %v940 = vpop.permute.xlu0 %939
  %941 = vrot.lane.b32.xlu0 %v59, 126
  %v942 = vpop.permute.xlu0 %941
  %vm943 = vcmp.lt.s32.totalorder %v131, 126
  %v944 = vsel %vm943, %v924, %v934
  %v945 = vsel %vm943, %v926, %v936
  %v946 = vsel %vm943, %v928, %v938
  %v947 = vsel %vm943, %v930, %v940
  %v948 = vsel %vm943, %v932, %v942
  %v949 = vsel %vm943, %v914, %v924
  %v950 = vsel %vm943, %v916, %v926
  %v951 = vsel %vm943, %v918, %v928
  %v952 = vsel %vm943, %v920, %v930
  %v953 = vsel %vm943, %v922, %v932
  %v954 = vsel %vm943, %v904, %v914
  %v955 = vsel %vm943, %v906, %v916
  %v956 = vsel %vm943, %v908, %v918
  %v957 = vsel %vm943, %v910, %v920
  %v958 = vsel %vm943, %v912, %v922
  %v959 = vsel %vm943, %v894, %v904
  %v960 = vsel %vm943, %v896, %v906
  %v961 = vsel %vm943, %v898, %v908
  %v962 = vsel %vm943, %v900, %v910
  %v963 = vsel %vm943, %v902, %v912
  %v964 = vsel %vm943, %v884, %v894
  %v965 = vsel %vm943, %v886, %v896
  %v966 = vsel %vm943, %v888, %v898
  %v967 = vsel %vm943, %v890, %v900
  %v968 = vsel %vm943, %v892, %v902
  %v969 = vsel %vm943, %v934, %v884
  %v970 = vsel %vm943, %v936, %v886
  %v971 = vsel %vm943, %v938, %v888
  %v972 = vsel %vm943, %v940, %v890
  %v973 = vsel %vm943, %v942, %v892
  %s974 = scalar_lea.vmem %s1, 80
  %v975 = vld [vmem:[%s974] sm:$0xf]
  %v976 = vld [vmem:[%s974 + $0x4] sm:$0xf]
  %v977 = vld [vmem:[%s974 + $0x8] sm:$0xf]
  %v978 = vld [vmem:[%s974 + $0xc] sm:$0xf]
  %v979 = vld [vmem:[%s974 + $0x10] sm:$0xf]
  %v980 = vld [vmem:[%s974 + $0x14] sm:$0xf]
  %v981 = vld [vmem:[%s974 + $0x18] sm:$0xf]
  %v982 = vld [vmem:[%s974 + $0x1c] sm:$0xf]
  %v983 = vld [vmem:[%s974 + $0x20] sm:$0xf]
  %v984 = vld [vmem:[%s974 + $0x24] sm:$0xf]
  %v985 = vpack.c.bf16 %v965, %v964
  %v986 = vpack.c.bf16 %v960, %v959
  %v987 = vpack.c.bf16 %v955, %v954
  %v988 = vpack.c.bf16 %v950, %v949
  %v989 = vpack.c.bf16 %v945, %v944
  %v990 = vpack.c.bf16 %v970, %v969
  %v991 = vpack.c.bf16 %v967, %v966
  %v992 = vpack.c.bf16 %v962, %v961
  %v993 = vpack.c.bf16 %v957, %v956
  %v994 = vpack.c.bf16 %v952, %v951
  %v995 = vpack.c.bf16 %v947, %v946
  %v996 = vpack.c.bf16 %v972, %v971
  %v997 = vpack.c.bf16 %v968, %v968
  %v998 = vpack.c.bf16 %v963, %v963
  %v999 = vpack.c.bf16 %v958, %v958
  %v1000 = vpack.c.bf16 %v953, %v953
  %v1001 = vpack.c.bf16 %v948, %v948
  %v1002 = vpack.c.bf16 %v973, %v973
  %v1013 = vunpack.c.l.b16 %v975
  %v1014 = vunpack.c.l.b16 %v976
  %v1015 = vunpack.c.l.b16 %v977
  %v1016 = vunpack.c.l.b16 %v978
  %v1017 = vunpack.c.l.b16 %v979
  %v1018 = vunpack.c.l.b16 %v980
  %v1019 = vunpack.c.l.b16 %v981
  %v1020 = vunpack.c.l.b16 %v982
  %v1021 = vunpack.c.l.b16 %v983
  %v1022 = vunpack.c.l.b16 %v984
  %v1023 = vpack.c.b16 %v1014, %v1013
  %v1024 = vpack.c.b16 %v1016, %v1015
  %v1025 = vpack.c.b16 %v1018, %v1017
  %v1026 = vpack.c.b16 %v1020, %v1019
  %v1027 = vpack.c.b16 %v1022, %v1021
  %v1029 = vsel %vm217, %v1023, 0
  %v1032 = vsel %vm217, %v1024, 0
  %v1035 = vsel %vm217, %v1025, 0
  %v1038 = vsel %vm217, %v1026, 0
  %v1041 = vsel %vm217, %v1027, 0
  %v1044 = vsel %vm233, %v997, 0
  %v1047 = vsel %vm233, %v998, 0
  %v1050 = vsel %vm233, %v999, 0
  %v1053 = vsel %vm233, %v1000, 0
  %v1056 = vsel %vm233, %v1001, 0
  %v1059 = vsel %vm233, %v1002, 0
  %1061 = vmatprep.subr.bf16.mxu0 %v986
  %1062 = vmatpush1.bf16.msra.mxu0 %v985
  %1063 = vmatprep.subr.bf16.mxu0 %v992
  %1064 = vmatpush1.bf16.msra.mxu0 %v991
  %1065 = vmatprep.subr.bf16.mxu0 %v1047
  %1066 = vmatpush1.bf16.msra.mxu0 %v1044
  %1067 = vmatprep.subr.bf16.mxu0 0
  %1068 = vmatpush1.bf16.msra.mxu0 0
  %1069 = vmatprep.subr.bf16.mxu0 0
  %1070 = vmatpush1.bf16.msra.mxu0 0
  %1071 = vmatprep.subr.bf16.mxu0 0
  %1072 = vmatpush1.bf16.msra.mxu0 0
  %1073 = vmatprep.subr.bf16.mxu0 0
  %1074 = vmatpush1.bf16.msra.mxu0 0
  %1075 = vmatprep.subr.bf16.mxu0 0
  %1076 = vmatpush1.bf16.msra.mxu0 0
  %1077 = vmatprep.subr.bf16.mxu0 0
  %1078 = vmatpush1.bf16.msra.mxu0 0
  %1079 = vmatprep.subr.bf16.mxu0 0
  %1080 = vmatpush1.bf16.msra.mxu0 0
  %1081 = vmatprep.subr.bf16.mxu0 0
  %1082 = vmatpush1.bf16.msra.mxu0 0
  %1083 = vmatprep.subr.bf16.mxu0 0
  %1084 = vmatpush1.bf16.msra.mxu0 0
  %1085 = vmatprep.subr.bf16.mxu0 0
  %1086 = vmatpush1.bf16.msra.mxu0 0
  %1087 = vmatprep.subr.bf16.mxu0 0
  %1088 = vmatpush1.bf16.msra.mxu0 0
  %1089 = vmatprep.subr.bf16.mxu0 0
  %1090 = vmatpush1.bf16.msra.mxu0 0
  %1091 = vmatprep.subr.bf16.mxu0 0
  %1092 = vmatpush1.bf16.msra.mxu0 0
  %1093 = vmatprep.mubr.bf16.mxu0 0
  %1094 = vmatmul.mubr.bf16.gmra.mrb[0].mxu0 %v1029
  %v1095 = vpop.f32.mrb[0].mxu0
  %v1096 = vadd.f32 0.0, %v1095
  %v1097 = vpop.f32.mrb[0].mxu0
  %v1098 = vadd.f32 0.0, %v1097
  %v1099 = vpop.f32.mrb[0].mxu0
  %v1100 = vadd.f32 0.0, %v1099
  %v1101 = vpop.f32.mrb[0].mxu0
  %v1102 = vadd.f32 0.0, %v1101
  %1103 = vmatprep.mubr.bf16.mxu0 0
  %1104 = vmatmul.mubr.bf16.gmra.mrb[0].mxu0 %v1032
  %v1105 = vpop.f32.mrb[0].mxu0
  %v1106 = vadd.f32 0.0, %v1105
  %v1107 = vpop.f32.mrb[0].mxu0
  %v1108 = vadd.f32 0.0, %v1107
  %v1109 = vpop.f32.mrb[0].mxu0
  %v1110 = vadd.f32 0.0, %v1109
  %v1111 = vpop.f32.mrb[0].mxu0
  %v1112 = vadd.f32 0.0, %v1111
  %1113 = vmatprep.mubr.bf16.mxu0 0
  %1114 = vmatmul.mubr.bf16.gmra.mrb[0].mxu0 %v1035
  %v1115 = vpop.f32.mrb[0].mxu0
  %v1116 = vadd.f32 0.0, %v1115
  %v1117 = vpop.f32.mrb[0].mxu0
  %v1118 = vadd.f32 0.0, %v1117
  %v1119 = vpop.f32.mrb[0].mxu0
  %v1120 = vadd.f32 0.0, %v1119
  %v1121 = vpop.f32.mrb[0].mxu0
  %v1122 = vadd.f32 0.0, %v1121
  %1123 = vmatprep.mubr.bf16.mxu0 0
  %1124 = vmatmul.mubr.bf16.gmra.mrb[0].mxu0 %v1038
  %v1125 = vpop.f32.mrb[0].mxu0
  %v1126 = vadd.f32 0.0, %v1125
  %v1127 = vpop.f32.mrb[0].mxu0
  %v1128 = vadd.f32 0.0, %v1127
  %v1129 = vpop.f32.mrb[0].mxu0
  %v1130 = vadd.f32 0.0, %v1129
  %v1131 = vpop.f32.mrb[0].mxu0
  %v1132 = vadd.f32 0.0, %v1131
  %1133 = vmatprep.mubr.bf16.mxu0 0
  %1134 = vmatmul.mubr.bf16.gmra.mrb[0].mxu0 %v1041
  %v1135 = vpop.f32.mrb[0].mxu0
  %v1136 = vadd.f32 0.0, %v1135
  %v1137 = vpop.f32.mrb[0].mxu0
  %v1138 = vadd.f32 0.0, %v1137
  %v1139 = vpop.f32.mrb[0].mxu0
  %v1140 = vadd.f32 0.0, %v1139
  %v1141 = vpop.f32.mrb[0].mxu0
  %v1142 = vadd.f32 0.0, %v1141
  %1143 = vdwg.mxu0
  %1144 = vmatprep.subr.bf16.mxu0 %v988
  %1145 = vmatpush1.bf16.msra.mxu0 %v987
  %1146 = vmatprep.subr.bf16.mxu0 %v994
  %1147 = vmatpush1.bf16.msra.mxu0 %v993
  %1148 = vmatprep.subr.bf16.mxu0 %v1053
  %1149 = vmatpush1.bf16.msra.mxu0 %v1050
  %1150 = vmatprep.subr.bf16.mxu0 0
  %1151 = vmatpush1.bf16.msra.mxu0 0
  %1152 = vmatprep.subr.bf16.mxu0 0
  %1153 = vmatpush1.bf16.msra.mxu0 0
  %1154 = vmatprep.subr.bf16.mxu0 0
  %1155 = vmatpush1.bf16.msra.mxu0 0
  %1156 = vmatprep.subr.bf16.mxu0 0
  %1157 = vmatpush1.bf16.msra.mxu0 0
  %1158 = vmatprep.subr.bf16.mxu0 0
  %1159 = vmatpush1.bf16.msra.mxu0 0
  %1160 = vmatprep.subr.bf16.mxu0 0
  %1161 = vmatpush1.bf16.msra.mxu0 0
  %1162 = vmatprep.subr.bf16.mxu0 0
  %1163 = vmatpush1.bf16.msra.mxu0 0
  %1164 = vmatprep.subr.bf16.mxu0 0
  %1165 = vmatpush1.bf16.msra.mxu0 0
  %1166 = vmatprep.subr.bf16.mxu0 0
  %1167 = vmatpush1.bf16.msra.mxu0 0
  %1168 = vmatprep.subr.bf16.mxu0 0
  %1169 = vmatpush1.bf16.msra.mxu0 0
  %1170 = vmatprep.subr.bf16.mxu0 0
  %1171 = vmatpush1.bf16.msra.mxu0 0
  %1172 = vmatprep.subr.bf16.mxu0 0
  %1173 = vmatpush1.bf16.msra.mxu0 0
  %1174 = vmatprep.subr.bf16.mxu0 0
  %1175 = vmatpush1.bf16.msra.mxu0 0
  %1176 = vmatprep.mubr.bf16.mxu0 0
  %1177 = vmatmul.mubr.bf16.gmra.mrb[0].mxu0 %v1029
  %v1178 = vpop.f32.mrb[0].mxu0
  %v1179 = vadd.f32 0.0, %v1178
  %v1180 = vpop.f32.mrb[0].mxu0
  %v1181 = vadd.f32 0.0, %v1180
  %v1182 = vpop.f32.mrb[0].mxu0
  %v1183 = vadd.f32 0.0, %v1182
  %v1184 = vpop.f32.mrb[0].mxu0
  %v1185 = vadd.f32 0.0, %v1184
  %1186 = vmatprep.mubr.bf16.mxu0 0
  %1187 = vmatmul.mubr.bf16.gmra.mrb[0].mxu0 %v1032
  %v1188 = vpop.f32.mrb[0].mxu0
  %v1189 = vadd.f32 0.0, %v1188
  %v1190 = vpop.f32.mrb[0].mxu0
  %v1191 = vadd.f32 0.0, %v1190
  %v1192 = vpop.f32.mrb[0].mxu0
  %v1193 = vadd.f32 0.0, %v1192
  %v1194 = vpop.f32.mrb[0].mxu0
  %v1195 = vadd.f32 0.0, %v1194
  %1196 = vmatprep.mubr.bf16.mxu0 0
  %1197 = vmatmul.mubr.bf16.gmra.mrb[0].mxu0 %v1035
  %v1198 = vpop.f32.mrb[0].mxu0
  %v1199 = vadd.f32 0.0, %v1198
  %v1200 = vpop.f32.mrb[0].mxu0
  %v1201 = vadd.f32 0.0, %v1200
  %v1202 = vpop.f32.mrb[0].mxu0
  %v1203 = vadd.f32 0.0, %v1202
  %v1204 = vpop.f32.mrb[0].mxu0
  %v1205 = vadd.f32 0.0, %v1204
  %1206 = vmatprep.mubr.bf16.mxu0 0
  %1207 = vmatmul.mubr.bf16.gmra.mrb[0].mxu0 %v1038
  %v1208 = vpop.f32.mrb[0].mxu0
  %v1209 = vadd.f32 0.0, %v1208
  %v1210 = vpop.f32.mrb[0].mxu0
  %v1211 = vadd.f32 0.0, %v1210
  %v1212 = vpop.f32.mrb[0].mxu0
  %v1213 = vadd.f32 0.0, %v1212
  %v1214 = vpop.f32.mrb[0].mxu0
  %v1215 = vadd.f32 0.0, %v1214
  %1216 = vmatprep.mubr.bf16.mxu0 0
  %1217 = vmatmul.mubr.bf16.gmra.mrb[0].mxu0 %v1041
  %v1218 = vpop.f32.mrb[0].mxu0
  %v1219 = vadd.f32 0.0, %v1218
  %v1220 = vpop.f32.mrb[0].mxu0
  %v1221 = vadd.f32 0.0, %v1220
  %v1222 = vpop.f32.mrb[0].mxu0
  %v1223 = vadd.f32 0.0, %v1222
  %v1224 = vpop.f32.mrb[0].mxu0
  %v1225 = vadd.f32 0.0, %v1224
  %1226 = vdwg.mxu0
  %1227 = vmatprep.subr.bf16.mxu0 %v990
  %1228 = vmatpush1.bf16.msra.mxu0 %v989
  %1229 = vmatprep.subr.bf16.mxu0 %v996
  %1230 = vmatpush1.bf16.msra.mxu0 %v995
  %1231 = vmatprep.subr.bf16.mxu0 %v1059
  %1232 = vmatpush1.bf16.msra.mxu0 %v1056
  %1233 = vmatprep.subr.bf16.mxu0 0
  %1234 = vmatpush1.bf16.msra.mxu0 0
  %1235 = vmatprep.subr.bf16.mxu0 0
  %1236 = vmatpush1.bf16.msra.mxu0 0
  %1237 = vmatprep.subr.bf16.mxu0 0
  %1238 = vmatpush1.bf16.msra.mxu0 0
  %1239 = vmatprep.subr.bf16.mxu0 0
  %1240 = vmatpush1.bf16.msra.mxu0 0
  %1241 = vmatprep.subr.bf16.mxu0 0
  %1242 = vmatpush1.bf16.msra.mxu0 0
  %1243 = vmatprep.subr.bf16.mxu0 0
  %1244 = vmatpush1.bf16.msra.mxu0 0
  %1245 = vmatprep.subr.bf16.mxu0 0
  %1246 = vmatpush1.bf16.msra.mxu0 0
  %1247 = vmatprep.subr.bf16.mxu0 0
  %1248 = vmatpush1.bf16.msra.mxu0 0
  %1249 = vmatprep.subr.bf16.mxu0 0
  %1250 = vmatpush1.bf16.msra.mxu0 0
  %1251 = vmatprep.subr.bf16.mxu0 0
  %1252 = vmatpush1.bf16.msra.mxu0 0
  %1253 = vmatprep.subr.bf16.mxu0 0
  %1254 = vmatpush1.bf16.msra.mxu0 0
  %1255 = vmatprep.subr.bf16.mxu0 0
  %1256 = vmatpush1.bf16.msra.mxu0 0
  %1257 = vmatprep.subr.bf16.mxu0 0
  %1258 = vmatpush1.bf16.msra.mxu0 0
  %1259 = vmatprep.mubr.bf16.mxu0 0
  %1260 = vmatmul.mubr.bf16.gmra.mrb[0].mxu0 %v1029
  %v1261 = vpop.f32.mrb[0].mxu0
  %v1262 = vadd.f32 0.0, %v1261
  %v1263 = vpop.f32.mrb[0].mxu0
  %v1264 = vadd.f32 0.0, %v1263
  %v1265 = vpop.f32.mrb[0].mxu0
  %v1266 = vadd.f32 0.0, %v1265
  %v1267 = vpop.f32.mrb[0].mxu0
  %v1268 = vadd.f32 0.0, %v1267
  %1269 = vmatprep.mubr.bf16.mxu0 0
  %1270 = vmatmul.mubr.bf16.gmra.mrb[0].mxu0 %v1032
  %v1271 = vpop.f32.mrb[0].mxu0
  %v1272 = vadd.f32 0.0, %v1271
  %v1273 = vpop.f32.mrb[0].mxu0
  %v1274 = vadd.f32 0.0, %v1273
  %v1275 = vpop.f32.mrb[0].mxu0
  %v1276 = vadd.f32 0.0, %v1275
  %v1277 = vpop.f32.mrb[0].mxu0
  %v1278 = vadd.f32 0.0, %v1277
  %1279 = vmatprep.mubr.bf16.mxu0 0
  %1280 = vmatmul.mubr.bf16.gmra.mrb[0].mxu0 %v1035
  %v1281 = vpop.f32.mrb[0].mxu0
  %v1282 = vadd.f32 0.0, %v1281
  %v1283 = vpop.f32.mrb[0].mxu0
  %v1284 = vadd.f32 0.0, %v1283
  %v1285 = vpop.f32.mrb[0].mxu0
  %v1286 = vadd.f32 0.0, %v1285
  %v1287 = vpop.f32.mrb[0].mxu0
  %v1288 = vadd.f32 0.0, %v1287
  %1289 = vmatprep.mubr.bf16.mxu0 0
  %1290 = vmatmul.mubr.bf16.gmra.mrb[0].mxu0 %v1038
  %v1291 = vpop.f32.mrb[0].mxu0
  %v1292 = vadd.f32 0.0, %v1291
  %v1293 = vpop.f32.mrb[0].mxu0
  %v1294 = vadd.f32 0.0, %v1293
  %v1295 = vpop.f32.mrb[0].mxu0
  %v1296 = vadd.f32 0.0, %v1295
  %v1297 = vpop.f32.mrb[0].mxu0
  %v1298 = vadd.f32 0.0, %v1297
  %1299 = vmatprep.mubr.bf16.mxu0 0
  %1300 = vmatmul.mubr.bf16.gmra.mrb[0].mxu0 %v1041
  %v1301 = vpop.f32.mrb[0].mxu0
  %v1302 = vadd.f32 0.0, %v1301
  %v1303 = vpop.f32.mrb[0].mxu0
  %v1304 = vadd.f32 0.0, %v1303
  %v1305 = vpop.f32.mrb[0].mxu0
  %v1306 = vadd.f32 0.0, %v1305
  %v1307 = vpop.f32.mrb[0].mxu0
  %v1308 = vadd.f32 0.0, %v1307
  %1309 = vdwg.mxu0
  %v1310 = vadd.f32 %v669, %v1096
  %v1311 = vadd.f32 %v671, %v1098
  %v1312 = vadd.f32 %v752, %v1179
  %v1313 = vadd.f32 %v754, %v1181
  %v1314 = vadd.f32 %v835, %v1262
  %v1315 = vadd.f32 %v837, %v1264
  %v1316 = vadd.f32 %v673, %v1100
  %v1317 = vadd.f32 %v675, %v1102
  %v1318 = vadd.f32 %v756, %v1183
  %v1319 = vadd.f32 %v758, %v1185
  %v1320 = vadd.f32 %v839, %v1266
  %v1321 = vadd.f32 %v841, %v1268
  %v1322 = vadd.f32 %v679, %v1106
  %v1323 = vadd.f32 %v681, %v1108
  %v1324 = vadd.f32 %v762, %v1189
  %v1325 = vadd.f32 %v764, %v1191
  %v1326 = vadd.f32 %v845, %v1272
  %v1327 = vadd.f32 %v847, %v1274
  %v1328 = vadd.f32 %v683, %v1110
  %v1329 = vadd.f32 %v685, %v1112
  %v1330 = vadd.f32 %v766, %v1193
  %v1331 = vadd.f32 %v768, %v1195
  %v1332 = vadd.f32 %v849, %v1276
  %v1333 = vadd.f32 %v851, %v1278
  %v1334 = vadd.f32 %v689, %v1116
  %v1335 = vadd.f32 %v691, %v1118
  %v1336 = vadd.f32 %v772, %v1199
  %v1337 = vadd.f32 %v774, %v1201
  %v1338 = vadd.f32 %v855, %v1282
  %v1339 = vadd.f32 %v857, %v1284
  %v1340 = vadd.f32 %v693, %v1120
  %v1341 = vadd.f32 %v695, %v1122
  %v1342 = vadd.f32 %v776, %v1203
  %v1343 = vadd.f32 %v778, %v1205
  %v1344 = vadd.f32 %v859, %v1286
  %v1345 = vadd.f32 %v861, %v1288
  %v1346 = vadd.f32 %v699, %v1126
  %v1347 = vadd.f32 %v701, %v1128
  %v1348 = vadd.f32 %v782, %v1209
  %v1349 = vadd.f32 %v784, %v1211
  %v1350 = vadd.f32 %v865, %v1292
  %v1351 = vadd.f32 %v867, %v1294
  %v1352 = vadd.f32 %v703, %v1130
  %v1353 = vadd.f32 %v705, %v1132
  %v1354 = vadd.f32 %v786, %v1213
  %v1355 = vadd.f32 %v788, %v1215
  %v1356 = vadd.f32 %v869, %v1296
  %v1357 = vadd.f32 %v871, %v1298
  %v1358 = vadd.f32 %v709, %v1136
  %v1359 = vadd.f32 %v711, %v1138
  %v1360 = vadd.f32 %v792, %v1219
  %v1361 = vadd.f32 %v794, %v1221
  %v1362 = vadd.f32 %v875, %v1302
  %v1363 = vadd.f32 %v877, %v1304
  %v1364 = vadd.f32 %v713, %v1140
  %v1365 = vadd.f32 %v715, %v1142
  %v1366 = vadd.f32 %v796, %v1223
  %v1367 = vadd.f32 %v798, %v1225
  %v1368 = vadd.f32 %v879, %v1306
  %v1369 = vadd.f32 %v881, %v1308
  %1370 = vrot.lane.b32.xlu0 %v30, 110
  %v1371 = vpop.permute.xlu0 %1370
  %1372 = vrot.lane.b32.xlu0 %v36, 110
  %v1373 = vpop.permute.xlu0 %1372
  %1374 = vrot.lane.b32.xlu0 %v42, 110
  %v1375 = vpop.permute.xlu0 %1374
  %1376 = vrot.lane.b32.xlu0 %v48, 110
  %v1377 = vpop.permute.xlu0 %1376
  %1378 = vrot.lane.b32.xlu0 %v54, 110
  %v1379 = vpop.permute.xlu0 %1378
  %1380 = vrot.lane.b32.xlu0 %v31, 110
  %v1381 = vpop.permute.xlu0 %1380
  %1382 = vrot.lane.b32.xlu0 %v37, 110
  %v1383 = vpop.permute.xlu0 %1382
  %1384 = vrot.lane.b32.xlu0 %v43, 110
  %v1385 = vpop.permute.xlu0 %1384
  %1386 = vrot.lane.b32.xlu0 %v49, 110
  %v1387 = vpop.permute.xlu0 %1386
  %1388 = vrot.lane.b32.xlu0 %v55, 110
  %v1389 = vpop.permute.xlu0 %1388
  %1390 = vrot.lane.b32.xlu0 %v32, 110
  %v1391 = vpop.permute.xlu0 %1390
  %1392 = vrot.lane.b32.xlu0 %v38, 110
  %v1393 = vpop.permute.xlu0 %1392
  %1394 = vrot.lane.b32.xlu0 %v44, 110
  %v1395 = vpop.permute.xlu0 %1394
  %1396 = vrot.lane.b32.xlu0 %v50, 110
  %v1397 = vpop.permute.xlu0 %1396
  %1398 = vrot.lane.b32.xlu0 %v56, 110
  %v1399 = vpop.permute.xlu0 %1398
  %1400 = vrot.lane.b32.xlu0 %v33, 110
  %v1401 = vpop.permute.xlu0 %1400
  %1402 = vrot.lane.b32.xlu0 %v39, 110
  %v1403 = vpop.permute.xlu0 %1402
  %1404 = vrot.lane.b32.xlu0 %v45, 110
  %v1405 = vpop.permute.xlu0 %1404
  %1406 = vrot.lane.b32.xlu0 %v51, 110
  %v1407 = vpop.permute.xlu0 %1406
  %1408 = vrot.lane.b32.xlu0 %v57, 110
  %v1409 = vpop.permute.xlu0 %1408
  %1410 = vrot.lane.b32.xlu0 %v34, 110
  %v1411 = vpop.permute.xlu0 %1410
  %1412 = vrot.lane.b32.xlu0 %v40, 110
  %v1413 = vpop.permute.xlu0 %1412
  %1414 = vrot.lane.b32.xlu0 %v46, 110
  %v1415 = vpop.permute.xlu0 %1414
  %1416 = vrot.lane.b32.xlu0 %v52, 110
  %v1417 = vpop.permute.xlu0 %1416
  %1418 = vrot.lane.b32.xlu0 %v58, 110
  %v1419 = vpop.permute.xlu0 %1418
  %1420 = vrot.lane.b32.xlu0 %v35, 110
  %v1421 = vpop.permute.xlu0 %1420
  %1422 = vrot.lane.b32.xlu0 %v41, 110
  %v1423 = vpop.permute.xlu0 %1422
  %1424 = vrot.lane.b32.xlu0 %v47, 110
  %v1425 = vpop.permute.xlu0 %1424
  %1426 = vrot.lane.b32.xlu0 %v53, 110
  %v1427 = vpop.permute.xlu0 %1426
  %1428 = vrot.lane.b32.xlu0 %v59, 110
  %v1429 = vpop.permute.xlu0 %1428
  %vm1430 = vcmp.lt.s32.totalorder %v131, 110
  %v1431 = vsel %vm1430, %v1411, %v1421
  %v1432 = vsel %vm1430, %v1413, %v1423
  %v1433 = vsel %vm1430, %v1415, %v1425
  %v1434 = vsel %vm1430, %v1417, %v1427
  %v1435 = vsel %vm1430, %v1419, %v1429
  %v1436 = vsel %vm1430, %v1401, %v1411
  %v1437 = vsel %vm1430, %v1403, %v1413
  %v1438 = vsel %vm1430, %v1405, %v1415
  %v1439 = vsel %vm1430, %v1407, %v1417
  %v1440 = vsel %vm1430, %v1409, %v1419
  %v1441 = vsel %vm1430, %v1391, %v1401
  %v1442 = vsel %vm1430, %v1393, %v1403
  %v1443 = vsel %vm1430, %v1395, %v1405
  %v1444 = vsel %vm1430, %v1397, %v1407
  %v1445 = vsel %vm1430, %v1399, %v1409
  %v1446 = vsel %vm1430, %v1381, %v1391
  %v1447 = vsel %vm1430, %v1383, %v1393
  %v1448 = vsel %vm1430, %v1385, %v1395
  %v1449 = vsel %vm1430, %v1387, %v1397
  %v1450 = vsel %vm1430, %v1389, %v1399
  %v1451 = vsel %vm1430, %v1371, %v1381
  %v1452 = vsel %vm1430, %v1373, %v1383
  %v1453 = vsel %vm1430, %v1375, %v1385
  %v1454 = vsel %vm1430, %v1377, %v1387
  %v1455 = vsel %vm1430, %v1379, %v1389
  %v1456 = vsel %vm1430, %v1421, %v1371
  %v1457 = vsel %vm1430, %v1423, %v1373
  %v1458 = vsel %vm1430, %v1425, %v1375
  %v1459 = vsel %vm1430, %v1427, %v1377
  %v1460 = vsel %vm1430, %v1429, %v1379
  %s1461 = scalar_lea.vmem %s1, 120
  %v1462 = vld [vmem:[%s1461] sm:$0xf]
  %v1463 = vld [vmem:[%s1461 + $0x4] sm:$0xf]
  %v1464 = vld [vmem:[%s1461 + $0x8] sm:$0xf]
  %v1465 = vld [vmem:[%s1461 + $0xc] sm:$0xf]
  %v1466 = vld [vmem:[%s1461 + $0x10] sm:$0xf]
  %v1467 = vld [vmem:[%s1461 + $0x14] sm:$0xf]
  %v1468 = vld [vmem:[%s1461 + $0x18] sm:$0xf]
  %v1469 = vld [vmem:[%s1461 + $0x1c] sm:$0xf]
  %v1470 = vld [vmem:[%s1461 + $0x20] sm:$0xf]
  %v1471 = vld [vmem:[%s1461 + $0x24] sm:$0xf]
  %v1472 = vpack.c.bf16 %v1452, %v1451
  %v1473 = vpack.c.bf16 %v1447, %v1446
  %v1474 = vpack.c.bf16 %v1442, %v1441
  %v1475 = vpack.c.bf16 %v1437, %v1436
  %v1476 = vpack.c.bf16 %v1432, %v1431
  %v1477 = vpack.c.bf16 %v1457, %v1456
  %v1478 = vpack.c.bf16 %v1454, %v1453
  %v1479 = vpack.c.bf16 %v1449, %v1448
  %v1480 = vpack.c.bf16 %v1444, %v1443
  %v1481 = vpack.c.bf16 %v1439, %v1438
  %v1482 = vpack.c.bf16 %v1434, %v1433
  %v1483 = vpack.c.bf16 %v1459, %v1458
  %v1484 = vpack.c.bf16 %v1455, %v1455
  %v1485 = vpack.c.bf16 %v1450, %v1450
  %v1486 = vpack.c.bf16 %v1445, %v1445
  %v1487 = vpack.c.bf16 %v1440, %v1440
  %v1488 = vpack.c.bf16 %v1435, %v1435
  %v1489 = vpack.c.bf16 %v1460, %v1460
  %v1500 = vunpack.c.l.b16 %v1462
  %v1501 = vunpack.c.l.b16 %v1463
  %v1502 = vunpack.c.l.b16 %v1464
  %v1503 = vunpack.c.l.b16 %v1465
  %v1504 = vunpack.c.l.b16 %v1466
  %v1505 = vunpack.c.l.b16 %v1467
  %v1506 = vunpack.c.l.b16 %v1468
  %v1507 = vunpack.c.l.b16 %v1469
  %v1508 = vunpack.c.l.b16 %v1470
  %v1509 = vunpack.c.l.b16 %v1471
  %v1510 = vpack.c.b16 %v1501, %v1500
  %v1511 = vpack.c.b16 %v1503, %v1502
  %v1512 = vpack.c.b16 %v1505, %v1504
  %v1513 = vpack.c.b16 %v1507, %v1506
  %v1514 = vpack.c.b16 %v1509, %v1508
  %v1516 = vsel %vm217, %v1510, 0
  %v1519 = vsel %vm217, %v1511, 0
  %v1522 = vsel %vm217, %v1512, 0
  %v1525 = vsel %vm217, %v1513, 0
  %v1528 = vsel %vm217, %v1514, 0
  %v1531 = vsel %vm233, %v1484, 0
  %v1534 = vsel %vm233, %v1485, 0
  %v1537 = vsel %vm233, %v1486, 0
  %v1540 = vsel %vm233, %v1487, 0
  %v1543 = vsel %vm233, %v1488, 0
  %v1546 = vsel %vm233, %v1489, 0
  %1548 = vmatprep.subr.bf16.mxu0 %v1473
  %1549 = vmatpush1.bf16.msra.mxu0 %v1472
  %1550 = vmatprep.subr.bf16.mxu0 %v1479
  %1551 = vmatpush1.bf16.msra.mxu0 %v1478
  %1552 = vmatprep.subr.bf16.mxu0 %v1534
  %1553 = vmatpush1.bf16.msra.mxu0 %v1531
  %1554 = vmatprep.subr.bf16.mxu0 0
  %1555 = vmatpush1.bf16.msra.mxu0 0
  %1556 = vmatprep.subr.bf16.mxu0 0
  %1557 = vmatpush1.bf16.msra.mxu0 0
  %1558 = vmatprep.subr.bf16.mxu0 0
  %1559 = vmatpush1.bf16.msra.mxu0 0
  %1560 = vmatprep.subr.bf16.mxu0 0
  %1561 = vmatpush1.bf16.msra.mxu0 0
  %1562 = vmatprep.subr.bf16.mxu0 0
  %1563 = vmatpush1.bf16.msra.mxu0 0
  %1564 = vmatprep.subr.bf16.mxu0 0
  %1565 = vmatpush1.bf16.msra.mxu0 0
  %1566 = vmatprep.subr.bf16.mxu0 0
  %1567 = vmatpush1.bf16.msra.mxu0 0
  %1568 = vmatprep.subr.bf16.mxu0 0
  %1569 = vmatpush1.bf16.msra.mxu0 0
  %1570 = vmatprep.subr.bf16.mxu0 0
  %1571 = vmatpush1.bf16.msra.mxu0 0
  %1572 = vmatprep.subr.bf16.mxu0 0
  %1573 = vmatpush1.bf16.msra.mxu0 0
  %1574 = vmatprep.subr.bf16.mxu0 0
  %1575 = vmatpush1.bf16.msra.mxu0 0
  %1576 = vmatprep.subr.bf16.mxu0 0
  %1577 = vmatpush1.bf16.msra.mxu0 0
  %1578 = vmatprep.subr.bf16.mxu0 0
  %1579 = vmatpush1.bf16.msra.mxu0 0
  %1580 = vmatprep.mubr.bf16.mxu0 0
  %1581 = vmatmul.mubr.bf16.gmra.mrb[0].mxu0 %v1516
  %v1582 = vpop.f32.mrb[0].mxu0
  %v1583 = vadd.f32 0.0, %v1582
  %v1584 = vpop.f32.mrb[0].mxu0
  %v1585 = vadd.f32 0.0, %v1584
  %v1586 = vpop.f32.mrb[0].mxu0
  %v1587 = vadd.f32 0.0, %v1586
  %v1588 = vpop.f32.mrb[0].mxu0
  %v1589 = vadd.f32 0.0, %v1588
  %1590 = vmatprep.mubr.bf16.mxu0 0
  %1591 = vmatmul.mubr.bf16.gmra.mrb[0].mxu0 %v1519
  %v1592 = vpop.f32.mrb[0].mxu0
  %v1593 = vadd.f32 0.0, %v1592
  %v1594 = vpop.f32.mrb[0].mxu0
  %v1595 = vadd.f32 0.0, %v1594
  %v1596 = vpop.f32.mrb[0].mxu0
  %v1597 = vadd.f32 0.0, %v1596
  %v1598 = vpop.f32.mrb[0].mxu0
  %v1599 = vadd.f32 0.0, %v1598
  %1600 = vmatprep.mubr.bf16.mxu0 0
  %1601 = vmatmul.mubr.bf16.gmra.mrb[0].mxu0 %v1522
  %v1602 = vpop.f32.mrb[0].mxu0
  %v1603 = vadd.f32 0.0, %v1602
  %v1604 = vpop.f32.mrb[0].mxu0
  %v1605 = vadd.f32 0.0, %v1604
  %v1606 = vpop.f32.mrb[0].mxu0
  %v1607 = vadd.f32 0.0, %v1606
  %v1608 = vpop.f32.mrb[0].mxu0
  %v1609 = vadd.f32 0.0, %v1608
  %1610 = vmatprep.mubr.bf16.mxu0 0
  %1611 = vmatmul.mubr.bf16.gmra.mrb[0].mxu0 %v1525
  %v1612 = vpop.f32.mrb[0].mxu0
  %v1613 = vadd.f32 0.0, %v1612
  %v1614 = vpop.f32.mrb[0].mxu0
  %v1615 = vadd.f32 0.0, %v1614
  %v1616 = vpop.f32.mrb[0].mxu0
  %v1617 = vadd.f32 0.0, %v1616
  %v1618 = vpop.f32.mrb[0].mxu0
  %v1619 = vadd.f32 0.0, %v1618
  %1620 = vmatprep.mubr.bf16.mxu0 0
  %1621 = vmatmul.mubr.bf16.gmra.mrb[0].mxu0 %v1528
  %v1622 = vpop.f32.mrb[0].mxu0
  %v1623 = vadd.f32 0.0, %v1622
  %v1624 = vpop.f32.mrb[0].mxu0
  %v1625 = vadd.f32 0.0, %v1624
  %v1626 = vpop.f32.mrb[0].mxu0
  %v1627 = vadd.f32 0.0, %v1626
  %v1628 = vpop.f32.mrb[0].mxu0
  %v1629 = vadd.f32 0.0, %v1628
  %1630 = vdwg.mxu0
  %1631 = vmatprep.subr.bf16.mxu0 %v1475
  %1632 = vmatpush1.bf16.msra.mxu0 %v1474
  %1633 = vmatprep.subr.bf16.mxu0 %v1481
  %1634 = vmatpush1.bf16.msra.mxu0 %v1480
  %1635 = vmatprep.subr.bf16.mxu0 %v1540
  %1636 = vmatpush1.bf16.msra.mxu0 %v1537
  %1637 = vmatprep.subr.bf16.mxu0 0
  %1638 = vmatpush1.bf16.msra.mxu0 0
  %1639 = vmatprep.subr.bf16.mxu0 0
  %1640 = vmatpush1.bf16.msra.mxu0 0
  %1641 = vmatprep.subr.bf16.mxu0 0
  %1642 = vmatpush1.bf16.msra.mxu0 0
  %1643 = vmatprep.subr.bf16.mxu0 0
  %1644 = vmatpush1.bf16.msra.mxu0 0
  %1645 = vmatprep.subr.bf16.mxu0 0
  %1646 = vmatpush1.bf16.msra.mxu0 0
  %1647 = vmatprep.subr.bf16.mxu0 0
  %1648 = vmatpush1.bf16.msra.mxu0 0
  %1649 = vmatprep.subr.bf16.mxu0 0
  %1650 = vmatpush1.bf16.msra.mxu0 0
  %1651 = vmatprep.subr.bf16.mxu0 0
  %1652 = vmatpush1.bf16.msra.mxu0 0
  %1653 = vmatprep.subr.bf16.mxu0 0
  %1654 = vmatpush1.bf16.msra.mxu0 0
  %1655 = vmatprep.subr.bf16.mxu0 0
  %1656 = vmatpush1.bf16.msra.mxu0 0
  %1657 = vmatprep.subr.bf16.mxu0 0
  %1658 = vmatpush1.bf16.msra.mxu0 0
  %1659 = vmatprep.subr.bf16.mxu0 0
  %1660 = vmatpush1.bf16.msra.mxu0 0
  %1661 = vmatprep.subr.bf16.mxu0 0
  %1662 = vmatpush1.bf16.msra.mxu0 0
  %1663 = vmatprep.mubr.bf16.mxu0 0
  %1664 = vmatmul.mubr.bf16.gmra.mrb[0].mxu0 %v1516
  %v1665 = vpop.f32.mrb[0].mxu0
  %v1666 = vadd.f32 0.0, %v1665
  %v1667 = vpop.f32.mrb[0].mxu0
  %v1668 = vadd.f32 0.0, %v1667
  %v1669 = vpop.f32.mrb[0].mxu0
  %v1670 = vadd.f32 0.0, %v1669
  %v1671 = vpop.f32.mrb[0].mxu0
  %v1672 = vadd.f32 0.0, %v1671
  %1673 = vmatprep.mubr.bf16.mxu0 0
  %1674 = vmatmul.mubr.bf16.gmra.mrb[0].mxu0 %v1519
  %v1675 = vpop.f32.mrb[0].mxu0
  %v1676 = vadd.f32 0.0, %v1675
  %v1677 = vpop.f32.mrb[0].mxu0
  %v1678 = vadd.f32 0.0, %v1677
  %v1679 = vpop.f32.mrb[0].mxu0
  %v1680 = vadd.f32 0.0, %v1679
  %v1681 = vpop.f32.mrb[0].mxu0
  %v1682 = vadd.f32 0.0, %v1681
  %1683 = vmatprep.mubr.bf16.mxu0 0
  %1684 = vmatmul.mubr.bf16.gmra.mrb[0].mxu0 %v1522
  %v1685 = vpop.f32.mrb[0].mxu0
  %v1686 = vadd.f32 0.0, %v1685
  %v1687 = vpop.f32.mrb[0].mxu0
  %v1688 = vadd.f32 0.0, %v1687
  %v1689 = vpop.f32.mrb[0].mxu0
  %v1690 = vadd.f32 0.0, %v1689
  %v1691 = vpop.f32.mrb[0].mxu0
  %v1692 = vadd.f32 0.0, %v1691
  %1693 = vmatprep.mubr.bf16.mxu0 0
  %1694 = vmatmul.mubr.bf16.gmra.mrb[0].mxu0 %v1525
  %v1695 = vpop.f32.mrb[0].mxu0
  %v1696 = vadd.f32 0.0, %v1695
  %v1697 = vpop.f32.mrb[0].mxu0
  %v1698 = vadd.f32 0.0, %v1697
  %v1699 = vpop.f32.mrb[0].mxu0
  %v1700 = vadd.f32 0.0, %v1699
  %v1701 = vpop.f32.mrb[0].mxu0
  %v1702 = vadd.f32 0.0, %v1701
  %1703 = vmatprep.mubr.bf16.mxu0 0
  %1704 = vmatmul.mubr.bf16.gmra.mrb[0].mxu0 %v1528
  %v1705 = vpop.f32.mrb[0].mxu0
  %v1706 = vadd.f32 0.0, %v1705
  %v1707 = vpop.f32.mrb[0].mxu0
  %v1708 = vadd.f32 0.0, %v1707
  %v1709 = vpop.f32.mrb[0].mxu0
  %v1710 = vadd.f32 0.0, %v1709
  %v1711 = vpop.f32.mrb[0].mxu0
  %v1712 = vadd.f32 0.0, %v1711
  %1713 = vdwg.mxu0
  %1714 = vmatprep.subr.bf16.mxu0 %v1477
  %1715 = vmatpush1.bf16.msra.mxu0 %v1476
  %1716 = vmatprep.subr.bf16.mxu0 %v1483
  %1717 = vmatpush1.bf16.msra.mxu0 %v1482
  %1718 = vmatprep.subr.bf16.mxu0 %v1546
  %1719 = vmatpush1.bf16.msra.mxu0 %v1543
  %1720 = vmatprep.subr.bf16.mxu0 0
  %1721 = vmatpush1.bf16.msra.mxu0 0
  %1722 = vmatprep.subr.bf16.mxu0 0
  %1723 = vmatpush1.bf16.msra.mxu0 0
  %1724 = vmatprep.subr.bf16.mxu0 0
  %1725 = vmatpush1.bf16.msra.mxu0 0
  %1726 = vmatprep.subr.bf16.mxu0 0
  %1727 = vmatpush1.bf16.msra.mxu0 0
  %1728 = vmatprep.subr.bf16.mxu0 0
  %1729 = vmatpush1.bf16.msra.mxu0 0
  %1730 = vmatprep.subr.bf16.mxu0 0
  %1731 = vmatpush1.bf16.msra.mxu0 0
  %1732 = vmatprep.subr.bf16.mxu0 0
  %1733 = vmatpush1.bf16.msra.mxu0 0
  %1734 = vmatprep.subr.bf16.mxu0 0
  %1735 = vmatpush1.bf16.msra.mxu0 0
  %1736 = vmatprep.subr.bf16.mxu0 0
  %1737 = vmatpush1.bf16.msra.mxu0 0
  %1738 = vmatprep.subr.bf16.mxu0 0
  %1739 = vmatpush1.bf16.msra.mxu0 0
  %1740 = vmatprep.subr.bf16.mxu0 0
  %1741 = vmatpush1.bf16.msra.mxu0 0
  %1742 = vmatprep.subr.bf16.mxu0 0
  %1743 = vmatpush1.bf16.msra.mxu0 0
  %1744 = vmatprep.subr.bf16.mxu0 0
  %1745 = vmatpush1.bf16.msra.mxu0 0
  %1746 = vmatprep.mubr.bf16.mxu0 0
  %1747 = vmatmul.mubr.bf16.gmra.mrb[0].mxu0 %v1516
  %v1748 = vpop.f32.mrb[0].mxu0
  %v1749 = vadd.f32 0.0, %v1748
  %v1750 = vpop.f32.mrb[0].mxu0
  %v1751 = vadd.f32 0.0, %v1750
  %v1752 = vpop.f32.mrb[0].mxu0
  %v1753 = vadd.f32 0.0, %v1752
  %v1754 = vpop.f32.mrb[0].mxu0
  %v1755 = vadd.f32 0.0, %v1754
  %1756 = vmatprep.mubr.bf16.mxu0 0
  %1757 = vmatmul.mubr.bf16.gmra.mrb[0].mxu0 %v1519
  %v1758 = vpop.f32.mrb[0].mxu0
  %v1759 = vadd.f32 0.0, %v1758
  %v1760 = vpop.f32.mrb[0].mxu0
  %v1761 = vadd.f32 0.0, %v1760
  %v1762 = vpop.f32.mrb[0].mxu0
  %v1763 = vadd.f32 0.0, %v1762
  %v1764 = vpop.f32.mrb[0].mxu0
  %v1765 = vadd.f32 0.0, %v1764
  %1766 = vmatprep.mubr.bf16.mxu0 0
  %1767 = vmatmul.mubr.bf16.gmra.mrb[0].mxu0 %v1522
  %v1768 = vpop.f32.mrb[0].mxu0
  %v1769 = vadd.f32 0.0, %v1768
  %v1770 = vpop.f32.mrb[0].mxu0
  %v1771 = vadd.f32 0.0, %v1770
  %v1772 = vpop.f32.mrb[0].mxu0
  %v1773 = vadd.f32 0.0, %v1772
  %v1774 = vpop.f32.mrb[0].mxu0
  %v1775 = vadd.f32 0.0, %v1774
  %1776 = vmatprep.mubr.bf16.mxu0 0
  %1777 = vmatmul.mubr.bf16.gmra.mrb[0].mxu0 %v1525
  %v1778 = vpop.f32.mrb[0].mxu0
  %v1779 = vadd.f32 0.0, %v1778
  %v1780 = vpop.f32.mrb[0].mxu0
  %v1781 = vadd.f32 0.0, %v1780
  %v1782 = vpop.f32.mrb[0].mxu0
  %v1783 = vadd.f32 0.0, %v1782
  %v1784 = vpop.f32.mrb[0].mxu0
  %v1785 = vadd.f32 0.0, %v1784
  %1786 = vmatprep.mubr.bf16.mxu0 0
  %1787 = vmatmul.mubr.bf16.gmra.mrb[0].mxu0 %v1528
  %v1788 = vpop.f32.mrb[0].mxu0
  %v1789 = vadd.f32 0.0, %v1788
  %v1790 = vpop.f32.mrb[0].mxu0
  %v1791 = vadd.f32 0.0, %v1790
  %v1792 = vpop.f32.mrb[0].mxu0
  %v1793 = vadd.f32 0.0, %v1792
  %v1794 = vpop.f32.mrb[0].mxu0
  %v1795 = vadd.f32 0.0, %v1794
  %1796 = vdwg.mxu0
  %v1797 = vadd.f32 %v1310, %v1583
  %v1798 = vadd.f32 %v1311, %v1585
  %v1799 = vadd.f32 %v1312, %v1666
  %v1800 = vadd.f32 %v1313, %v1668
  %v1801 = vadd.f32 %v1314, %v1749
  %v1802 = vadd.f32 %v1315, %v1751
  %v1803 = vadd.f32 %v1316, %v1587
  %v1804 = vadd.f32 %v1317, %v1589
  %v1805 = vadd.f32 %v1318, %v1670
  %v1806 = vadd.f32 %v1319, %v1672
  %v1807 = vadd.f32 %v1320, %v1753
  %v1808 = vadd.f32 %v1321, %v1755
  %v1809 = vadd.f32 %v1322, %v1593
  %v1810 = vadd.f32 %v1323, %v1595
  %v1811 = vadd.f32 %v1324, %v1676
  %v1812 = vadd.f32 %v1325, %v1678
  %v1813 = vadd.f32 %v1326, %v1759
  %v1814 = vadd.f32 %v1327, %v1761
  %v1815 = vadd.f32 %v1328, %v1597
  %v1816 = vadd.f32 %v1329, %v1599
  %v1817 = vadd.f32 %v1330, %v1680
  %v1818 = vadd.f32 %v1331, %v1682
  %v1819 = vadd.f32 %v1332, %v1763
  %v1820 = vadd.f32 %v1333, %v1765
  %v1821 = vadd.f32 %v1334, %v1603
  %v1822 = vadd.f32 %v1335, %v1605
  %v1823 = vadd.f32 %v1336, %v1686
  %v1824 = vadd.f32 %v1337, %v1688
  %v1825 = vadd.f32 %v1338, %v1769
  %v1826 = vadd.f32 %v1339, %v1771
  %v1827 = vadd.f32 %v1340, %v1607
  %v1828 = vadd.f32 %v1341, %v1609
  %v1829 = vadd.f32 %v1342, %v1690
  %v1830 = vadd.f32 %v1343, %v1692
  %v1831 = vadd.f32 %v1344, %v1773
  %v1832 = vadd.f32 %v1345, %v1775
  %v1833 = vadd.f32 %v1346, %v1613
  %v1834 = vadd.f32 %v1347, %v1615
  %v1835 = vadd.f32 %v1348, %v1696
  %v1836 = vadd.f32 %v1349, %v1698
  %v1837 = vadd.f32 %v1350, %v1779
  %v1838 = vadd.f32 %v1351, %v1781
  %v1839 = vadd.f32 %v1352, %v1617
  %v1840 = vadd.f32 %v1353, %v1619
  %v1841 = vadd.f32 %v1354, %v1700
  %v1842 = vadd.f32 %v1355, %v1702
  %v1843 = vadd.f32 %v1356, %v1783
  %v1844 = vadd.f32 %v1357, %v1785
  %v1845 = vadd.f32 %v1358, %v1623
  %v1846 = vadd.f32 %v1359, %v1625
  %v1847 = vadd.f32 %v1360, %v1706
  %v1848 = vadd.f32 %v1361, %v1708
  %v1849 = vadd.f32 %v1362, %v1789
  %v1850 = vadd.f32 %v1363, %v1791
  %v1851 = vadd.f32 %v1364, %v1627
  %v1852 = vadd.f32 %v1365, %v1629
  %v1853 = vadd.f32 %v1366, %v1710
  %v1854 = vadd.f32 %v1367, %v1712
  %v1855 = vadd.f32 %v1368, %v1793
  %v1856 = vadd.f32 %v1369, %v1795
  %1857 = vrot.lane.b32.xlu0 %v30, 109
  %v1858 = vpop.permute.xlu0 %1857
  %1859 = vrot.lane.b32.xlu0 %v36, 109
  %v1860 = vpop.permute.xlu0 %1859
  %1861 = vrot.lane.b32.xlu0 %v42, 109
  %v1862 = vpop.permute.xlu0 %1861
  %1863 = vrot.lane.b32.xlu0 %v48, 109
  %v1864 = vpop.permute.xlu0 %1863
  %1865 = vrot.lane.b32.xlu0 %v54, 109
  %v1866 = vpop.permute.xlu0 %1865
  %1867 = vrot.lane.b32.xlu0 %v31, 109
  %v1868 = vpop.permute.xlu0 %1867
  %1869 = vrot.lane.b32.xlu0 %v37, 109
  %v1870 = vpop.permute.xlu0 %1869
  %1871 = vrot.lane.b32.xlu0 %v43, 109
  %v1872 = vpop.permute.xlu0 %1871
  %1873 = vrot.lane.b32.xlu0 %v49, 109
  %v1874 = vpop.permute.xlu0 %1873
  %1875 = vrot.lane.b32.xlu0 %v55, 109
  %v1876 = vpop.permute.xlu0 %1875
  %1877 = vrot.lane.b32.xlu0 %v32, 109
  %v1878 = vpop.permute.xlu0 %1877
  %1879 = vrot.lane.b32.xlu0 %v38, 109
  %v1880 = vpop.permute.xlu0 %1879
  %1881 = vrot.lane.b32.xlu0 %v44, 109
  %v1882 = vpop.permute.xlu0 %1881
  %1883 = vrot.lane.b32.xlu0 %v50, 109
  %v1884 = vpop.permute.xlu0 %1883
  %1885 = vrot.lane.b32.xlu0 %v56, 109
  %v1886 = vpop.permute.xlu0 %1885
  %1887 = vrot.lane.b32.xlu0 %v33, 109
  %v1888 = vpop.permute.xlu0 %1887
  %1889 = vrot.lane.b32.xlu0 %v39, 109
  %v1890 = vpop.permute.xlu0 %1889
  %1891 = vrot.lane.b32.xlu0 %v45, 109
  %v1892 = vpop.permute.xlu0 %1891
  %1893 = vrot.lane.b32.xlu0 %v51, 109
  %v1894 = vpop.permute.xlu0 %1893
  %1895 = vrot.lane.b32.xlu0 %v57, 109
  %v1896 = vpop.permute.xlu0 %1895
  %1897 = vrot.lane.b32.xlu0 %v34, 109
  %v1898 = vpop.permute.xlu0 %1897
  %1899 = vrot.lane.b32.xlu0 %v40, 109
  %v1900 = vpop.permute.xlu0 %1899
  %1901 = vrot.lane.b32.xlu0 %v46, 109
  %v1902 = vpop.permute.xlu0 %1901
  %1903 = vrot.lane.b32.xlu0 %v52, 109
  %v1904 = vpop.permute.xlu0 %1903
  %1905 = vrot.lane.b32.xlu0 %v58, 109
  %v1906 = vpop.permute.xlu0 %1905
  %1907 = vrot.lane.b32.xlu0 %v35, 109
  %v1908 = vpop.permute.xlu0 %1907
  %1909 = vrot.lane.b32.xlu0 %v41, 109
  %v1910 = vpop.permute.xlu0 %1909
  %1911 = vrot.lane.b32.xlu0 %v47, 109
  %v1912 = vpop.permute.xlu0 %1911
  %1913 = vrot.lane.b32.xlu0 %v53, 109
  %v1914 = vpop.permute.xlu0 %1913
  %1915 = vrot.lane.b32.xlu0 %v59, 109
  %v1916 = vpop.permute.xlu0 %1915
  %vm1917 = vcmp.lt.s32.totalorder %v131, 109
  %v1918 = vsel %vm1917, %v1898, %v1908
  %v1919 = vsel %vm1917, %v1900, %v1910
  %v1920 = vsel %vm1917, %v1902, %v1912
  %v1921 = vsel %vm1917, %v1904, %v1914
  %v1922 = vsel %vm1917, %v1906, %v1916
  %v1923 = vsel %vm1917, %v1888, %v1898
  %v1924 = vsel %vm1917, %v1890, %v1900
  %v1925 = vsel %vm1917, %v1892, %v1902
  %v1926 = vsel %vm1917, %v1894, %v1904
  %v1927 = vsel %vm1917, %v1896, %v1906
  %v1928 = vsel %vm1917, %v1878, %v1888
  %v1929 = vsel %vm1917, %v1880, %v1890
  %v1930 = vsel %vm1917, %v1882, %v1892
  %v1931 = vsel %vm1917, %v1884, %v1894
  %v1932 = vsel %vm1917, %v1886, %v1896
  %v1933 = vsel %vm1917, %v1868, %v1878
  %v1934 = vsel %vm1917, %v1870, %v1880
  %v1935 = vsel %vm1917, %v1872, %v1882
  %v1936 = vsel %vm1917, %v1874, %v1884
  %v1937 = vsel %vm1917, %v1876, %v1886
  %v1938 = vsel %vm1917, %v1858, %v1868
  %v1939 = vsel %vm1917, %v1860, %v1870
  %v1940 = vsel %vm1917, %v1862, %v1872
  %v1941 = vsel %vm1917, %v1864, %v1874
  %v1942 = vsel %vm1917, %v1866, %v1876
  %v1943 = vsel %vm1917, %v1908, %v1858
  %v1944 = vsel %vm1917, %v1910, %v1860
  %v1945 = vsel %vm1917, %v1912, %v1862
  %v1946 = vsel %vm1917, %v1914, %v1864
  %v1947 = vsel %vm1917, %v1916, %v1866
  %s1948 = scalar_lea.vmem %s1, 160
  %v1949 = vld [vmem:[%s1948] sm:$0xf]
  %v1950 = vld [vmem:[%s1948 + $0x4] sm:$0xf]
  %v1951 = vld [vmem:[%s1948 + $0x8] sm:$0xf]
  %v1952 = vld [vmem:[%s1948 + $0xc] sm:$0xf]
  %v1953 = vld [vmem:[%s1948 + $0x10] sm:$0xf]
  %v1954 = vld [vmem:[%s1948 + $0x14] sm:$0xf]
  %v1955 = vld [vmem:[%s1948 + $0x18] sm:$0xf]
  %v1956 = vld [vmem:[%s1948 + $0x1c] sm:$0xf]
  %v1957 = vld [vmem:[%s1948 + $0x20] sm:$0xf]
  %v1958 = vld [vmem:[%s1948 + $0x24] sm:$0xf]
  %v1959 = vpack.c.bf16 %v1939, %v1938
  %v1960 = vpack.c.bf16 %v1934, %v1933
  %v1961 = vpack.c.bf16 %v1929, %v1928
  %v1962 = vpack.c.bf16 %v1924, %v1923
  %v1963 = vpack.c.bf16 %v1919, %v1918
  %v1964 = vpack.c.bf16 %v1944, %v1943
  %v1965 = vpack.c.bf16 %v1941, %v1940
  %v1966 = vpack.c.bf16 %v1936, %v1935
  %v1967 = vpack.c.bf16 %v1931, %v1930
  %v1968 = vpack.c.bf16 %v1926, %v1925
  %v1969 = vpack.c.bf16 %v1921, %v1920
  %v1970 = vpack.c.bf16 %v1946, %v1945
  %v1971 = vpack.c.bf16 %v1942, %v1942
  %v1972 = vpack.c.bf16 %v1937, %v1937
  %v1973 = vpack.c.bf16 %v1932, %v1932
  %v1974 = vpack.c.bf16 %v1927, %v1927
  %v1975 = vpack.c.bf16 %v1922, %v1922
  %v1976 = vpack.c.bf16 %v1947, %v1947
  %v1987 = vunpack.c.l.b16 %v1949
  %v1988 = vunpack.c.l.b16 %v1950
  %v1989 = vunpack.c.l.b16 %v1951
  %v1990 = vunpack.c.l.b16 %v1952
  %v1991 = vunpack.c.l.b16 %v1953
  %v1992 = vunpack.c.l.b16 %v1954
  %v1993 = vunpack.c.l.b16 %v1955
  %v1994 = vunpack.c.l.b16 %v1956
  %v1995 = vunpack.c.l.b16 %v1957
  %v1996 = vunpack.c.l.b16 %v1958
  %v1997 = vpack.c.b16 %v1988, %v1987
  %v1998 = vpack.c.b16 %v1990, %v1989
  %v1999 = vpack.c.b16 %v1992, %v1991
  %v2000 = vpack.c.b16 %v1994, %v1993
  %v2001 = vpack.c.b16 %v1996, %v1995
  %v2003 = vsel %vm217, %v1997, 0
  %v2006 = vsel %vm217, %v1998, 0
  %v2009 = vsel %vm217, %v1999, 0
  %v2012 = vsel %vm217, %v2000, 0
  %v2015 = vsel %vm217, %v2001, 0
  %v2018 = vsel %vm233, %v1971, 0
  %v2021 = vsel %vm233, %v1972, 0
  %v2024 = vsel %vm233, %v1973, 0
  %v2027 = vsel %vm233, %v1974, 0
  %v2030 = vsel %vm233, %v1975, 0
  %v2033 = vsel %vm233, %v1976, 0
  %2035 = vmatprep.subr.bf16.mxu0 %v1960
  %2036 = vmatpush1.bf16.msra.mxu0 %v1959
  %2037 = vmatprep.subr.bf16.mxu0 %v1966
  %2038 = vmatpush1.bf16.msra.mxu0 %v1965
  %2039 = vmatprep.subr.bf16.mxu0 %v2021
  %2040 = vmatpush1.bf16.msra.mxu0 %v2018
  %2041 = vmatprep.subr.bf16.mxu0 0
  %2042 = vmatpush1.bf16.msra.mxu0 0
  %2043 = vmatprep.subr.bf16.mxu0 0
  %2044 = vmatpush1.bf16.msra.mxu0 0
  %2045 = vmatprep.subr.bf16.mxu0 0
  %2046 = vmatpush1.bf16.msra.mxu0 0
  %2047 = vmatprep.subr.bf16.mxu0 0
  %2048 = vmatpush1.bf16.msra.mxu0 0
  %2049 = vmatprep.subr.bf16.mxu0 0
  %2050 = vmatpush1.bf16.msra.mxu0 0
  %2051 = vmatprep.subr.bf16.mxu0 0
  %2052 = vmatpush1.bf16.msra.mxu0 0
  %2053 = vmatprep.subr.bf16.mxu0 0
  %2054 = vmatpush1.bf16.msra.mxu0 0
  %2055 = vmatprep.subr.bf16.mxu0 0
  %2056 = vmatpush1.bf16.msra.mxu0 0
  %2057 = vmatprep.subr.bf16.mxu0 0
  %2058 = vmatpush1.bf16.msra.mxu0 0
  %2059 = vmatprep.subr.bf16.mxu0 0
  %2060 = vmatpush1.bf16.msra.mxu0 0
  %2061 = vmatprep.subr.bf16.mxu0 0
  %2062 = vmatpush1.bf16.msra.mxu0 0
  %2063 = vmatprep.subr.bf16.mxu0 0
  %2064 = vmatpush1.bf16.msra.mxu0 0
  %2065 = vmatprep.subr.bf16.mxu0 0
  %2066 = vmatpush1.bf16.msra.mxu0 0
  %2067 = vmatprep.mubr.bf16.mxu0 0
  %2068 = vmatmul.mubr.bf16.gmra.mrb[0].mxu0 %v2003
  %v2069 = vpop.f32.mrb[0].mxu0
  %v2070 = vadd.f32 0.0, %v2069
  %v2071 = vpop.f32.mrb[0].mxu0
  %v2072 = vadd.f32 0.0, %v2071
  %v2073 = vpop.f32.mrb[0].mxu0
  %v2074 = vadd.f32 0.0, %v2073
  %v2075 = vpop.f32.mrb[0].mxu0
  %v2076 = vadd.f32 0.0, %v2075
  %2077 = vmatprep.mubr.bf16.mxu0 0
  %2078 = vmatmul.mubr.bf16.gmra.mrb[0].mxu0 %v2006
  %v2079 = vpop.f32.mrb[0].mxu0
  %v2080 = vadd.f32 0.0, %v2079
  %v2081 = vpop.f32.mrb[0].mxu0
  %v2082 = vadd.f32 0.0, %v2081
  %v2083 = vpop.f32.mrb[0].mxu0
  %v2084 = vadd.f32 0.0, %v2083
  %v2085 = vpop.f32.mrb[0].mxu0
  %v2086 = vadd.f32 0.0, %v2085
  %2087 = vmatprep.mubr.bf16.mxu0 0
  %2088 = vmatmul.mubr.bf16.gmra.mrb[0].mxu0 %v2009
  %v2089 = vpop.f32.mrb[0].mxu0
  %v2090 = vadd.f32 0.0, %v2089
  %v2091 = vpop.f32.mrb[0].mxu0
  %v2092 = vadd.f32 0.0, %v2091
  %v2093 = vpop.f32.mrb[0].mxu0
  %v2094 = vadd.f32 0.0, %v2093
  %v2095 = vpop.f32.mrb[0].mxu0
  %v2096 = vadd.f32 0.0, %v2095
  %2097 = vmatprep.mubr.bf16.mxu0 0
  %2098 = vmatmul.mubr.bf16.gmra.mrb[0].mxu0 %v2012
  %v2099 = vpop.f32.mrb[0].mxu0
  %v2100 = vadd.f32 0.0, %v2099
  %v2101 = vpop.f32.mrb[0].mxu0
  %v2102 = vadd.f32 0.0, %v2101
  %v2103 = vpop.f32.mrb[0].mxu0
  %v2104 = vadd.f32 0.0, %v2103
  %v2105 = vpop.f32.mrb[0].mxu0
  %v2106 = vadd.f32 0.0, %v2105
  %2107 = vmatprep.mubr.bf16.mxu0 0
  %2108 = vmatmul.mubr.bf16.gmra.mrb[0].mxu0 %v2015
  %v2109 = vpop.f32.mrb[0].mxu0
  %v2110 = vadd.f32 0.0, %v2109
  %v2111 = vpop.f32.mrb[0].mxu0
  %v2112 = vadd.f32 0.0, %v2111
  %v2113 = vpop.f32.mrb[0].mxu0
  %v2114 = vadd.f32 0.0, %v2113
  %v2115 = vpop.f32.mrb[0].mxu0
  %v2116 = vadd.f32 0.0, %v2115
  %2117 = vdwg.mxu0
  %2118 = vmatprep.subr.bf16.mxu0 %v1962
  %2119 = vmatpush1.bf16.msra.mxu0 %v1961
  %2120 = vmatprep.subr.bf16.mxu0 %v1968
  %2121 = vmatpush1.bf16.msra.mxu0 %v1967
  %2122 = vmatprep.subr.bf16.mxu0 %v2027
  %2123 = vmatpush1.bf16.msra.mxu0 %v2024
  %2124 = vmatprep.subr.bf16.mxu0 0
  %2125 = vmatpush1.bf16.msra.mxu0 0
  %2126 = vmatprep.subr.bf16.mxu0 0
  %2127 = vmatpush1.bf16.msra.mxu0 0
  %2128 = vmatprep.subr.bf16.mxu0 0
  %2129 = vmatpush1.bf16.msra.mxu0 0
  %2130 = vmatprep.subr.bf16.mxu0 0
  %2131 = vmatpush1.bf16.msra.mxu0 0
  %2132 = vmatprep.subr.bf16.mxu0 0
  %2133 = vmatpush1.bf16.msra.mxu0 0
  %2134 = vmatprep.subr.bf16.mxu0 0
  %2135 = vmatpush1.bf16.msra.mxu0 0
  %2136 = vmatprep.subr.bf16.mxu0 0
  %2137 = vmatpush1.bf16.msra.mxu0 0
  %2138 = vmatprep.subr.bf16.mxu0 0
  %2139 = vmatpush1.bf16.msra.mxu0 0
  %2140 = vmatprep.subr.bf16.mxu0 0
  %2141 = vmatpush1.bf16.msra.mxu0 0
  %2142 = vmatprep.subr.bf16.mxu0 0
  %2143 = vmatpush1.bf16.msra.mxu0 0
  %2144 = vmatprep.subr.bf16.mxu0 0
  %2145 = vmatpush1.bf16.msra.mxu0 0
  %2146 = vmatprep.subr.bf16.mxu0 0
  %2147 = vmatpush1.bf16.msra.mxu0 0
  %2148 = vmatprep.subr.bf16.mxu0 0
  %2149 = vmatpush1.bf16.msra.mxu0 0
  %2150 = vmatprep.mubr.bf16.mxu0 0
  %2151 = vmatmul.mubr.bf16.gmra.mrb[0].mxu0 %v2003
  %v2152 = vpop.f32.mrb[0].mxu0
  %v2153 = vadd.f32 0.0, %v2152
  %v2154 = vpop.f32.mrb[0].mxu0
  %v2155 = vadd.f32 0.0, %v2154
  %v2156 = vpop.f32.mrb[0].mxu0
  %v2157 = vadd.f32 0.0, %v2156
  %v2158 = vpop.f32.mrb[0].mxu0
  %v2159 = vadd.f32 0.0, %v2158
  %2160 = vmatprep.mubr.bf16.mxu0 0
  %2161 = vmatmul.mubr.bf16.gmra.mrb[0].mxu0 %v2006
  %v2162 = vpop.f32.mrb[0].mxu0
  %v2163 = vadd.f32 0.0, %v2162
  %v2164 = vpop.f32.mrb[0].mxu0
  %v2165 = vadd.f32 0.0, %v2164
  %v2166 = vpop.f32.mrb[0].mxu0
  %v2167 = vadd.f32 0.0, %v2166
  %v2168 = vpop.f32.mrb[0].mxu0
  %v2169 = vadd.f32 0.0, %v2168
  %2170 = vmatprep.mubr.bf16.mxu0 0
  %2171 = vmatmul.mubr.bf16.gmra.mrb[0].mxu0 %v2009
  %v2172 = vpop.f32.mrb[0].mxu0
  %v2173 = vadd.f32 0.0, %v2172
  %v2174 = vpop.f32.mrb[0].mxu0
  %v2175 = vadd.f32 0.0, %v2174
  %v2176 = vpop.f32.mrb[0].mxu0
  %v2177 = vadd.f32 0.0, %v2176
  %v2178 = vpop.f32.mrb[0].mxu0
  %v2179 = vadd.f32 0.0, %v2178
  %2180 = vmatprep.mubr.bf16.mxu0 0
  %2181 = vmatmul.mubr.bf16.gmra.mrb[0].mxu0 %v2012
  %v2182 = vpop.f32.mrb[0].mxu0
  %v2183 = vadd.f32 0.0, %v2182
  %v2184 = vpop.f32.mrb[0].mxu0
  %v2185 = vadd.f32 0.0, %v2184
  %v2186 = vpop.f32.mrb[0].mxu0
  %v2187 = vadd.f32 0.0, %v2186
  %v2188 = vpop.f32.mrb[0].mxu0
  %v2189 = vadd.f32 0.0, %v2188
  %2190 = vmatprep.mubr.bf16.mxu0 0
  %2191 = vmatmul.mubr.bf16.gmra.mrb[0].mxu0 %v2015
  %v2192 = vpop.f32.mrb[0].mxu0
  %v2193 = vadd.f32 0.0, %v2192
  %v2194 = vpop.f32.mrb[0].mxu0
  %v2195 = vadd.f32 0.0, %v2194
  %v2196 = vpop.f32.mrb[0].mxu0
  %v2197 = vadd.f32 0.0, %v2196
  %v2198 = vpop.f32.mrb[0].mxu0
  %v2199 = vadd.f32 0.0, %v2198
  %2200 = vdwg.mxu0
  %2201 = vmatprep.subr.bf16.mxu0 %v1964
  %2202 = vmatpush1.bf16.msra.mxu0 %v1963
  %2203 = vmatprep.subr.bf16.mxu0 %v1970
  %2204 = vmatpush1.bf16.msra.mxu0 %v1969
  %2205 = vmatprep.subr.bf16.mxu0 %v2033
  %2206 = vmatpush1.bf16.msra.mxu0 %v2030
  %2207 = vmatprep.subr.bf16.mxu0 0
  %2208 = vmatpush1.bf16.msra.mxu0 0
  %2209 = vmatprep.subr.bf16.mxu0 0
  %2210 = vmatpush1.bf16.msra.mxu0 0
  %2211 = vmatprep.subr.bf16.mxu0 0
  %2212 = vmatpush1.bf16.msra.mxu0 0
  %2213 = vmatprep.subr.bf16.mxu0 0
  %2214 = vmatpush1.bf16.msra.mxu0 0
  %2215 = vmatprep.subr.bf16.mxu0 0
  %2216 = vmatpush1.bf16.msra.mxu0 0
  %2217 = vmatprep.subr.bf16.mxu0 0
  %2218 = vmatpush1.bf16.msra.mxu0 0
  %2219 = vmatprep.subr.bf16.mxu0 0
  %2220 = vmatpush1.bf16.msra.mxu0 0
  %2221 = vmatprep.subr.bf16.mxu0 0
  %2222 = vmatpush1.bf16.msra.mxu0 0
  %2223 = vmatprep.subr.bf16.mxu0 0
  %2224 = vmatpush1.bf16.msra.mxu0 0
  %2225 = vmatprep.subr.bf16.mxu0 0
  %2226 = vmatpush1.bf16.msra.mxu0 0
  %2227 = vmatprep.subr.bf16.mxu0 0
  %2228 = vmatpush1.bf16.msra.mxu0 0
  %2229 = vmatprep.subr.bf16.mxu0 0
  %2230 = vmatpush1.bf16.msra.mxu0 0
  %2231 = vmatprep.subr.bf16.mxu0 0
  %2232 = vmatpush1.bf16.msra.mxu0 0
  %2233 = vmatprep.mubr.bf16.mxu0 0
  %2234 = vmatmul.mubr.bf16.gmra.mrb[0].mxu0 %v2003
  %v2235 = vpop.f32.mrb[0].mxu0
  %v2236 = vadd.f32 0.0, %v2235
  %v2237 = vpop.f32.mrb[0].mxu0
  %v2238 = vadd.f32 0.0, %v2237
  %v2239 = vpop.f32.mrb[0].mxu0
  %v2240 = vadd.f32 0.0, %v2239
  %v2241 = vpop.f32.mrb[0].mxu0
  %v2242 = vadd.f32 0.0, %v2241
  %2243 = vmatprep.mubr.bf16.mxu0 0
  %2244 = vmatmul.mubr.bf16.gmra.mrb[0].mxu0 %v2006
  %v2245 = vpop.f32.mrb[0].mxu0
  %v2246 = vadd.f32 0.0, %v2245
  %v2247 = vpop.f32.mrb[0].mxu0
  %v2248 = vadd.f32 0.0, %v2247
  %v2249 = vpop.f32.mrb[0].mxu0
  %v2250 = vadd.f32 0.0, %v2249
  %v2251 = vpop.f32.mrb[0].mxu0
  %v2252 = vadd.f32 0.0, %v2251
  %2253 = vmatprep.mubr.bf16.mxu0 0
  %2254 = vmatmul.mubr.bf16.gmra.mrb[0].mxu0 %v2009
  %v2255 = vpop.f32.mrb[0].mxu0
  %v2256 = vadd.f32 0.0, %v2255
  %v2257 = vpop.f32.mrb[0].mxu0
  %v2258 = vadd.f32 0.0, %v2257
  %v2259 = vpop.f32.mrb[0].mxu0
  %v2260 = vadd.f32 0.0, %v2259
  %v2261 = vpop.f32.mrb[0].mxu0
  %v2262 = vadd.f32 0.0, %v2261
  %2263 = vmatprep.mubr.bf16.mxu0 0
  %2264 = vmatmul.mubr.bf16.gmra.mrb[0].mxu0 %v2012
  %v2265 = vpop.f32.mrb[0].mxu0
  %v2266 = vadd.f32 0.0, %v2265
  %v2267 = vpop.f32.mrb[0].mxu0
  %v2268 = vadd.f32 0.0, %v2267
  %v2269 = vpop.f32.mrb[0].mxu0
  %v2270 = vadd.f32 0.0, %v2269
  %v2271 = vpop.f32.mrb[0].mxu0
  %v2272 = vadd.f32 0.0, %v2271
  %2273 = vmatprep.mubr.bf16.mxu0 0
  %2274 = vmatmul.mubr.bf16.gmra.mrb[0].mxu0 %v2015
  %v2275 = vpop.f32.mrb[0].mxu0
  %v2276 = vadd.f32 0.0, %v2275
  %v2277 = vpop.f32.mrb[0].mxu0
  %v2278 = vadd.f32 0.0, %v2277
  %v2279 = vpop.f32.mrb[0].mxu0
  %v2280 = vadd.f32 0.0, %v2279
  %v2281 = vpop.f32.mrb[0].mxu0
  %v2282 = vadd.f32 0.0, %v2281
  %2283 = vdwg.mxu0
  %v2284 = vadd.f32 %v1797, %v2070
  %v2285 = vadd.f32 %v1798, %v2072
  %v2286 = vadd.f32 %v1799, %v2153
  %v2287 = vadd.f32 %v1800, %v2155
  %v2288 = vadd.f32 %v1801, %v2236
  %v2289 = vadd.f32 %v1802, %v2238
  %v2290 = vadd.f32 %v1803, %v2074
  %v2291 = vadd.f32 %v1804, %v2076
  %v2292 = vadd.f32 %v1805, %v2157
  %v2293 = vadd.f32 %v1806, %v2159
  %v2294 = vadd.f32 %v1807, %v2240
  %v2295 = vadd.f32 %v1808, %v2242
  %v2296 = vadd.f32 %v1809, %v2080
  %v2297 = vadd.f32 %v1810, %v2082
  %v2298 = vadd.f32 %v1811, %v2163
  %v2299 = vadd.f32 %v1812, %v2165
  %v2300 = vadd.f32 %v1813, %v2246
  %v2301 = vadd.f32 %v1814, %v2248
  %v2302 = vadd.f32 %v1815, %v2084
  %v2303 = vadd.f32 %v1816, %v2086
  %v2304 = vadd.f32 %v1817, %v2167
  %v2305 = vadd.f32 %v1818, %v2169
  %v2306 = vadd.f32 %v1819, %v2250
  %v2307 = vadd.f32 %v1820, %v2252
  %v2308 = vadd.f32 %v1821, %v2090
  %v2309 = vadd.f32 %v1822, %v2092
  %v2310 = vadd.f32 %v1823, %v2173
  %v2311 = vadd.f32 %v1824, %v2175
  %v2312 = vadd.f32 %v1825, %v2256
  %v2313 = vadd.f32 %v1826, %v2258
  %v2314 = vadd.f32 %v1827, %v2094
  %v2315 = vadd.f32 %v1828, %v2096
  %v2316 = vadd.f32 %v1829, %v2177
  %v2317 = vadd.f32 %v1830, %v2179
  %v2318 = vadd.f32 %v1831, %v2260
  %v2319 = vadd.f32 %v1832, %v2262
  %v2320 = vadd.f32 %v1833, %v2100
  %v2321 = vadd.f32 %v1834, %v2102
  %v2322 = vadd.f32 %v1835, %v2183
  %v2323 = vadd.f32 %v1836, %v2185
  %v2324 = vadd.f32 %v1837, %v2266
  %v2325 = vadd.f32 %v1838, %v2268
  %v2326 = vadd.f32 %v1839, %v2104
  %v2327 = vadd.f32 %v1840, %v2106
  %v2328 = vadd.f32 %v1841, %v2187
  %v2329 = vadd.f32 %v1842, %v2189
  %v2330 = vadd.f32 %v1843, %v2270
  %v2331 = vadd.f32 %v1844, %v2272
  %v2332 = vadd.f32 %v1845, %v2110
  %v2333 = vadd.f32 %v1846, %v2112
  %v2334 = vadd.f32 %v1847, %v2193
  %v2335 = vadd.f32 %v1848, %v2195
  %v2336 = vadd.f32 %v1849, %v2276
  %v2337 = vadd.f32 %v1850, %v2278
  %v2338 = vadd.f32 %v1851, %v2114
  %v2339 = vadd.f32 %v1852, %v2116
  %v2340 = vadd.f32 %v1853, %v2197
  %v2341 = vadd.f32 %v1854, %v2199
  %v2342 = vadd.f32 %v1855, %v2280
  %v2343 = vadd.f32 %v1856, %v2282
  %2344 = vrot.lane.b32.xlu0 %v30, 108
  %v2345 = vpop.permute.xlu0 %2344
  %2346 = vrot.lane.b32.xlu0 %v36, 108
  %v2347 = vpop.permute.xlu0 %2346
  %2348 = vrot.lane.b32.xlu0 %v42, 108
  %v2349 = vpop.permute.xlu0 %2348
  %2350 = vrot.lane.b32.xlu0 %v48, 108
  %v2351 = vpop.permute.xlu0 %2350
  %2352 = vrot.lane.b32.xlu0 %v54, 108
  %v2353 = vpop.permute.xlu0 %2352
  %2354 = vrot.lane.b32.xlu0 %v31, 108
  %v2355 = vpop.permute.xlu0 %2354
  %2356 = vrot.lane.b32.xlu0 %v37, 108
  %v2357 = vpop.permute.xlu0 %2356
  %2358 = vrot.lane.b32.xlu0 %v43, 108
  %v2359 = vpop.permute.xlu0 %2358
  %2360 = vrot.lane.b32.xlu0 %v49, 108
  %v2361 = vpop.permute.xlu0 %2360
  %2362 = vrot.lane.b32.xlu0 %v55, 108
  %v2363 = vpop.permute.xlu0 %2362
  %2364 = vrot.lane.b32.xlu0 %v32, 108
  %v2365 = vpop.permute.xlu0 %2364
  %2366 = vrot.lane.b32.xlu0 %v38, 108
  %v2367 = vpop.permute.xlu0 %2366
  %2368 = vrot.lane.b32.xlu0 %v44, 108
  %v2369 = vpop.permute.xlu0 %2368
  %2370 = vrot.lane.b32.xlu0 %v50, 108
  %v2371 = vpop.permute.xlu0 %2370
  %2372 = vrot.lane.b32.xlu0 %v56, 108
  %v2373 = vpop.permute.xlu0 %2372
  %2374 = vrot.lane.b32.xlu0 %v33, 108
  %v2375 = vpop.permute.xlu0 %2374
  %2376 = vrot.lane.b32.xlu0 %v39, 108
  %v2377 = vpop.permute.xlu0 %2376
  %2378 = vrot.lane.b32.xlu0 %v45, 108
  %v2379 = vpop.permute.xlu0 %2378
  %2380 = vrot.lane.b32.xlu0 %v51, 108
  %v2381 = vpop.permute.xlu0 %2380
  %2382 = vrot.lane.b32.xlu0 %v57, 108
  %v2383 = vpop.permute.xlu0 %2382
  %2384 = vrot.lane.b32.xlu0 %v34, 108
  %v2385 = vpop.permute.xlu0 %2384
  %2386 = vrot.lane.b32.xlu0 %v40, 108
  %v2387 = vpop.permute.xlu0 %2386
  %2388 = vrot.lane.b32.xlu0 %v46, 108
  %v2389 = vpop.permute.xlu0 %2388
  %2390 = vrot.lane.b32.xlu0 %v52, 108
  %v2391 = vpop.permute.xlu0 %2390
  %2392 = vrot.lane.b32.xlu0 %v58, 108
  %v2393 = vpop.permute.xlu0 %2392
  %2394 = vrot.lane.b32.xlu0 %v35, 108
  %v2395 = vpop.permute.xlu0 %2394
  %2396 = vrot.lane.b32.xlu0 %v41, 108
  %v2397 = vpop.permute.xlu0 %2396
  %2398 = vrot.lane.b32.xlu0 %v47, 108
  %v2399 = vpop.permute.xlu0 %2398
  %2400 = vrot.lane.b32.xlu0 %v53, 108
  %v2401 = vpop.permute.xlu0 %2400
  %2402 = vrot.lane.b32.xlu0 %v59, 108
  %v2403 = vpop.permute.xlu0 %2402
  %vm2404 = vcmp.lt.s32.totalorder %v131, 108
  %v2405 = vsel %vm2404, %v2385, %v2395
  %v2406 = vsel %vm2404, %v2387, %v2397
  %v2407 = vsel %vm2404, %v2389, %v2399
  %v2408 = vsel %vm2404, %v2391, %v2401
  %v2409 = vsel %vm2404, %v2393, %v2403
  %v2410 = vsel %vm2404, %v2375, %v2385
  %v2411 = vsel %vm2404, %v2377, %v2387
  %v2412 = vsel %vm2404, %v2379, %v2389
  %v2413 = vsel %vm2404, %v2381, %v2391
  %v2414 = vsel %vm2404, %v2383, %v2393
  %v2415 = vsel %vm2404, %v2365, %v2375
  %v2416 = vsel %vm2404, %v2367, %v2377
  %v2417 = vsel %vm2404, %v2369, %v2379
  %v2418 = vsel %vm2404, %v2371, %v2381
  %v2419 = vsel %vm2404, %v2373, %v2383
  %v2420 = vsel %vm2404, %v2355, %v2365
  %v2421 = vsel %vm2404, %v2357, %v2367
  %v2422 = vsel %vm2404, %v2359, %v2369
  %v2423 = vsel %vm2404, %v2361, %v2371
  %v2424 = vsel %vm2404, %v2363, %v2373
  %v2425 = vsel %vm2404, %v2345, %v2355
  %v2426 = vsel %vm2404, %v2347, %v2357
  %v2427 = vsel %vm2404, %v2349, %v2359
  %v2428 = vsel %vm2404, %v2351, %v2361
  %v2429 = vsel %vm2404, %v2353, %v2363
  %v2430 = vsel %vm2404, %v2395, %v2345
  %v2431 = vsel %vm2404, %v2397, %v2347
  %v2432 = vsel %vm2404, %v2399, %v2349
  %v2433 = vsel %vm2404, %v2401, %v2351
  %v2434 = vsel %vm2404, %v2403, %v2353
  %s2435 = scalar_lea.vmem %s1, 200
  %v2436 = vld [vmem:[%s2435] sm:$0xf]
  %v2437 = vld [vmem:[%s2435 + $0x4] sm:$0xf]
  %v2438 = vld [vmem:[%s2435 + $0x8] sm:$0xf]
  %v2439 = vld [vmem:[%s2435 + $0xc] sm:$0xf]
  %v2440 = vld [vmem:[%s2435 + $0x10] sm:$0xf]
  %v2441 = vld [vmem:[%s2435 + $0x14] sm:$0xf]
  %v2442 = vld [vmem:[%s2435 + $0x18] sm:$0xf]
  %v2443 = vld [vmem:[%s2435 + $0x1c] sm:$0xf]
  %v2444 = vld [vmem:[%s2435 + $0x20] sm:$0xf]
  %v2445 = vld [vmem:[%s2435 + $0x24] sm:$0xf]
  %v2446 = vpack.c.bf16 %v2426, %v2425
  %v2447 = vpack.c.bf16 %v2421, %v2420
  %v2448 = vpack.c.bf16 %v2416, %v2415
  %v2449 = vpack.c.bf16 %v2411, %v2410
  %v2450 = vpack.c.bf16 %v2406, %v2405
  %v2451 = vpack.c.bf16 %v2431, %v2430
  %v2452 = vpack.c.bf16 %v2428, %v2427
  %v2453 = vpack.c.bf16 %v2423, %v2422
  %v2454 = vpack.c.bf16 %v2418, %v2417
  %v2455 = vpack.c.bf16 %v2413, %v2412
  %v2456 = vpack.c.bf16 %v2408, %v2407
  %v2457 = vpack.c.bf16 %v2433, %v2432
  %v2458 = vpack.c.bf16 %v2429, %v2429
  %v2459 = vpack.c.bf16 %v2424, %v2424
  %v2460 = vpack.c.bf16 %v2419, %v2419
  %v2461 = vpack.c.bf16 %v2414, %v2414
  %v2462 = vpack.c.bf16 %v2409, %v2409
  %v2463 = vpack.c.bf16 %v2434, %v2434
  %v2474 = vunpack.c.l.b16 %v2436
  %v2475 = vunpack.c.l.b16 %v2437
  %v2476 = vunpack.c.l.b16 %v2438
  %v2477 = vunpack.c.l.b16 %v2439
  %v2478 = vunpack.c.l.b16 %v2440
  %v2479 = vunpack.c.l.b16 %v2441
  %v2480 = vunpack.c.l.b16 %v2442
  %v2481 = vunpack.c.l.b16 %v2443
  %v2482 = vunpack.c.l.b16 %v2444
  %v2483 = vunpack.c.l.b16 %v2445
  %v2484 = vpack.c.b16 %v2475, %v2474
  %v2485 = vpack.c.b16 %v2477, %v2476
  %v2486 = vpack.c.b16 %v2479, %v2478
  %v2487 = vpack.c.b16 %v2481, %v2480
  %v2488 = vpack.c.b16 %v2483, %v2482
  %v2490 = vsel %vm217, %v2484, 0
  %v2493 = vsel %vm217, %v2485, 0
  %v2496 = vsel %vm217, %v2486, 0
  %v2499 = vsel %vm217, %v2487, 0
  %v2502 = vsel %vm217, %v2488, 0
  %v2505 = vsel %vm233, %v2458, 0
  %v2508 = vsel %vm233, %v2459, 0
  %v2511 = vsel %vm233, %v2460, 0
  %v2514 = vsel %vm233, %v2461, 0
  %v2517 = vsel %vm233, %v2462, 0
  %v2520 = vsel %vm233, %v2463, 0
  %2522 = vmatprep.subr.bf16.mxu0 %v2447
  %2523 = vmatpush1.bf16.msra.mxu0 %v2446
  %2524 = vmatprep.subr.bf16.mxu0 %v2453
  %2525 = vmatpush1.bf16.msra.mxu0 %v2452
  %2526 = vmatprep.subr.bf16.mxu0 %v2508
  %2527 = vmatpush1.bf16.msra.mxu0 %v2505
  %2528 = vmatprep.subr.bf16.mxu0 0
  %2529 = vmatpush1.bf16.msra.mxu0 0
  %2530 = vmatprep.subr.bf16.mxu0 0
  %2531 = vmatpush1.bf16.msra.mxu0 0
  %2532 = vmatprep.subr.bf16.mxu0 0
  %2533 = vmatpush1.bf16.msra.mxu0 0
  %2534 = vmatprep.subr.bf16.mxu0 0
  %2535 = vmatpush1.bf16.msra.mxu0 0
  %2536 = vmatprep.subr.bf16.mxu0 0
  %2537 = vmatpush1.bf16.msra.mxu0 0
  %2538 = vmatprep.subr.bf16.mxu0 0
  %2539 = vmatpush1.bf16.msra.mxu0 0
  %2540 = vmatprep.subr.bf16.mxu0 0
  %2541 = vmatpush1.bf16.msra.mxu0 0
  %2542 = vmatprep.subr.bf16.mxu0 0
  %2543 = vmatpush1.bf16.msra.mxu0 0
  %2544 = vmatprep.subr.bf16.mxu0 0
  %2545 = vmatpush1.bf16.msra.mxu0 0
  %2546 = vmatprep.subr.bf16.mxu0 0
  %2547 = vmatpush1.bf16.msra.mxu0 0
  %2548 = vmatprep.subr.bf16.mxu0 0
  %2549 = vmatpush1.bf16.msra.mxu0 0
  %2550 = vmatprep.subr.bf16.mxu0 0
  %2551 = vmatpush1.bf16.msra.mxu0 0
  %2552 = vmatprep.subr.bf16.mxu0 0
  %2553 = vmatpush1.bf16.msra.mxu0 0
  %2554 = vmatprep.mubr.bf16.mxu0 0
  %2555 = vmatmul.mubr.bf16.gmra.mrb[0].mxu0 %v2490
  %v2556 = vpop.f32.mrb[0].mxu0
  %v2557 = vadd.f32 0.0, %v2556
  %v2558 = vpop.f32.mrb[0].mxu0
  %v2559 = vadd.f32 0.0, %v2558
  %v2560 = vpop.f32.mrb[0].mxu0
  %v2561 = vadd.f32 0.0, %v2560
  %v2562 = vpop.f32.mrb[0].mxu0
  %v2563 = vadd.f32 0.0, %v2562
  %2564 = vmatprep.mubr.bf16.mxu0 0
  %2565 = vmatmul.mubr.bf16.gmra.mrb[0].mxu0 %v2493
  %v2566 = vpop.f32.mrb[0].mxu0
  %v2567 = vadd.f32 0.0, %v2566
  %v2568 = vpop.f32.mrb[0].mxu0
  %v2569 = vadd.f32 0.0, %v2568
  %v2570 = vpop.f32.mrb[0].mxu0
  %v2571 = vadd.f32 0.0, %v2570
  %v2572 = vpop.f32.mrb[0].mxu0
  %v2573 = vadd.f32 0.0, %v2572
  %2574 = vmatprep.mubr.bf16.mxu0 0
  %2575 = vmatmul.mubr.bf16.gmra.mrb[0].mxu0 %v2496
  %v2576 = vpop.f32.mrb[0].mxu0
  %v2577 = vadd.f32 0.0, %v2576
  %v2578 = vpop.f32.mrb[0].mxu0
  %v2579 = vadd.f32 0.0, %v2578
  %v2580 = vpop.f32.mrb[0].mxu0
  %v2581 = vadd.f32 0.0, %v2580
  %v2582 = vpop.f32.mrb[0].mxu0
  %v2583 = vadd.f32 0.0, %v2582
  %2584 = vmatprep.mubr.bf16.mxu0 0
  %2585 = vmatmul.mubr.bf16.gmra.mrb[0].mxu0 %v2499
  %v2586 = vpop.f32.mrb[0].mxu0
  %v2587 = vadd.f32 0.0, %v2586
  %v2588 = vpop.f32.mrb[0].mxu0
  %v2589 = vadd.f32 0.0, %v2588
  %v2590 = vpop.f32.mrb[0].mxu0
  %v2591 = vadd.f32 0.0, %v2590
  %v2592 = vpop.f32.mrb[0].mxu0
  %v2593 = vadd.f32 0.0, %v2592
  %2594 = vmatprep.mubr.bf16.mxu0 0
  %2595 = vmatmul.mubr.bf16.gmra.mrb[0].mxu0 %v2502
  %v2596 = vpop.f32.mrb[0].mxu0
  %v2597 = vadd.f32 0.0, %v2596
  %v2598 = vpop.f32.mrb[0].mxu0
  %v2599 = vadd.f32 0.0, %v2598
  %v2600 = vpop.f32.mrb[0].mxu0
  %v2601 = vadd.f32 0.0, %v2600
  %v2602 = vpop.f32.mrb[0].mxu0
  %v2603 = vadd.f32 0.0, %v2602
  %2604 = vdwg.mxu0
  %2605 = vmatprep.subr.bf16.mxu0 %v2449
  %2606 = vmatpush1.bf16.msra.mxu0 %v2448
  %2607 = vmatprep.subr.bf16.mxu0 %v2455
  %2608 = vmatpush1.bf16.msra.mxu0 %v2454
  %2609 = vmatprep.subr.bf16.mxu0 %v2514
  %2610 = vmatpush1.bf16.msra.mxu0 %v2511
  %2611 = vmatprep.subr.bf16.mxu0 0
  %2612 = vmatpush1.bf16.msra.mxu0 0
  %2613 = vmatprep.subr.bf16.mxu0 0
  %2614 = vmatpush1.bf16.msra.mxu0 0
  %2615 = vmatprep.subr.bf16.mxu0 0
  %2616 = vmatpush1.bf16.msra.mxu0 0
  %2617 = vmatprep.subr.bf16.mxu0 0
  %2618 = vmatpush1.bf16.msra.mxu0 0
  %2619 = vmatprep.subr.bf16.mxu0 0
  %2620 = vmatpush1.bf16.msra.mxu0 0
  %2621 = vmatprep.subr.bf16.mxu0 0
  %2622 = vmatpush1.bf16.msra.mxu0 0
  %2623 = vmatprep.subr.bf16.mxu0 0
  %2624 = vmatpush1.bf16.msra.mxu0 0
  %2625 = vmatprep.subr.bf16.mxu0 0
  %2626 = vmatpush1.bf16.msra.mxu0 0
  %2627 = vmatprep.subr.bf16.mxu0 0
  %2628 = vmatpush1.bf16.msra.mxu0 0
  %2629 = vmatprep.subr.bf16.mxu0 0
  %2630 = vmatpush1.bf16.msra.mxu0 0
  %2631 = vmatprep.subr.bf16.mxu0 0
  %2632 = vmatpush1.bf16.msra.mxu0 0
  %2633 = vmatprep.subr.bf16.mxu0 0
  %2634 = vmatpush1.bf16.msra.mxu0 0
  %2635 = vmatprep.subr.bf16.mxu0 0
  %2636 = vmatpush1.bf16.msra.mxu0 0
  %2637 = vmatprep.mubr.bf16.mxu0 0
  %2638 = vmatmul.mubr.bf16.gmra.mrb[0].mxu0 %v2490
  %v2639 = vpop.f32.mrb[0].mxu0
  %v2640 = vadd.f32 0.0, %v2639
  %v2641 = vpop.f32.mrb[0].mxu0
  %v2642 = vadd.f32 0.0, %v2641
  %v2643 = vpop.f32.mrb[0].mxu0
  %v2644 = vadd.f32 0.0, %v2643
  %v2645 = vpop.f32.mrb[0].mxu0
  %v2646 = vadd.f32 0.0, %v2645
  %2647 = vmatprep.mubr.bf16.mxu0 0
  %2648 = vmatmul.mubr.bf16.gmra.mrb[0].mxu0 %v2493
  %v2649 = vpop.f32.mrb[0].mxu0
  %v2650 = vadd.f32 0.0, %v2649
  %v2651 = vpop.f32.mrb[0].mxu0
  %v2652 = vadd.f32 0.0, %v2651
  %v2653 = vpop.f32.mrb[0].mxu0
  %v2654 = vadd.f32 0.0, %v2653
  %v2655 = vpop.f32.mrb[0].mxu0
  %v2656 = vadd.f32 0.0, %v2655
  %2657 = vmatprep.mubr.bf16.mxu0 0
  %2658 = vmatmul.mubr.bf16.gmra.mrb[0].mxu0 %v2496
  %v2659 = vpop.f32.mrb[0].mxu0
  %v2660 = vadd.f32 0.0, %v2659
  %v2661 = vpop.f32.mrb[0].mxu0
  %v2662 = vadd.f32 0.0, %v2661
  %v2663 = vpop.f32.mrb[0].mxu0
  %v2664 = vadd.f32 0.0, %v2663
  %v2665 = vpop.f32.mrb[0].mxu0
  %v2666 = vadd.f32 0.0, %v2665
  %2667 = vmatprep.mubr.bf16.mxu0 0
  %2668 = vmatmul.mubr.bf16.gmra.mrb[0].mxu0 %v2499
  %v2669 = vpop.f32.mrb[0].mxu0
  %v2670 = vadd.f32 0.0, %v2669
  %v2671 = vpop.f32.mrb[0].mxu0
  %v2672 = vadd.f32 0.0, %v2671
  %v2673 = vpop.f32.mrb[0].mxu0
  %v2674 = vadd.f32 0.0, %v2673
  %v2675 = vpop.f32.mrb[0].mxu0
  %v2676 = vadd.f32 0.0, %v2675
  %2677 = vmatprep.mubr.bf16.mxu0 0
  %2678 = vmatmul.mubr.bf16.gmra.mrb[0].mxu0 %v2502
  %v2679 = vpop.f32.mrb[0].mxu0
  %v2680 = vadd.f32 0.0, %v2679
  %v2681 = vpop.f32.mrb[0].mxu0
  %v2682 = vadd.f32 0.0, %v2681
  %v2683 = vpop.f32.mrb[0].mxu0
  %v2684 = vadd.f32 0.0, %v2683
  %v2685 = vpop.f32.mrb[0].mxu0
  %v2686 = vadd.f32 0.0, %v2685
  %2687 = vdwg.mxu0
  %2688 = vmatprep.subr.bf16.mxu0 %v2451
  %2689 = vmatpush1.bf16.msra.mxu0 %v2450
  %2690 = vmatprep.subr.bf16.mxu0 %v2457
  %2691 = vmatpush1.bf16.msra.mxu0 %v2456
  %2692 = vmatprep.subr.bf16.mxu0 %v2520
  %2693 = vmatpush1.bf16.msra.mxu0 %v2517
  %2694 = vmatprep.subr.bf16.mxu0 0
  %2695 = vmatpush1.bf16.msra.mxu0 0
  %2696 = vmatprep.subr.bf16.mxu0 0
  %2697 = vmatpush1.bf16.msra.mxu0 0
  %2698 = vmatprep.subr.bf16.mxu0 0
  %2699 = vmatpush1.bf16.msra.mxu0 0
  %2700 = vmatprep.subr.bf16.mxu0 0
  %2701 = vmatpush1.bf16.msra.mxu0 0
  %2702 = vmatprep.subr.bf16.mxu0 0
  %2703 = vmatpush1.bf16.msra.mxu0 0
  %2704 = vmatprep.subr.bf16.mxu0 0
  %2705 = vmatpush1.bf16.msra.mxu0 0
  %2706 = vmatprep.subr.bf16.mxu0 0
  %2707 = vmatpush1.bf16.msra.mxu0 0
  %2708 = vmatprep.subr.bf16.mxu0 0
  %2709 = vmatpush1.bf16.msra.mxu0 0
  %2710 = vmatprep.subr.bf16.mxu0 0
  %2711 = vmatpush1.bf16.msra.mxu0 0
  %2712 = vmatprep.subr.bf16.mxu0 0
  %2713 = vmatpush1.bf16.msra.mxu0 0
  %2714 = vmatprep.subr.bf16.mxu0 0
  %2715 = vmatpush1.bf16.msra.mxu0 0
  %2716 = vmatprep.subr.bf16.mxu0 0
  %2717 = vmatpush1.bf16.msra.mxu0 0
  %2718 = vmatprep.subr.bf16.mxu0 0
  %2719 = vmatpush1.bf16.msra.mxu0 0
  %2720 = vmatprep.mubr.bf16.mxu0 0
  %2721 = vmatmul.mubr.bf16.gmra.mrb[0].mxu0 %v2490
  %v2722 = vpop.f32.mrb[0].mxu0
  %v2723 = vadd.f32 0.0, %v2722
  %v2724 = vpop.f32.mrb[0].mxu0
  %v2725 = vadd.f32 0.0, %v2724
  %v2726 = vpop.f32.mrb[0].mxu0
  %v2727 = vadd.f32 0.0, %v2726
  %v2728 = vpop.f32.mrb[0].mxu0
  %v2729 = vadd.f32 0.0, %v2728
  %2730 = vmatprep.mubr.bf16.mxu0 0
  %2731 = vmatmul.mubr.bf16.gmra.mrb[0].mxu0 %v2493
  %v2732 = vpop.f32.mrb[0].mxu0
  %v2733 = vadd.f32 0.0, %v2732
  %v2734 = vpop.f32.mrb[0].mxu0
  %v2735 = vadd.f32 0.0, %v2734
  %v2736 = vpop.f32.mrb[0].mxu0
  %v2737 = vadd.f32 0.0, %v2736
  %v2738 = vpop.f32.mrb[0].mxu0
  %v2739 = vadd.f32 0.0, %v2738
  %2740 = vmatprep.mubr.bf16.mxu0 0
  %2741 = vmatmul.mubr.bf16.gmra.mrb[0].mxu0 %v2496
  %v2742 = vpop.f32.mrb[0].mxu0
  %v2743 = vadd.f32 0.0, %v2742
  %v2744 = vpop.f32.mrb[0].mxu0
  %v2745 = vadd.f32 0.0, %v2744
  %v2746 = vpop.f32.mrb[0].mxu0
  %v2747 = vadd.f32 0.0, %v2746
  %v2748 = vpop.f32.mrb[0].mxu0
  %v2749 = vadd.f32 0.0, %v2748
  %2750 = vmatprep.mubr.bf16.mxu0 0
  %2751 = vmatmul.mubr.bf16.gmra.mrb[0].mxu0 %v2499
  %v2752 = vpop.f32.mrb[0].mxu0
  %v2753 = vadd.f32 0.0, %v2752
  %v2754 = vpop.f32.mrb[0].mxu0
  %v2755 = vadd.f32 0.0, %v2754
  %v2756 = vpop.f32.mrb[0].mxu0
  %v2757 = vadd.f32 0.0, %v2756
  %v2758 = vpop.f32.mrb[0].mxu0
  %v2759 = vadd.f32 0.0, %v2758
  %2760 = vmatprep.mubr.bf16.mxu0 0
  %2761 = vmatmul.mubr.bf16.gmra.mrb[0].mxu0 %v2502
  %v2762 = vpop.f32.mrb[0].mxu0
  %v2763 = vadd.f32 0.0, %v2762
  %v2764 = vpop.f32.mrb[0].mxu0
  %v2765 = vadd.f32 0.0, %v2764
  %v2766 = vpop.f32.mrb[0].mxu0
  %v2767 = vadd.f32 0.0, %v2766
  %v2768 = vpop.f32.mrb[0].mxu0
  %v2769 = vadd.f32 0.0, %v2768
  %2770 = vdwg.mxu0
  %v2771 = vadd.f32 %v2284, %v2557
  %v2772 = vadd.f32 %v2285, %v2559
  %v2773 = vadd.f32 %v2286, %v2640
  %v2774 = vadd.f32 %v2287, %v2642
  %v2775 = vadd.f32 %v2288, %v2723
  %v2776 = vadd.f32 %v2289, %v2725
  %v2777 = vadd.f32 %v2290, %v2561
  %v2778 = vadd.f32 %v2291, %v2563
  %v2779 = vadd.f32 %v2292, %v2644
  %v2780 = vadd.f32 %v2293, %v2646
  %v2781 = vadd.f32 %v2294, %v2727
  %v2782 = vadd.f32 %v2295, %v2729
  %v2783 = vadd.f32 %v2296, %v2567
  %v2784 = vadd.f32 %v2297, %v2569
  %v2785 = vadd.f32 %v2298, %v2650
  %v2786 = vadd.f32 %v2299, %v2652
  %v2787 = vadd.f32 %v2300, %v2733
  %v2788 = vadd.f32 %v2301, %v2735
  %v2789 = vadd.f32 %v2302, %v2571
  %v2790 = vadd.f32 %v2303, %v2573
  %v2791 = vadd.f32 %v2304, %v2654
  %v2792 = vadd.f32 %v2305, %v2656
  %v2793 = vadd.f32 %v2306, %v2737
  %v2794 = vadd.f32 %v2307, %v2739
  %v2795 = vadd.f32 %v2308, %v2577
  %v2796 = vadd.f32 %v2309, %v2579
  %v2797 = vadd.f32 %v2310, %v2660
  %v2798 = vadd.f32 %v2311, %v2662
  %v2799 = vadd.f32 %v2312, %v2743
  %v2800 = vadd.f32 %v2313, %v2745
  %v2801 = vadd.f32 %v2314, %v2581
  %v2802 = vadd.f32 %v2315, %v2583
  %v2803 = vadd.f32 %v2316, %v2664
  %v2804 = vadd.f32 %v2317, %v2666
  %v2805 = vadd.f32 %v2318, %v2747
  %v2806 = vadd.f32 %v2319, %v2749
  %v2807 = vadd.f32 %v2320, %v2587
  %v2808 = vadd.f32 %v2321, %v2589
  %v2809 = vadd.f32 %v2322, %v2670
  %v2810 = vadd.f32 %v2323, %v2672
  %v2811 = vadd.f32 %v2324, %v2753
  %v2812 = vadd.f32 %v2325, %v2755
  %v2813 = vadd.f32 %v2326, %v2591
  %v2814 = vadd.f32 %v2327, %v2593
  %v2815 = vadd.f32 %v2328, %v2674
  %v2816 = vadd.f32 %v2329, %v2676
  %v2817 = vadd.f32 %v2330, %v2757
  %v2818 = vadd.f32 %v2331, %v2759
  %v2819 = vadd.f32 %v2332, %v2597
  %v2820 = vadd.f32 %v2333, %v2599
  %v2821 = vadd.f32 %v2334, %v2680
  %v2822 = vadd.f32 %v2335, %v2682
  %v2823 = vadd.f32 %v2336, %v2763
  %v2824 = vadd.f32 %v2337, %v2765
  %v2825 = vadd.f32 %v2338, %v2601
  %v2826 = vadd.f32 %v2339, %v2603
  %v2827 = vadd.f32 %v2340, %v2684
  %v2828 = vadd.f32 %v2341, %v2686
  %v2829 = vadd.f32 %v2342, %v2767
  %v2830 = vadd.f32 %v2343, %v2769
  %2831 = vrot.lane.b32.xlu0 %v30, 92
  %v2832 = vpop.permute.xlu0 %2831
  %2833 = vrot.lane.b32.xlu0 %v36, 92
  %v2834 = vpop.permute.xlu0 %2833
  %2835 = vrot.lane.b32.xlu0 %v42, 92
  %v2836 = vpop.permute.xlu0 %2835
  %2837 = vrot.lane.b32.xlu0 %v48, 92
  %v2838 = vpop.permute.xlu0 %2837
  %2839 = vrot.lane.b32.xlu0 %v54, 92
  %v2840 = vpop.permute.xlu0 %2839
  %2841 = vrot.lane.b32.xlu0 %v31, 92
  %v2842 = vpop.permute.xlu0 %2841
  %2843 = vrot.lane.b32.xlu0 %v37, 92
  %v2844 = vpop.permute.xlu0 %2843
  %2845 = vrot.lane.b32.xlu0 %v43, 92
  %v2846 = vpop.permute.xlu0 %2845
  %2847 = vrot.lane.b32.xlu0 %v49, 92
  %v2848 = vpop.permute.xlu0 %2847
  %2849 = vrot.lane.b32.xlu0 %v55, 92
  %v2850 = vpop.permute.xlu0 %2849
  %2851 = vrot.lane.b32.xlu0 %v32, 92
  %v2852 = vpop.permute.xlu0 %2851
  %2853 = vrot.lane.b32.xlu0 %v38, 92
  %v2854 = vpop.permute.xlu0 %2853
  %2855 = vrot.lane.b32.xlu0 %v44, 92
  %v2856 = vpop.permute.xlu0 %2855
  %2857 = vrot.lane.b32.xlu0 %v50, 92
  %v2858 = vpop.permute.xlu0 %2857
  %2859 = vrot.lane.b32.xlu0 %v56, 92
  %v2860 = vpop.permute.xlu0 %2859
  %2861 = vrot.lane.b32.xlu0 %v33, 92
  %v2862 = vpop.permute.xlu0 %2861
  %2863 = vrot.lane.b32.xlu0 %v39, 92
  %v2864 = vpop.permute.xlu0 %2863
  %2865 = vrot.lane.b32.xlu0 %v45, 92
  %v2866 = vpop.permute.xlu0 %2865
  %2867 = vrot.lane.b32.xlu0 %v51, 92
  %v2868 = vpop.permute.xlu0 %2867
  %2869 = vrot.lane.b32.xlu0 %v57, 92
  %v2870 = vpop.permute.xlu0 %2869
  %2871 = vrot.lane.b32.xlu0 %v34, 92
  %v2872 = vpop.permute.xlu0 %2871
  %2873 = vrot.lane.b32.xlu0 %v40, 92
  %v2874 = vpop.permute.xlu0 %2873
  %2875 = vrot.lane.b32.xlu0 %v46, 92
  %v2876 = vpop.permute.xlu0 %2875
  %2877 = vrot.lane.b32.xlu0 %v52, 92
  %v2878 = vpop.permute.xlu0 %2877
  %2879 = vrot.lane.b32.xlu0 %v58, 92
  %v2880 = vpop.permute.xlu0 %2879
  %2881 = vrot.lane.b32.xlu0 %v35, 92
  %v2882 = vpop.permute.xlu0 %2881
  %2883 = vrot.lane.b32.xlu0 %v41, 92
  %v2884 = vpop.permute.xlu0 %2883
  %2885 = vrot.lane.b32.xlu0 %v47, 92
  %v2886 = vpop.permute.xlu0 %2885
  %2887 = vrot.lane.b32.xlu0 %v53, 92
  %v2888 = vpop.permute.xlu0 %2887
  %2889 = vrot.lane.b32.xlu0 %v59, 92
  %v2890 = vpop.permute.xlu0 %2889
  %vm2891 = vcmp.lt.s32.totalorder %v131, 92
  %v2892 = vsel %vm2891, %v2872, %v2882
  %v2893 = vsel %vm2891, %v2874, %v2884
  %v2894 = vsel %vm2891, %v2876, %v2886
  %v2895 = vsel %vm2891, %v2878, %v2888
  %v2896 = vsel %vm2891, %v2880, %v2890
  %v2897 = vsel %vm2891, %v2862, %v2872
  %v2898 = vsel %vm2891, %v2864, %v2874
  %v2899 = vsel %vm2891, %v2866, %v2876
  %v2900 = vsel %vm2891, %v2868, %v2878
  %v2901 = vsel %vm2891, %v2870, %v2880
  %v2902 = vsel %vm2891, %v2852, %v2862
  %v2903 = vsel %vm2891, %v2854, %v2864
  %v2904 = vsel %vm2891, %v2856, %v2866
  %v2905 = vsel %vm2891, %v2858, %v2868
  %v2906 = vsel %vm2891, %v2860, %v2870
  %v2907 = vsel %vm2891, %v2842, %v2852
  %v2908 = vsel %vm2891, %v2844, %v2854
  %v2909 = vsel %vm2891, %v2846, %v2856
  %v2910 = vsel %vm2891, %v2848, %v2858
  %v2911 = vsel %vm2891, %v2850, %v2860
  %v2912 = vsel %vm2891, %v2832, %v2842
  %v2913 = vsel %vm2891, %v2834, %v2844
  %v2914 = vsel %vm2891, %v2836, %v2846
  %v2915 = vsel %vm2891, %v2838, %v2848
  %v2916 = vsel %vm2891, %v2840, %v2850
  %v2917 = vsel %vm2891, %v2882, %v2832
  %v2918 = vsel %vm2891, %v2884, %v2834
  %v2919 = vsel %vm2891, %v2886, %v2836
  %v2920 = vsel %vm2891, %v2888, %v2838
  %v2921 = vsel %vm2891, %v2890, %v2840
  %s2922 = scalar_lea.vmem %s1, 240
  %v2923 = vld [vmem:[%s2922] sm:$0xf]
  %v2924 = vld [vmem:[%s2922 + $0x4] sm:$0xf]
  %v2925 = vld [vmem:[%s2922 + $0x8] sm:$0xf]
  %v2926 = vld [vmem:[%s2922 + $0xc] sm:$0xf]
  %v2927 = vld [vmem:[%s2922 + $0x10] sm:$0xf]
  %v2928 = vld [vmem:[%s2922 + $0x14] sm:$0xf]
  %v2929 = vld [vmem:[%s2922 + $0x18] sm:$0xf]
  %v2930 = vld [vmem:[%s2922 + $0x1c] sm:$0xf]
  %v2931 = vld [vmem:[%s2922 + $0x20] sm:$0xf]
  %v2932 = vld [vmem:[%s2922 + $0x24] sm:$0xf]
  %v2933 = vpack.c.bf16 %v2913, %v2912
  %v2934 = vpack.c.bf16 %v2908, %v2907
  %v2935 = vpack.c.bf16 %v2903, %v2902
  %v2936 = vpack.c.bf16 %v2898, %v2897
  %v2937 = vpack.c.bf16 %v2893, %v2892
  %v2938 = vpack.c.bf16 %v2918, %v2917
  %v2939 = vpack.c.bf16 %v2915, %v2914
  %v2940 = vpack.c.bf16 %v2910, %v2909
  %v2941 = vpack.c.bf16 %v2905, %v2904
  %v2942 = vpack.c.bf16 %v2900, %v2899
  %v2943 = vpack.c.bf16 %v2895, %v2894
  %v2944 = vpack.c.bf16 %v2920, %v2919
  %v2945 = vpack.c.bf16 %v2916, %v2916
  %v2946 = vpack.c.bf16 %v2911, %v2911
  %v2947 = vpack.c.bf16 %v2906, %v2906
  %v2948 = vpack.c.bf16 %v2901, %v2901
  %v2949 = vpack.c.bf16 %v2896, %v2896
  %v2950 = vpack.c.bf16 %v2921, %v2921
  %v2961 = vunpack.c.l.b16 %v2923
  %v2962 = vunpack.c.l.b16 %v2924
  %v2963 = vunpack.c.l.b16 %v2925
  %v2964 = vunpack.c.l.b16 %v2926
  %v2965 = vunpack.c.l.b16 %v2927
  %v2966 = vunpack.c.l.b16 %v2928
  %v2967 = vunpack.c.l.b16 %v2929
  %v2968 = vunpack.c.l.b16 %v2930
  %v2969 = vunpack.c.l.b16 %v2931
  %v2970 = vunpack.c.l.b16 %v2932
  %v2971 = vpack.c.b16 %v2962, %v2961
  %v2972 = vpack.c.b16 %v2964, %v2963
  %v2973 = vpack.c.b16 %v2966, %v2965
  %v2974 = vpack.c.b16 %v2968, %v2967
  %v2975 = vpack.c.b16 %v2970, %v2969
  %v2977 = vsel %vm217, %v2971, 0
  %v2980 = vsel %vm217, %v2972, 0
  %v2983 = vsel %vm217, %v2973, 0
  %v2986 = vsel %vm217, %v2974, 0
  %v2989 = vsel %vm217, %v2975, 0
  %v2992 = vsel %vm233, %v2945, 0
  %v2995 = vsel %vm233, %v2946, 0
  %v2998 = vsel %vm233, %v2947, 0
  %v3001 = vsel %vm233, %v2948, 0
  %v3004 = vsel %vm233, %v2949, 0
  %v3007 = vsel %vm233, %v2950, 0
  %3009 = vmatprep.subr.bf16.mxu0 %v2934
  %3010 = vmatpush1.bf16.msra.mxu0 %v2933
  %3011 = vmatprep.subr.bf16.mxu0 %v2940
  %3012 = vmatpush1.bf16.msra.mxu0 %v2939
  %3013 = vmatprep.subr.bf16.mxu0 %v2995
  %3014 = vmatpush1.bf16.msra.mxu0 %v2992
  %3015 = vmatprep.subr.bf16.mxu0 0
  %3016 = vmatpush1.bf16.msra.mxu0 0
  %3017 = vmatprep.subr.bf16.mxu0 0
  %3018 = vmatpush1.bf16.msra.mxu0 0
  %3019 = vmatprep.subr.bf16.mxu0 0
  %3020 = vmatpush1.bf16.msra.mxu0 0
  %3021 = vmatprep.subr.bf16.mxu0 0
  %3022 = vmatpush1.bf16.msra.mxu0 0
  %3023 = vmatprep.subr.bf16.mxu0 0
  %3024 = vmatpush1.bf16.msra.mxu0 0
  %3025 = vmatprep.subr.bf16.mxu0 0
  %3026 = vmatpush1.bf16.msra.mxu0 0
  %3027 = vmatprep.subr.bf16.mxu0 0
  %3028 = vmatpush1.bf16.msra.mxu0 0
  %3029 = vmatprep.subr.bf16.mxu0 0
  %3030 = vmatpush1.bf16.msra.mxu0 0
  %3031 = vmatprep.subr.bf16.mxu0 0
  %3032 = vmatpush1.bf16.msra.mxu0 0
  %3033 = vmatprep.subr.bf16.mxu0 0
  %3034 = vmatpush1.bf16.msra.mxu0 0
  %3035 = vmatprep.subr.bf16.mxu0 0
  %3036 = vmatpush1.bf16.msra.mxu0 0
  %3037 = vmatprep.subr.bf16.mxu0 0
  %3038 = vmatpush1.bf16.msra.mxu0 0
  %3039 = vmatprep.subr.bf16.mxu0 0
  %3040 = vmatpush1.bf16.msra.mxu0 0
  %3041 = vmatprep.mubr.bf16.mxu0 0
  %3042 = vmatmul.mubr.bf16.gmra.mrb[0].mxu0 %v2977
  %v3043 = vpop.f32.mrb[0].mxu0
  %v3044 = vadd.f32 0.0, %v3043
  %v3045 = vpop.f32.mrb[0].mxu0
  %v3046 = vadd.f32 0.0, %v3045
  %v3047 = vpop.f32.mrb[0].mxu0
  %v3048 = vadd.f32 0.0, %v3047
  %v3049 = vpop.f32.mrb[0].mxu0
  %v3050 = vadd.f32 0.0, %v3049
  %3051 = vmatprep.mubr.bf16.mxu0 0
  %3052 = vmatmul.mubr.bf16.gmra.mrb[0].mxu0 %v2980
  %v3053 = vpop.f32.mrb[0].mxu0
  %v3054 = vadd.f32 0.0, %v3053
  %v3055 = vpop.f32.mrb[0].mxu0
  %v3056 = vadd.f32 0.0, %v3055
  %v3057 = vpop.f32.mrb[0].mxu0
  %v3058 = vadd.f32 0.0, %v3057
  %v3059 = vpop.f32.mrb[0].mxu0
  %v3060 = vadd.f32 0.0, %v3059
  %3061 = vmatprep.mubr.bf16.mxu0 0
  %3062 = vmatmul.mubr.bf16.gmra.mrb[0].mxu0 %v2983
  %v3063 = vpop.f32.mrb[0].mxu0
  %v3064 = vadd.f32 0.0, %v3063
  %v3065 = vpop.f32.mrb[0].mxu0
  %v3066 = vadd.f32 0.0, %v3065
  %v3067 = vpop.f32.mrb[0].mxu0
  %v3068 = vadd.f32 0.0, %v3067
  %v3069 = vpop.f32.mrb[0].mxu0
  %v3070 = vadd.f32 0.0, %v3069
  %3071 = vmatprep.mubr.bf16.mxu0 0
  %3072 = vmatmul.mubr.bf16.gmra.mrb[0].mxu0 %v2986
  %v3073 = vpop.f32.mrb[0].mxu0
  %v3074 = vadd.f32 0.0, %v3073
  %v3075 = vpop.f32.mrb[0].mxu0
  %v3076 = vadd.f32 0.0, %v3075
  %v3077 = vpop.f32.mrb[0].mxu0
  %v3078 = vadd.f32 0.0, %v3077
  %v3079 = vpop.f32.mrb[0].mxu0
  %v3080 = vadd.f32 0.0, %v3079
  %3081 = vmatprep.mubr.bf16.mxu0 0
  %3082 = vmatmul.mubr.bf16.gmra.mrb[0].mxu0 %v2989
  %v3083 = vpop.f32.mrb[0].mxu0
  %v3084 = vadd.f32 0.0, %v3083
  %v3085 = vpop.f32.mrb[0].mxu0
  %v3086 = vadd.f32 0.0, %v3085
  %v3087 = vpop.f32.mrb[0].mxu0
  %v3088 = vadd.f32 0.0, %v3087
  %v3089 = vpop.f32.mrb[0].mxu0
  %v3090 = vadd.f32 0.0, %v3089
  %3091 = vdwg.mxu0
  %3092 = vmatprep.subr.bf16.mxu0 %v2936
  %3093 = vmatpush1.bf16.msra.mxu0 %v2935
  %3094 = vmatprep.subr.bf16.mxu0 %v2942
  %3095 = vmatpush1.bf16.msra.mxu0 %v2941
  %3096 = vmatprep.subr.bf16.mxu0 %v3001
  %3097 = vmatpush1.bf16.msra.mxu0 %v2998
  %3098 = vmatprep.subr.bf16.mxu0 0
  %3099 = vmatpush1.bf16.msra.mxu0 0
  %3100 = vmatprep.subr.bf16.mxu0 0
  %3101 = vmatpush1.bf16.msra.mxu0 0
  %3102 = vmatprep.subr.bf16.mxu0 0
  %3103 = vmatpush1.bf16.msra.mxu0 0
  %3104 = vmatprep.subr.bf16.mxu0 0
  %3105 = vmatpush1.bf16.msra.mxu0 0
  %3106 = vmatprep.subr.bf16.mxu0 0
  %3107 = vmatpush1.bf16.msra.mxu0 0
  %3108 = vmatprep.subr.bf16.mxu0 0
  %3109 = vmatpush1.bf16.msra.mxu0 0
  %3110 = vmatprep.subr.bf16.mxu0 0
  %3111 = vmatpush1.bf16.msra.mxu0 0
  %3112 = vmatprep.subr.bf16.mxu0 0
  %3113 = vmatpush1.bf16.msra.mxu0 0
  %3114 = vmatprep.subr.bf16.mxu0 0
  %3115 = vmatpush1.bf16.msra.mxu0 0
  %3116 = vmatprep.subr.bf16.mxu0 0
  %3117 = vmatpush1.bf16.msra.mxu0 0
  %3118 = vmatprep.subr.bf16.mxu0 0
  %3119 = vmatpush1.bf16.msra.mxu0 0
  %3120 = vmatprep.subr.bf16.mxu0 0
  %3121 = vmatpush1.bf16.msra.mxu0 0
  %3122 = vmatprep.subr.bf16.mxu0 0
  %3123 = vmatpush1.bf16.msra.mxu0 0
  %3124 = vmatprep.mubr.bf16.mxu0 0
  %3125 = vmatmul.mubr.bf16.gmra.mrb[0].mxu0 %v2977
  %v3126 = vpop.f32.mrb[0].mxu0
  %v3127 = vadd.f32 0.0, %v3126
  %v3128 = vpop.f32.mrb[0].mxu0
  %v3129 = vadd.f32 0.0, %v3128
  %v3130 = vpop.f32.mrb[0].mxu0
  %v3131 = vadd.f32 0.0, %v3130
  %v3132 = vpop.f32.mrb[0].mxu0
  %v3133 = vadd.f32 0.0, %v3132
  %3134 = vmatprep.mubr.bf16.mxu0 0
  %3135 = vmatmul.mubr.bf16.gmra.mrb[0].mxu0 %v2980
  %v3136 = vpop.f32.mrb[0].mxu0
  %v3137 = vadd.f32 0.0, %v3136
  %v3138 = vpop.f32.mrb[0].mxu0
  %v3139 = vadd.f32 0.0, %v3138
  %v3140 = vpop.f32.mrb[0].mxu0
  %v3141 = vadd.f32 0.0, %v3140
  %v3142 = vpop.f32.mrb[0].mxu0
  %v3143 = vadd.f32 0.0, %v3142
  %3144 = vmatprep.mubr.bf16.mxu0 0
  %3145 = vmatmul.mubr.bf16.gmra.mrb[0].mxu0 %v2983
  %v3146 = vpop.f32.mrb[0].mxu0
  %v3147 = vadd.f32 0.0, %v3146
  %v3148 = vpop.f32.mrb[0].mxu0
  %v3149 = vadd.f32 0.0, %v3148
  %v3150 = vpop.f32.mrb[0].mxu0
  %v3151 = vadd.f32 0.0, %v3150
  %v3152 = vpop.f32.mrb[0].mxu0
  %v3153 = vadd.f32 0.0, %v3152
  %3154 = vmatprep.mubr.bf16.mxu0 0
  %3155 = vmatmul.mubr.bf16.gmra.mrb[0].mxu0 %v2986
  %v3156 = vpop.f32.mrb[0].mxu0
  %v3157 = vadd.f32 0.0, %v3156
  %v3158 = vpop.f32.mrb[0].mxu0
  %v3159 = vadd.f32 0.0, %v3158
  %v3160 = vpop.f32.mrb[0].mxu0
  %v3161 = vadd.f32 0.0, %v3160
  %v3162 = vpop.f32.mrb[0].mxu0
  %v3163 = vadd.f32 0.0, %v3162
  %3164 = vmatprep.mubr.bf16.mxu0 0
  %3165 = vmatmul.mubr.bf16.gmra.mrb[0].mxu0 %v2989
  %v3166 = vpop.f32.mrb[0].mxu0
  %v3167 = vadd.f32 0.0, %v3166
  %v3168 = vpop.f32.mrb[0].mxu0
  %v3169 = vadd.f32 0.0, %v3168
  %v3170 = vpop.f32.mrb[0].mxu0
  %v3171 = vadd.f32 0.0, %v3170
  %v3172 = vpop.f32.mrb[0].mxu0
  %v3173 = vadd.f32 0.0, %v3172
  %3174 = vdwg.mxu0
  %3175 = vmatprep.subr.bf16.mxu0 %v2938
  %3176 = vmatpush1.bf16.msra.mxu0 %v2937
  %3177 = vmatprep.subr.bf16.mxu0 %v2944
  %3178 = vmatpush1.bf16.msra.mxu0 %v2943
  %3179 = vmatprep.subr.bf16.mxu0 %v3007
  %3180 = vmatpush1.bf16.msra.mxu0 %v3004
  %3181 = vmatprep.subr.bf16.mxu0 0
  %3182 = vmatpush1.bf16.msra.mxu0 0
  %3183 = vmatprep.subr.bf16.mxu0 0
  %3184 = vmatpush1.bf16.msra.mxu0 0
  %3185 = vmatprep.subr.bf16.mxu0 0
  %3186 = vmatpush1.bf16.msra.mxu0 0
  %3187 = vmatprep.subr.bf16.mxu0 0
  %3188 = vmatpush1.bf16.msra.mxu0 0
  %3189 = vmatprep.subr.bf16.mxu0 0
  %3190 = vmatpush1.bf16.msra.mxu0 0
  %3191 = vmatprep.subr.bf16.mxu0 0
  %3192 = vmatpush1.bf16.msra.mxu0 0
  %3193 = vmatprep.subr.bf16.mxu0 0
  %3194 = vmatpush1.bf16.msra.mxu0 0
  %3195 = vmatprep.subr.bf16.mxu0 0
  %3196 = vmatpush1.bf16.msra.mxu0 0
  %3197 = vmatprep.subr.bf16.mxu0 0
  %3198 = vmatpush1.bf16.msra.mxu0 0
  %3199 = vmatprep.subr.bf16.mxu0 0
  %3200 = vmatpush1.bf16.msra.mxu0 0
  %3201 = vmatprep.subr.bf16.mxu0 0
  %3202 = vmatpush1.bf16.msra.mxu0 0
  %3203 = vmatprep.subr.bf16.mxu0 0
  %3204 = vmatpush1.bf16.msra.mxu0 0
  %3205 = vmatprep.subr.bf16.mxu0 0
  %3206 = vmatpush1.bf16.msra.mxu0 0
  %3207 = vmatprep.mubr.bf16.mxu0 0
  %3208 = vmatmul.mubr.bf16.gmra.mrb[0].mxu0 %v2977
  %v3209 = vpop.f32.mrb[0].mxu0
  %v3210 = vadd.f32 0.0, %v3209
  %v3211 = vpop.f32.mrb[0].mxu0
  %v3212 = vadd.f32 0.0, %v3211
  %v3213 = vpop.f32.mrb[0].mxu0
  %v3214 = vadd.f32 0.0, %v3213
  %v3215 = vpop.f32.mrb[0].mxu0
  %v3216 = vadd.f32 0.0, %v3215
  %3217 = vmatprep.mubr.bf16.mxu0 0
  %3218 = vmatmul.mubr.bf16.gmra.mrb[0].mxu0 %v2980
  %v3219 = vpop.f32.mrb[0].mxu0
  %v3220 = vadd.f32 0.0, %v3219
  %v3221 = vpop.f32.mrb[0].mxu0
  %v3222 = vadd.f32 0.0, %v3221
  %v3223 = vpop.f32.mrb[0].mxu0
  %v3224 = vadd.f32 0.0, %v3223
  %v3225 = vpop.f32.mrb[0].mxu0
  %v3226 = vadd.f32 0.0, %v3225
  %3227 = vmatprep.mubr.bf16.mxu0 0
  %3228 = vmatmul.mubr.bf16.gmra.mrb[0].mxu0 %v2983
  %v3229 = vpop.f32.mrb[0].mxu0
  %v3230 = vadd.f32 0.0, %v3229
  %v3231 = vpop.f32.mrb[0].mxu0
  %v3232 = vadd.f32 0.0, %v3231
  %v3233 = vpop.f32.mrb[0].mxu0
  %v3234 = vadd.f32 0.0, %v3233
  %v3235 = vpop.f32.mrb[0].mxu0
  %v3236 = vadd.f32 0.0, %v3235
  %3237 = vmatprep.mubr.bf16.mxu0 0
  %3238 = vmatmul.mubr.bf16.gmra.mrb[0].mxu0 %v2986
  %v3239 = vpop.f32.mrb[0].mxu0
  %v3240 = vadd.f32 0.0, %v3239
  %v3241 = vpop.f32.mrb[0].mxu0
  %v3242 = vadd.f32 0.0, %v3241
  %v3243 = vpop.f32.mrb[0].mxu0
  %v3244 = vadd.f32 0.0, %v3243
  %v3245 = vpop.f32.mrb[0].mxu0
  %v3246 = vadd.f32 0.0, %v3245
  %3247 = vmatprep.mubr.bf16.mxu0 0
  %3248 = vmatmul.mubr.bf16.gmra.mrb[0].mxu0 %v2989
  %v3249 = vpop.f32.mrb[0].mxu0
  %v3250 = vadd.f32 0.0, %v3249
  %v3251 = vpop.f32.mrb[0].mxu0
  %v3252 = vadd.f32 0.0, %v3251
  %v3253 = vpop.f32.mrb[0].mxu0
  %v3254 = vadd.f32 0.0, %v3253
  %v3255 = vpop.f32.mrb[0].mxu0
  %v3256 = vadd.f32 0.0, %v3255
  %3257 = vdwg.mxu0
  %v3258 = vadd.f32 %v2771, %v3044
  %v3259 = vadd.f32 %v2772, %v3046
  %v3260 = vadd.f32 %v2773, %v3127
  %v3261 = vadd.f32 %v2774, %v3129
  %v3262 = vadd.f32 %v2775, %v3210
  %v3263 = vadd.f32 %v2776, %v3212
  %v3264 = vadd.f32 %v2777, %v3048
  %v3265 = vadd.f32 %v2778, %v3050
  %v3266 = vadd.f32 %v2779, %v3131
  %v3267 = vadd.f32 %v2780, %v3133
  %v3268 = vadd.f32 %v2781, %v3214
  %v3269 = vadd.f32 %v2782, %v3216
  %v3270 = vadd.f32 %v2783, %v3054
  %v3271 = vadd.f32 %v2784, %v3056
  %v3272 = vadd.f32 %v2785, %v3137
  %v3273 = vadd.f32 %v2786, %v3139
  %v3274 = vadd.f32 %v2787, %v3220
  %v3275 = vadd.f32 %v2788, %v3222
  %v3276 = vadd.f32 %v2789, %v3058
  %v3277 = vadd.f32 %v2790, %v3060
  %v3278 = vadd.f32 %v2791, %v3141
  %v3279 = vadd.f32 %v2792, %v3143
  %v3280 = vadd.f32 %v2793, %v3224
  %v3281 = vadd.f32 %v2794, %v3226
  %v3282 = vadd.f32 %v2795, %v3064
  %v3283 = vadd.f32 %v2796, %v3066
  %v3284 = vadd.f32 %v2797, %v3147
  %v3285 = vadd.f32 %v2798, %v3149
  %v3286 = vadd.f32 %v2799, %v3230
  %v3287 = vadd.f32 %v2800, %v3232
  %v3288 = vadd.f32 %v2801, %v3068
  %v3289 = vadd.f32 %v2802, %v3070
  %v3290 = vadd.f32 %v2803, %v3151
  %v3291 = vadd.f32 %v2804, %v3153
  %v3292 = vadd.f32 %v2805, %v3234
  %v3293 = vadd.f32 %v2806, %v3236
  %v3294 = vadd.f32 %v2807, %v3074
  %v3295 = vadd.f32 %v2808, %v3076
  %v3296 = vadd.f32 %v2809, %v3157
  %v3297 = vadd.f32 %v2810, %v3159
  %v3298 = vadd.f32 %v2811, %v3240
  %v3299 = vadd.f32 %v2812, %v3242
  %v3300 = vadd.f32 %v2813, %v3078
  %v3301 = vadd.f32 %v2814, %v3080
  %v3302 = vadd.f32 %v2815, %v3161
  %v3303 = vadd.f32 %v2816, %v3163
  %v3304 = vadd.f32 %v2817, %v3244
  %v3305 = vadd.f32 %v2818, %v3246
  %v3306 = vadd.f32 %v2819, %v3084
  %v3307 = vadd.f32 %v2820, %v3086
  %v3308 = vadd.f32 %v2821, %v3167
  %v3309 = vadd.f32 %v2822, %v3169
  %v3310 = vadd.f32 %v2823, %v3250
  %v3311 = vadd.f32 %v2824, %v3252
  %v3312 = vadd.f32 %v2825, %v3088
  %v3313 = vadd.f32 %v2826, %v3090
  %v3314 = vadd.f32 %v2827, %v3171
  %v3315 = vadd.f32 %v2828, %v3173
  %v3316 = vadd.f32 %v2829, %v3254
  %v3317 = vadd.f32 %v2830, %v3256
  %3318 = vrot.lane.b32.xlu0 %v30, 91
  %v3319 = vpop.permute.xlu0 %3318
  %3320 = vrot.lane.b32.xlu0 %v36, 91
  %v3321 = vpop.permute.xlu0 %3320
  %3322 = vrot.lane.b32.xlu0 %v42, 91
  %v3323 = vpop.permute.xlu0 %3322
  %3324 = vrot.lane.b32.xlu0 %v48, 91
  %v3325 = vpop.permute.xlu0 %3324
  %3326 = vrot.lane.b32.xlu0 %v54, 91
  %v3327 = vpop.permute.xlu0 %3326
  %3328 = vrot.lane.b32.xlu0 %v31, 91
  %v3329 = vpop.permute.xlu0 %3328
  %3330 = vrot.lane.b32.xlu0 %v37, 91
  %v3331 = vpop.permute.xlu0 %3330
  %3332 = vrot.lane.b32.xlu0 %v43, 91
  %v3333 = vpop.permute.xlu0 %3332
  %3334 = vrot.lane.b32.xlu0 %v49, 91
  %v3335 = vpop.permute.xlu0 %3334
  %3336 = vrot.lane.b32.xlu0 %v55, 91
  %v3337 = vpop.permute.xlu0 %3336
  %3338 = vrot.lane.b32.xlu0 %v32, 91
  %v3339 = vpop.permute.xlu0 %3338
  %3340 = vrot.lane.b32.xlu0 %v38, 91
  %v3341 = vpop.permute.xlu0 %3340
  %3342 = vrot.lane.b32.xlu0 %v44, 91
  %v3343 = vpop.permute.xlu0 %3342
  %3344 = vrot.lane.b32.xlu0 %v50, 91
  %v3345 = vpop.permute.xlu0 %3344
  %3346 = vrot.lane.b32.xlu0 %v56, 91
  %v3347 = vpop.permute.xlu0 %3346
  %3348 = vrot.lane.b32.xlu0 %v33, 91
  %v3349 = vpop.permute.xlu0 %3348
  %3350 = vrot.lane.b32.xlu0 %v39, 91
  %v3351 = vpop.permute.xlu0 %3350
  %3352 = vrot.lane.b32.xlu0 %v45, 91
  %v3353 = vpop.permute.xlu0 %3352
  %3354 = vrot.lane.b32.xlu0 %v51, 91
  %v3355 = vpop.permute.xlu0 %3354
  %3356 = vrot.lane.b32.xlu0 %v57, 91
  %v3357 = vpop.permute.xlu0 %3356
  %3358 = vrot.lane.b32.xlu0 %v34, 91
  %v3359 = vpop.permute.xlu0 %3358
  %3360 = vrot.lane.b32.xlu0 %v40, 91
  %v3361 = vpop.permute.xlu0 %3360
  %3362 = vrot.lane.b32.xlu0 %v46, 91
  %v3363 = vpop.permute.xlu0 %3362
  %3364 = vrot.lane.b32.xlu0 %v52, 91
  %v3365 = vpop.permute.xlu0 %3364
  %3366 = vrot.lane.b32.xlu0 %v58, 91
  %v3367 = vpop.permute.xlu0 %3366
  %3368 = vrot.lane.b32.xlu0 %v35, 91
  %v3369 = vpop.permute.xlu0 %3368
  %3370 = vrot.lane.b32.xlu0 %v41, 91
  %v3371 = vpop.permute.xlu0 %3370
  %3372 = vrot.lane.b32.xlu0 %v47, 91
  %v3373 = vpop.permute.xlu0 %3372
  %3374 = vrot.lane.b32.xlu0 %v53, 91
  %v3375 = vpop.permute.xlu0 %3374
  %3376 = vrot.lane.b32.xlu0 %v59, 91
  %v3377 = vpop.permute.xlu0 %3376
  %vm3378 = vcmp.lt.s32.totalorder %v131, 91
  %v3379 = vsel %vm3378, %v3359, %v3369
  %v3380 = vsel %vm3378, %v3361, %v3371
  %v3381 = vsel %vm3378, %v3363, %v3373
  %v3382 = vsel %vm3378, %v3365, %v3375
  %v3383 = vsel %vm3378, %v3367, %v3377
  %v3384 = vsel %vm3378, %v3349, %v3359
  %v3385 = vsel %vm3378, %v3351, %v3361
  %v3386 = vsel %vm3378, %v3353, %v3363
  %v3387 = vsel %vm3378, %v3355, %v3365
  %v3388 = vsel %vm3378, %v3357, %v3367
  %v3389 = vsel %vm3378, %v3339, %v3349
  %v3390 = vsel %vm3378, %v3341, %v3351
  %v3391 = vsel %vm3378, %v3343, %v3353
  %v3392 = vsel %vm3378, %v3345, %v3355
  %v3393 = vsel %vm3378, %v3347, %v3357
  %v3394 = vsel %vm3378, %v3329, %v3339
  %v3395 = vsel %vm3378, %v3331, %v3341
  %v3396 = vsel %vm3378, %v3333, %v3343
  %v3397 = vsel %vm3378, %v3335, %v3345
  %v3398 = vsel %vm3378, %v3337, %v3347
  %v3399 = vsel %vm3378, %v3319, %v3329
  %v3400 = vsel %vm3378, %v3321, %v3331
  %v3401 = vsel %vm3378, %v3323, %v3333
  %v3402 = vsel %vm3378, %v3325, %v3335
  %v3403 = vsel %vm3378, %v3327, %v3337
  %v3404 = vsel %vm3378, %v3369, %v3319
  %v3405 = vsel %vm3378, %v3371, %v3321
  %v3406 = vsel %vm3378, %v3373, %v3323
  %v3407 = vsel %vm3378, %v3375, %v3325
  %v3408 = vsel %vm3378, %v3377, %v3327
  %s3409 = scalar_lea.vmem %s1, 280
  %v3410 = vld [vmem:[%s3409] sm:$0xf]
  %v3411 = vld [vmem:[%s3409 + $0x4] sm:$0xf]
  %v3412 = vld [vmem:[%s3409 + $0x8] sm:$0xf]
  %v3413 = vld [vmem:[%s3409 + $0xc] sm:$0xf]
  %v3414 = vld [vmem:[%s3409 + $0x10] sm:$0xf]
  %v3415 = vld [vmem:[%s3409 + $0x14] sm:$0xf]
  %v3416 = vld [vmem:[%s3409 + $0x18] sm:$0xf]
  %v3417 = vld [vmem:[%s3409 + $0x1c] sm:$0xf]
  %v3418 = vld [vmem:[%s3409 + $0x20] sm:$0xf]
  %v3419 = vld [vmem:[%s3409 + $0x24] sm:$0xf]
  %v3420 = vpack.c.bf16 %v3400, %v3399
  %v3421 = vpack.c.bf16 %v3395, %v3394
  %v3422 = vpack.c.bf16 %v3390, %v3389
  %v3423 = vpack.c.bf16 %v3385, %v3384
  %v3424 = vpack.c.bf16 %v3380, %v3379
  %v3425 = vpack.c.bf16 %v3405, %v3404
  %v3426 = vpack.c.bf16 %v3402, %v3401
  %v3427 = vpack.c.bf16 %v3397, %v3396
  %v3428 = vpack.c.bf16 %v3392, %v3391
  %v3429 = vpack.c.bf16 %v3387, %v3386
  %v3430 = vpack.c.bf16 %v3382, %v3381
  %v3431 = vpack.c.bf16 %v3407, %v3406
  %v3432 = vpack.c.bf16 %v3403, %v3403
  %v3433 = vpack.c.bf16 %v3398, %v3398
  %v3434 = vpack.c.bf16 %v3393, %v3393
  %v3435 = vpack.c.bf16 %v3388, %v3388
  %v3436 = vpack.c.bf16 %v3383, %v3383
  %v3437 = vpack.c.bf16 %v3408, %v3408
  %v3448 = vunpack.c.l.b16 %v3410
  %v3449 = vunpack.c.l.b16 %v3411
  %v3450 = vunpack.c.l.b16 %v3412
  %v3451 = vunpack.c.l.b16 %v3413
  %v3452 = vunpack.c.l.b16 %v3414
  %v3453 = vunpack.c.l.b16 %v3415
  %v3454 = vunpack.c.l.b16 %v3416
  %v3455 = vunpack.c.l.b16 %v3417
  %v3456 = vunpack.c.l.b16 %v3418
  %v3457 = vunpack.c.l.b16 %v3419
  %v3458 = vpack.c.b16 %v3449, %v3448
  %v3459 = vpack.c.b16 %v3451, %v3450
  %v3460 = vpack.c.b16 %v3453, %v3452
  %v3461 = vpack.c.b16 %v3455, %v3454
  %v3462 = vpack.c.b16 %v3457, %v3456
  %v3464 = vsel %vm217, %v3458, 0
  %v3467 = vsel %vm217, %v3459, 0
  %v3470 = vsel %vm217, %v3460, 0
  %v3473 = vsel %vm217, %v3461, 0
  %v3476 = vsel %vm217, %v3462, 0
  %v3479 = vsel %vm233, %v3432, 0
  %v3482 = vsel %vm233, %v3433, 0
  %v3485 = vsel %vm233, %v3434, 0
  %v3488 = vsel %vm233, %v3435, 0
  %v3491 = vsel %vm233, %v3436, 0
  %v3494 = vsel %vm233, %v3437, 0
  %3496 = vmatprep.subr.bf16.mxu0 %v3421
  %3497 = vmatpush1.bf16.msra.mxu0 %v3420
  %3498 = vmatprep.subr.bf16.mxu0 %v3427
  %3499 = vmatpush1.bf16.msra.mxu0 %v3426
  %3500 = vmatprep.subr.bf16.mxu0 %v3482
  %3501 = vmatpush1.bf16.msra.mxu0 %v3479
  %3502 = vmatprep.subr.bf16.mxu0 0
  %3503 = vmatpush1.bf16.msra.mxu0 0
  %3504 = vmatprep.subr.bf16.mxu0 0
  %3505 = vmatpush1.bf16.msra.mxu0 0
  %3506 = vmatprep.subr.bf16.mxu0 0
  %3507 = vmatpush1.bf16.msra.mxu0 0
  %3508 = vmatprep.subr.bf16.mxu0 0
  %3509 = vmatpush1.bf16.msra.mxu0 0
  %3510 = vmatprep.subr.bf16.mxu0 0
  %3511 = vmatpush1.bf16.msra.mxu0 0
  %3512 = vmatprep.subr.bf16.mxu0 0
  %3513 = vmatpush1.bf16.msra.mxu0 0
  %3514 = vmatprep.subr.bf16.mxu0 0
  %3515 = vmatpush1.bf16.msra.mxu0 0
  %3516 = vmatprep.subr.bf16.mxu0 0
  %3517 = vmatpush1.bf16.msra.mxu0 0
  %3518 = vmatprep.subr.bf16.mxu0 0
  %3519 = vmatpush1.bf16.msra.mxu0 0
  %3520 = vmatprep.subr.bf16.mxu0 0
  %3521 = vmatpush1.bf16.msra.mxu0 0
  %3522 = vmatprep.subr.bf16.mxu0 0
  %3523 = vmatpush1.bf16.msra.mxu0 0
  %3524 = vmatprep.subr.bf16.mxu0 0
  %3525 = vmatpush1.bf16.msra.mxu0 0
  %3526 = vmatprep.subr.bf16.mxu0 0
  %3527 = vmatpush1.bf16.msra.mxu0 0
  %3528 = vmatprep.mubr.bf16.mxu0 0
  %3529 = vmatmul.mubr.bf16.gmra.mrb[0].mxu0 %v3464
  %v3530 = vpop.f32.mrb[0].mxu0
  %v3531 = vadd.f32 0.0, %v3530
  %v3532 = vpop.f32.mrb[0].mxu0
  %v3533 = vadd.f32 0.0, %v3532
  %v3534 = vpop.f32.mrb[0].mxu0
  %v3535 = vadd.f32 0.0, %v3534
  %v3536 = vpop.f32.mrb[0].mxu0
  %v3537 = vadd.f32 0.0, %v3536
  %3538 = vmatprep.mubr.bf16.mxu0 0
  %3539 = vmatmul.mubr.bf16.gmra.mrb[0].mxu0 %v3467
  %v3540 = vpop.f32.mrb[0].mxu0
  %v3541 = vadd.f32 0.0, %v3540
  %v3542 = vpop.f32.mrb[0].mxu0
  %v3543 = vadd.f32 0.0, %v3542
  %v3544 = vpop.f32.mrb[0].mxu0
  %v3545 = vadd.f32 0.0, %v3544
  %v3546 = vpop.f32.mrb[0].mxu0
  %v3547 = vadd.f32 0.0, %v3546
  %3548 = vmatprep.mubr.bf16.mxu0 0
  %3549 = vmatmul.mubr.bf16.gmra.mrb[0].mxu0 %v3470
  %v3550 = vpop.f32.mrb[0].mxu0
  %v3551 = vadd.f32 0.0, %v3550
  %v3552 = vpop.f32.mrb[0].mxu0
  %v3553 = vadd.f32 0.0, %v3552
  %v3554 = vpop.f32.mrb[0].mxu0
  %v3555 = vadd.f32 0.0, %v3554
  %v3556 = vpop.f32.mrb[0].mxu0
  %v3557 = vadd.f32 0.0, %v3556
  %3558 = vmatprep.mubr.bf16.mxu0 0
  %3559 = vmatmul.mubr.bf16.gmra.mrb[0].mxu0 %v3473
  %v3560 = vpop.f32.mrb[0].mxu0
  %v3561 = vadd.f32 0.0, %v3560
  %v3562 = vpop.f32.mrb[0].mxu0
  %v3563 = vadd.f32 0.0, %v3562
  %v3564 = vpop.f32.mrb[0].mxu0
  %v3565 = vadd.f32 0.0, %v3564
  %v3566 = vpop.f32.mrb[0].mxu0
  %v3567 = vadd.f32 0.0, %v3566
  %3568 = vmatprep.mubr.bf16.mxu0 0
  %3569 = vmatmul.mubr.bf16.gmra.mrb[0].mxu0 %v3476
  %v3570 = vpop.f32.mrb[0].mxu0
  %v3571 = vadd.f32 0.0, %v3570
  %v3572 = vpop.f32.mrb[0].mxu0
  %v3573 = vadd.f32 0.0, %v3572
  %v3574 = vpop.f32.mrb[0].mxu0
  %v3575 = vadd.f32 0.0, %v3574
  %v3576 = vpop.f32.mrb[0].mxu0
  %v3577 = vadd.f32 0.0, %v3576
  %3578 = vdwg.mxu0
  %3579 = vmatprep.subr.bf16.mxu0 %v3423
  %3580 = vmatpush1.bf16.msra.mxu0 %v3422
  %3581 = vmatprep.subr.bf16.mxu0 %v3429
  %3582 = vmatpush1.bf16.msra.mxu0 %v3428
  %3583 = vmatprep.subr.bf16.mxu0 %v3488
  %3584 = vmatpush1.bf16.msra.mxu0 %v3485
  %3585 = vmatprep.subr.bf16.mxu0 0
  %3586 = vmatpush1.bf16.msra.mxu0 0
  %3587 = vmatprep.subr.bf16.mxu0 0
  %3588 = vmatpush1.bf16.msra.mxu0 0
  %3589 = vmatprep.subr.bf16.mxu0 0
  %3590 = vmatpush1.bf16.msra.mxu0 0
  %3591 = vmatprep.subr.bf16.mxu0 0
  %3592 = vmatpush1.bf16.msra.mxu0 0
  %3593 = vmatprep.subr.bf16.mxu0 0
  %3594 = vmatpush1.bf16.msra.mxu0 0
  %3595 = vmatprep.subr.bf16.mxu0 0
  %3596 = vmatpush1.bf16.msra.mxu0 0
  %3597 = vmatprep.subr.bf16.mxu0 0
  %3598 = vmatpush1.bf16.msra.mxu0 0
  %3599 = vmatprep.subr.bf16.mxu0 0
  %3600 = vmatpush1.bf16.msra.mxu0 0
  %3601 = vmatprep.subr.bf16.mxu0 0
  %3602 = vmatpush1.bf16.msra.mxu0 0
  %3603 = vmatprep.subr.bf16.mxu0 0
  %3604 = vmatpush1.bf16.msra.mxu0 0
  %3605 = vmatprep.subr.bf16.mxu0 0
  %3606 = vmatpush1.bf16.msra.mxu0 0
  %3607 = vmatprep.subr.bf16.mxu0 0
  %3608 = vmatpush1.bf16.msra.mxu0 0
  %3609 = vmatprep.subr.bf16.mxu0 0
  %3610 = vmatpush1.bf16.msra.mxu0 0
  %3611 = vmatprep.mubr.bf16.mxu0 0
  %3612 = vmatmul.mubr.bf16.gmra.mrb[0].mxu0 %v3464
  %v3613 = vpop.f32.mrb[0].mxu0
  %v3614 = vadd.f32 0.0, %v3613
  %v3615 = vpop.f32.mrb[0].mxu0
  %v3616 = vadd.f32 0.0, %v3615
  %v3617 = vpop.f32.mrb[0].mxu0
  %v3618 = vadd.f32 0.0, %v3617
  %v3619 = vpop.f32.mrb[0].mxu0
  %v3620 = vadd.f32 0.0, %v3619
  %3621 = vmatprep.mubr.bf16.mxu0 0
  %3622 = vmatmul.mubr.bf16.gmra.mrb[0].mxu0 %v3467
  %v3623 = vpop.f32.mrb[0].mxu0
  %v3624 = vadd.f32 0.0, %v3623
  %v3625 = vpop.f32.mrb[0].mxu0
  %v3626 = vadd.f32 0.0, %v3625
  %v3627 = vpop.f32.mrb[0].mxu0
  %v3628 = vadd.f32 0.0, %v3627
  %v3629 = vpop.f32.mrb[0].mxu0
  %v3630 = vadd.f32 0.0, %v3629
  %3631 = vmatprep.mubr.bf16.mxu0 0
  %3632 = vmatmul.mubr.bf16.gmra.mrb[0].mxu0 %v3470
  %v3633 = vpop.f32.mrb[0].mxu0
  %v3634 = vadd.f32 0.0, %v3633
  %v3635 = vpop.f32.mrb[0].mxu0
  %v3636 = vadd.f32 0.0, %v3635
  %v3637 = vpop.f32.mrb[0].mxu0
  %v3638 = vadd.f32 0.0, %v3637
  %v3639 = vpop.f32.mrb[0].mxu0
  %v3640 = vadd.f32 0.0, %v3639
  %3641 = vmatprep.mubr.bf16.mxu0 0
  %3642 = vmatmul.mubr.bf16.gmra.mrb[0].mxu0 %v3473
  %v3643 = vpop.f32.mrb[0].mxu0
  %v3644 = vadd.f32 0.0, %v3643
  %v3645 = vpop.f32.mrb[0].mxu0
  %v3646 = vadd.f32 0.0, %v3645
  %v3647 = vpop.f32.mrb[0].mxu0
  %v3648 = vadd.f32 0.0, %v3647
  %v3649 = vpop.f32.mrb[0].mxu0
  %v3650 = vadd.f32 0.0, %v3649
  %3651 = vmatprep.mubr.bf16.mxu0 0
  %3652 = vmatmul.mubr.bf16.gmra.mrb[0].mxu0 %v3476
  %v3653 = vpop.f32.mrb[0].mxu0
  %v3654 = vadd.f32 0.0, %v3653
  %v3655 = vpop.f32.mrb[0].mxu0
  %v3656 = vadd.f32 0.0, %v3655
  %v3657 = vpop.f32.mrb[0].mxu0
  %v3658 = vadd.f32 0.0, %v3657
  %v3659 = vpop.f32.mrb[0].mxu0
  %v3660 = vadd.f32 0.0, %v3659
  %3661 = vdwg.mxu0
  %3662 = vmatprep.subr.bf16.mxu0 %v3425
  %3663 = vmatpush1.bf16.msra.mxu0 %v3424
  %3664 = vmatprep.subr.bf16.mxu0 %v3431
  %3665 = vmatpush1.bf16.msra.mxu0 %v3430
  %3666 = vmatprep.subr.bf16.mxu0 %v3494
  %3667 = vmatpush1.bf16.msra.mxu0 %v3491
  %3668 = vmatprep.subr.bf16.mxu0 0
  %3669 = vmatpush1.bf16.msra.mxu0 0
  %3670 = vmatprep.subr.bf16.mxu0 0
  %3671 = vmatpush1.bf16.msra.mxu0 0
  %3672 = vmatprep.subr.bf16.mxu0 0
  %3673 = vmatpush1.bf16.msra.mxu0 0
  %3674 = vmatprep.subr.bf16.mxu0 0
  %3675 = vmatpush1.bf16.msra.mxu0 0
  %3676 = vmatprep.subr.bf16.mxu0 0
  %3677 = vmatpush1.bf16.msra.mxu0 0
  %3678 = vmatprep.subr.bf16.mxu0 0
  %3679 = vmatpush1.bf16.msra.mxu0 0
  %3680 = vmatprep.subr.bf16.mxu0 0
  %3681 = vmatpush1.bf16.msra.mxu0 0
  %3682 = vmatprep.subr.bf16.mxu0 0
  %3683 = vmatpush1.bf16.msra.mxu0 0
  %3684 = vmatprep.subr.bf16.mxu0 0
  %3685 = vmatpush1.bf16.msra.mxu0 0
  %3686 = vmatprep.subr.bf16.mxu0 0
  %3687 = vmatpush1.bf16.msra.mxu0 0
  %3688 = vmatprep.subr.bf16.mxu0 0
  %3689 = vmatpush1.bf16.msra.mxu0 0
  %3690 = vmatprep.subr.bf16.mxu0 0
  %3691 = vmatpush1.bf16.msra.mxu0 0
  %3692 = vmatprep.subr.bf16.mxu0 0
  %3693 = vmatpush1.bf16.msra.mxu0 0
  %3694 = vmatprep.mubr.bf16.mxu0 0
  %3695 = vmatmul.mubr.bf16.gmra.mrb[0].mxu0 %v3464
  %v3696 = vpop.f32.mrb[0].mxu0
  %v3697 = vadd.f32 0.0, %v3696
  %v3698 = vpop.f32.mrb[0].mxu0
  %v3699 = vadd.f32 0.0, %v3698
  %v3700 = vpop.f32.mrb[0].mxu0
  %v3701 = vadd.f32 0.0, %v3700
  %v3702 = vpop.f32.mrb[0].mxu0
  %v3703 = vadd.f32 0.0, %v3702
  %3704 = vmatprep.mubr.bf16.mxu0 0
  %3705 = vmatmul.mubr.bf16.gmra.mrb[0].mxu0 %v3467
  %v3706 = vpop.f32.mrb[0].mxu0
  %v3707 = vadd.f32 0.0, %v3706
  %v3708 = vpop.f32.mrb[0].mxu0
  %v3709 = vadd.f32 0.0, %v3708
  %v3710 = vpop.f32.mrb[0].mxu0
  %v3711 = vadd.f32 0.0, %v3710
  %v3712 = vpop.f32.mrb[0].mxu0
  %v3713 = vadd.f32 0.0, %v3712
  %3714 = vmatprep.mubr.bf16.mxu0 0
  %3715 = vmatmul.mubr.bf16.gmra.mrb[0].mxu0 %v3470
  %v3716 = vpop.f32.mrb[0].mxu0
  %v3717 = vadd.f32 0.0, %v3716
  %v3718 = vpop.f32.mrb[0].mxu0
  %v3719 = vadd.f32 0.0, %v3718
  %v3720 = vpop.f32.mrb[0].mxu0
  %v3721 = vadd.f32 0.0, %v3720
  %v3722 = vpop.f32.mrb[0].mxu0
  %v3723 = vadd.f32 0.0, %v3722
  %3724 = vmatprep.mubr.bf16.mxu0 0
  %3725 = vmatmul.mubr.bf16.gmra.mrb[0].mxu0 %v3473
  %v3726 = vpop.f32.mrb[0].mxu0
  %v3727 = vadd.f32 0.0, %v3726
  %v3728 = vpop.f32.mrb[0].mxu0
  %v3729 = vadd.f32 0.0, %v3728
  %v3730 = vpop.f32.mrb[0].mxu0
  %v3731 = vadd.f32 0.0, %v3730
  %v3732 = vpop.f32.mrb[0].mxu0
  %v3733 = vadd.f32 0.0, %v3732
  %3734 = vmatprep.mubr.bf16.mxu0 0
  %3735 = vmatmul.mubr.bf16.gmra.mrb[0].mxu0 %v3476
  %v3736 = vpop.f32.mrb[0].mxu0
  %v3737 = vadd.f32 0.0, %v3736
  %v3738 = vpop.f32.mrb[0].mxu0
  %v3739 = vadd.f32 0.0, %v3738
  %v3740 = vpop.f32.mrb[0].mxu0
  %v3741 = vadd.f32 0.0, %v3740
  %v3742 = vpop.f32.mrb[0].mxu0
  %v3743 = vadd.f32 0.0, %v3742
  %3744 = vdwg.mxu0
  %v3745 = vadd.f32 %v3258, %v3531
  %v3746 = vadd.f32 %v3259, %v3533
  %v3747 = vadd.f32 %v3260, %v3614
  %v3748 = vadd.f32 %v3261, %v3616
  %v3749 = vadd.f32 %v3262, %v3697
  %v3750 = vadd.f32 %v3263, %v3699
  %v3751 = vadd.f32 %v3264, %v3535
  %v3752 = vadd.f32 %v3265, %v3537
  %v3753 = vadd.f32 %v3266, %v3618
  %v3754 = vadd.f32 %v3267, %v3620
  %v3755 = vadd.f32 %v3268, %v3701
  %v3756 = vadd.f32 %v3269, %v3703
  %v3757 = vadd.f32 %v3270, %v3541
  %v3758 = vadd.f32 %v3271, %v3543
  %v3759 = vadd.f32 %v3272, %v3624
  %v3760 = vadd.f32 %v3273, %v3626
  %v3761 = vadd.f32 %v3274, %v3707
  %v3762 = vadd.f32 %v3275, %v3709
  %v3763 = vadd.f32 %v3276, %v3545
  %v3764 = vadd.f32 %v3277, %v3547
  %v3765 = vadd.f32 %v3278, %v3628
  %v3766 = vadd.f32 %v3279, %v3630
  %v3767 = vadd.f32 %v3280, %v3711
  %v3768 = vadd.f32 %v3281, %v3713
  %v3769 = vadd.f32 %v3282, %v3551
  %v3770 = vadd.f32 %v3283, %v3553
  %v3771 = vadd.f32 %v3284, %v3634
  %v3772 = vadd.f32 %v3285, %v3636
  %v3773 = vadd.f32 %v3286, %v3717
  %v3774 = vadd.f32 %v3287, %v3719
  %v3775 = vadd.f32 %v3288, %v3555
  %v3776 = vadd.f32 %v3289, %v3557
  %v3777 = vadd.f32 %v3290, %v3638
  %v3778 = vadd.f32 %v3291, %v3640
  %v3779 = vadd.f32 %v3292, %v3721
  %v3780 = vadd.f32 %v3293, %v3723
  %v3781 = vadd.f32 %v3294, %v3561
  %v3782 = vadd.f32 %v3295, %v3563
  %v3783 = vadd.f32 %v3296, %v3644
  %v3784 = vadd.f32 %v3297, %v3646
  %v3785 = vadd.f32 %v3298, %v3727
  %v3786 = vadd.f32 %v3299, %v3729
  %v3787 = vadd.f32 %v3300, %v3565
  %v3788 = vadd.f32 %v3301, %v3567
  %v3789 = vadd.f32 %v3302, %v3648
  %v3790 = vadd.f32 %v3303, %v3650
  %v3791 = vadd.f32 %v3304, %v3731
  %v3792 = vadd.f32 %v3305, %v3733
  %v3793 = vadd.f32 %v3306, %v3571
  %v3794 = vadd.f32 %v3307, %v3573
  %v3795 = vadd.f32 %v3308, %v3654
  %v3796 = vadd.f32 %v3309, %v3656
  %v3797 = vadd.f32 %v3310, %v3737
  %v3798 = vadd.f32 %v3311, %v3739
  %v3799 = vadd.f32 %v3312, %v3575
  %v3800 = vadd.f32 %v3313, %v3577
  %v3801 = vadd.f32 %v3314, %v3658
  %v3802 = vadd.f32 %v3315, %v3660
  %v3803 = vadd.f32 %v3316, %v3741
  %v3804 = vadd.f32 %v3317, %v3743
  %3805 = vrot.lane.b32.xlu0 %v30, 90
  %v3806 = vpop.permute.xlu0 %3805
  %3807 = vrot.lane.b32.xlu0 %v36, 90
  %v3808 = vpop.permute.xlu0 %3807
  %3809 = vrot.lane.b32.xlu0 %v42, 90
  %v3810 = vpop.permute.xlu0 %3809
  %3811 = vrot.lane.b32.xlu0 %v48, 90
  %v3812 = vpop.permute.xlu0 %3811
  %3813 = vrot.lane.b32.xlu0 %v54, 90
  %v3814 = vpop.permute.xlu0 %3813
  %3815 = vrot.lane.b32.xlu0 %v31, 90
  %v3816 = vpop.permute.xlu0 %3815
  %3817 = vrot.lane.b32.xlu0 %v37, 90
  %v3818 = vpop.permute.xlu0 %3817
  %3819 = vrot.lane.b32.xlu0 %v43, 90
  %v3820 = vpop.permute.xlu0 %3819
  %3821 = vrot.lane.b32.xlu0 %v49, 90
  %v3822 = vpop.permute.xlu0 %3821
  %3823 = vrot.lane.b32.xlu0 %v55, 90
  %v3824 = vpop.permute.xlu0 %3823
  %3825 = vrot.lane.b32.xlu0 %v32, 90
  %v3826 = vpop.permute.xlu0 %3825
  %3827 = vrot.lane.b32.xlu0 %v38, 90
  %v3828 = vpop.permute.xlu0 %3827
  %3829 = vrot.lane.b32.xlu0 %v44, 90
  %v3830 = vpop.permute.xlu0 %3829
  %3831 = vrot.lane.b32.xlu0 %v50, 90
  %v3832 = vpop.permute.xlu0 %3831
  %3833 = vrot.lane.b32.xlu0 %v56, 90
  %v3834 = vpop.permute.xlu0 %3833
  %3835 = vrot.lane.b32.xlu0 %v33, 90
  %v3836 = vpop.permute.xlu0 %3835
  %3837 = vrot.lane.b32.xlu0 %v39, 90
  %v3838 = vpop.permute.xlu0 %3837
  %3839 = vrot.lane.b32.xlu0 %v45, 90
  %v3840 = vpop.permute.xlu0 %3839
  %3841 = vrot.lane.b32.xlu0 %v51, 90
  %v3842 = vpop.permute.xlu0 %3841
  %3843 = vrot.lane.b32.xlu0 %v57, 90
  %v3844 = vpop.permute.xlu0 %3843
  %3845 = vrot.lane.b32.xlu0 %v34, 90
  %v3846 = vpop.permute.xlu0 %3845
  %3847 = vrot.lane.b32.xlu0 %v40, 90
  %v3848 = vpop.permute.xlu0 %3847
  %3849 = vrot.lane.b32.xlu0 %v46, 90
  %v3850 = vpop.permute.xlu0 %3849
  %3851 = vrot.lane.b32.xlu0 %v52, 90
  %v3852 = vpop.permute.xlu0 %3851
  %3853 = vrot.lane.b32.xlu0 %v58, 90
  %v3854 = vpop.permute.xlu0 %3853
  %3855 = vrot.lane.b32.xlu0 %v35, 90
  %v3856 = vpop.permute.xlu0 %3855
  %3857 = vrot.lane.b32.xlu0 %v41, 90
  %v3858 = vpop.permute.xlu0 %3857
  %3859 = vrot.lane.b32.xlu0 %v47, 90
  %v3860 = vpop.permute.xlu0 %3859
  %3861 = vrot.lane.b32.xlu0 %v53, 90
  %v3862 = vpop.permute.xlu0 %3861
  %3863 = vrot.lane.b32.xlu0 %v59, 90
  %v3864 = vpop.permute.xlu0 %3863
  %vm3865 = vcmp.lt.s32.totalorder %v131, 90
  %v3866 = vsel %vm3865, %v3846, %v3856
  %v3867 = vsel %vm3865, %v3848, %v3858
  %v3868 = vsel %vm3865, %v3850, %v3860
  %v3869 = vsel %vm3865, %v3852, %v3862
  %v3870 = vsel %vm3865, %v3854, %v3864
  %v3871 = vsel %vm3865, %v3836, %v3846
  %v3872 = vsel %vm3865, %v3838, %v3848
  %v3873 = vsel %vm3865, %v3840, %v3850
  %v3874 = vsel %vm3865, %v3842, %v3852
  %v3875 = vsel %vm3865, %v3844, %v3854
  %v3876 = vsel %vm3865, %v3826, %v3836
  %v3877 = vsel %vm3865, %v3828, %v3838
  %v3878 = vsel %vm3865, %v3830, %v3840
  %v3879 = vsel %vm3865, %v3832, %v3842
  %v3880 = vsel %vm3865, %v3834, %v3844
  %v3881 = vsel %vm3865, %v3816, %v3826
  %v3882 = vsel %vm3865, %v3818, %v3828
  %v3883 = vsel %vm3865, %v3820, %v3830
  %v3884 = vsel %vm3865, %v3822, %v3832
  %v3885 = vsel %vm3865, %v3824, %v3834
  %v3886 = vsel %vm3865, %v3806, %v3816
  %v3887 = vsel %vm3865, %v3808, %v3818
  %v3888 = vsel %vm3865, %v3810, %v3820
  %v3889 = vsel %vm3865, %v3812, %v3822
  %v3890 = vsel %vm3865, %v3814, %v3824
  %v3891 = vsel %vm3865, %v3856, %v3806
  %v3892 = vsel %vm3865, %v3858, %v3808
  %v3893 = vsel %vm3865, %v3860, %v3810
  %v3894 = vsel %vm3865, %v3862, %v3812
  %v3895 = vsel %vm3865, %v3864, %v3814
  %s3896 = scalar_lea.vmem %s1, 320
  %v3897 = vld [vmem:[%s3896] sm:$0xf]
  %v3898 = vld [vmem:[%s3896 + $0x4] sm:$0xf]
  %v3899 = vld [vmem:[%s3896 + $0x8] sm:$0xf]
  %v3900 = vld [vmem:[%s3896 + $0xc] sm:$0xf]
  %v3901 = vld [vmem:[%s3896 + $0x10] sm:$0xf]
  %v3902 = vld [vmem:[%s3896 + $0x14] sm:$0xf]
  %v3903 = vld [vmem:[%s3896 + $0x18] sm:$0xf]
  %v3904 = vld [vmem:[%s3896 + $0x1c] sm:$0xf]
  %v3905 = vld [vmem:[%s3896 + $0x20] sm:$0xf]
  %v3906 = vld [vmem:[%s3896 + $0x24] sm:$0xf]
  %v3907 = vpack.c.bf16 %v3887, %v3886
  %v3908 = vpack.c.bf16 %v3882, %v3881
  %v3909 = vpack.c.bf16 %v3877, %v3876
  %v3910 = vpack.c.bf16 %v3872, %v3871
  %v3911 = vpack.c.bf16 %v3867, %v3866
  %v3912 = vpack.c.bf16 %v3892, %v3891
  %v3913 = vpack.c.bf16 %v3889, %v3888
  %v3914 = vpack.c.bf16 %v3884, %v3883
  %v3915 = vpack.c.bf16 %v3879, %v3878
  %v3916 = vpack.c.bf16 %v3874, %v3873
  %v3917 = vpack.c.bf16 %v3869, %v3868
  %v3918 = vpack.c.bf16 %v3894, %v3893
  %v3919 = vpack.c.bf16 %v3890, %v3890
  %v3920 = vpack.c.bf16 %v3885, %v3885
  %v3921 = vpack.c.bf16 %v3880, %v3880
  %v3922 = vpack.c.bf16 %v3875, %v3875
  %v3923 = vpack.c.bf16 %v3870, %v3870
  %v3924 = vpack.c.bf16 %v3895, %v3895
  %v3935 = vunpack.c.l.b16 %v3897
  %v3936 = vunpack.c.l.b16 %v3898
  %v3937 = vunpack.c.l.b16 %v3899
  %v3938 = vunpack.c.l.b16 %v3900
  %v3939 = vunpack.c.l.b16 %v3901
  %v3940 = vunpack.c.l.b16 %v3902
  %v3941 = vunpack.c.l.b16 %v3903
  %v3942 = vunpack.c.l.b16 %v3904
  %v3943 = vunpack.c.l.b16 %v3905
  %v3944 = vunpack.c.l.b16 %v3906
  %v3945 = vpack.c.b16 %v3936, %v3935
  %v3946 = vpack.c.b16 %v3938, %v3937
  %v3947 = vpack.c.b16 %v3940, %v3939
  %v3948 = vpack.c.b16 %v3942, %v3941
  %v3949 = vpack.c.b16 %v3944, %v3943
  %v3951 = vsel %vm217, %v3945, 0
  %v3954 = vsel %vm217, %v3946, 0
  %v3957 = vsel %vm217, %v3947, 0
  %v3960 = vsel %vm217, %v3948, 0
  %v3963 = vsel %vm217, %v3949, 0
  %v3966 = vsel %vm233, %v3919, 0
  %v3969 = vsel %vm233, %v3920, 0
  %v3972 = vsel %vm233, %v3921, 0
  %v3975 = vsel %vm233, %v3922, 0
  %v3978 = vsel %vm233, %v3923, 0
  %v3981 = vsel %vm233, %v3924, 0
  %3983 = vmatprep.subr.bf16.mxu0 %v3908
  %3984 = vmatpush1.bf16.msra.mxu0 %v3907
  %3985 = vmatprep.subr.bf16.mxu0 %v3914
  %3986 = vmatpush1.bf16.msra.mxu0 %v3913
  %3987 = vmatprep.subr.bf16.mxu0 %v3969
  %3988 = vmatpush1.bf16.msra.mxu0 %v3966
  %3989 = vmatprep.subr.bf16.mxu0 0
  %3990 = vmatpush1.bf16.msra.mxu0 0
  %3991 = vmatprep.subr.bf16.mxu0 0
  %3992 = vmatpush1.bf16.msra.mxu0 0
  %3993 = vmatprep.subr.bf16.mxu0 0
  %3994 = vmatpush1.bf16.msra.mxu0 0
  %3995 = vmatprep.subr.bf16.mxu0 0
  %3996 = vmatpush1.bf16.msra.mxu0 0
  %3997 = vmatprep.subr.bf16.mxu0 0
  %3998 = vmatpush1.bf16.msra.mxu0 0
  %3999 = vmatprep.subr.bf16.mxu0 0
  %4000 = vmatpush1.bf16.msra.mxu0 0
  %4001 = vmatprep.subr.bf16.mxu0 0
  %4002 = vmatpush1.bf16.msra.mxu0 0
  %4003 = vmatprep.subr.bf16.mxu0 0
  %4004 = vmatpush1.bf16.msra.mxu0 0
  %4005 = vmatprep.subr.bf16.mxu0 0
  %4006 = vmatpush1.bf16.msra.mxu0 0
  %4007 = vmatprep.subr.bf16.mxu0 0
  %4008 = vmatpush1.bf16.msra.mxu0 0
  %4009 = vmatprep.subr.bf16.mxu0 0
  %4010 = vmatpush1.bf16.msra.mxu0 0
  %4011 = vmatprep.subr.bf16.mxu0 0
  %4012 = vmatpush1.bf16.msra.mxu0 0
  %4013 = vmatprep.subr.bf16.mxu0 0
  %4014 = vmatpush1.bf16.msra.mxu0 0
  %4015 = vmatprep.mubr.bf16.mxu0 0
  %4016 = vmatmul.mubr.bf16.gmra.mrb[0].mxu0 %v3951
  %v4017 = vpop.f32.mrb[0].mxu0
  %v4018 = vadd.f32 0.0, %v4017
  %v4019 = vpop.f32.mrb[0].mxu0
  %v4020 = vadd.f32 0.0, %v4019
  %v4021 = vpop.f32.mrb[0].mxu0
  %v4022 = vadd.f32 0.0, %v4021
  %v4023 = vpop.f32.mrb[0].mxu0
  %v4024 = vadd.f32 0.0, %v4023
  %4025 = vmatprep.mubr.bf16.mxu0 0
  %4026 = vmatmul.mubr.bf16.gmra.mrb[0].mxu0 %v3954
  %v4027 = vpop.f32.mrb[0].mxu0
  %v4028 = vadd.f32 0.0, %v4027
  %v4029 = vpop.f32.mrb[0].mxu0
  %v4030 = vadd.f32 0.0, %v4029
  %v4031 = vpop.f32.mrb[0].mxu0
  %v4032 = vadd.f32 0.0, %v4031
  %v4033 = vpop.f32.mrb[0].mxu0
  %v4034 = vadd.f32 0.0, %v4033
  %4035 = vmatprep.mubr.bf16.mxu0 0
  %4036 = vmatmul.mubr.bf16.gmra.mrb[0].mxu0 %v3957
  %v4037 = vpop.f32.mrb[0].mxu0
  %v4038 = vadd.f32 0.0, %v4037
  %v4039 = vpop.f32.mrb[0].mxu0
  %v4040 = vadd.f32 0.0, %v4039
  %v4041 = vpop.f32.mrb[0].mxu0
  %v4042 = vadd.f32 0.0, %v4041
  %v4043 = vpop.f32.mrb[0].mxu0
  %v4044 = vadd.f32 0.0, %v4043
  %4045 = vmatprep.mubr.bf16.mxu0 0
  %4046 = vmatmul.mubr.bf16.gmra.mrb[0].mxu0 %v3960
  %v4047 = vpop.f32.mrb[0].mxu0
  %v4048 = vadd.f32 0.0, %v4047
  %v4049 = vpop.f32.mrb[0].mxu0
  %v4050 = vadd.f32 0.0, %v4049
  %v4051 = vpop.f32.mrb[0].mxu0
  %v4052 = vadd.f32 0.0, %v4051
  %v4053 = vpop.f32.mrb[0].mxu0
  %v4054 = vadd.f32 0.0, %v4053
  %4055 = vmatprep.mubr.bf16.mxu0 0
  %4056 = vmatmul.mubr.bf16.gmra.mrb[0].mxu0 %v3963
  %v4057 = vpop.f32.mrb[0].mxu0
  %v4058 = vadd.f32 0.0, %v4057
  %v4059 = vpop.f32.mrb[0].mxu0
  %v4060 = vadd.f32 0.0, %v4059
  %v4061 = vpop.f32.mrb[0].mxu0
  %v4062 = vadd.f32 0.0, %v4061
  %v4063 = vpop.f32.mrb[0].mxu0
  %v4064 = vadd.f32 0.0, %v4063
  %4065 = vdwg.mxu0
  %4066 = vmatprep.subr.bf16.mxu0 %v3910
  %4067 = vmatpush1.bf16.msra.mxu0 %v3909
  %4068 = vmatprep.subr.bf16.mxu0 %v3916
  %4069 = vmatpush1.bf16.msra.mxu0 %v3915
  %4070 = vmatprep.subr.bf16.mxu0 %v3975
  %4071 = vmatpush1.bf16.msra.mxu0 %v3972
  %4072 = vmatprep.subr.bf16.mxu0 0
  %4073 = vmatpush1.bf16.msra.mxu0 0
  %4074 = vmatprep.subr.bf16.mxu0 0
  %4075 = vmatpush1.bf16.msra.mxu0 0
  %4076 = vmatprep.subr.bf16.mxu0 0
  %4077 = vmatpush1.bf16.msra.mxu0 0
  %4078 = vmatprep.subr.bf16.mxu0 0
  %4079 = vmatpush1.bf16.msra.mxu0 0
  %4080 = vmatprep.subr.bf16.mxu0 0
  %4081 = vmatpush1.bf16.msra.mxu0 0
  %4082 = vmatprep.subr.bf16.mxu0 0
  %4083 = vmatpush1.bf16.msra.mxu0 0
  %4084 = vmatprep.subr.bf16.mxu0 0
  %4085 = vmatpush1.bf16.msra.mxu0 0
  %4086 = vmatprep.subr.bf16.mxu0 0
  %4087 = vmatpush1.bf16.msra.mxu0 0
  %4088 = vmatprep.subr.bf16.mxu0 0
  %4089 = vmatpush1.bf16.msra.mxu0 0
  %4090 = vmatprep.subr.bf16.mxu0 0
  %4091 = vmatpush1.bf16.msra.mxu0 0
  %4092 = vmatprep.subr.bf16.mxu0 0
  %4093 = vmatpush1.bf16.msra.mxu0 0
  %4094 = vmatprep.subr.bf16.mxu0 0
  %4095 = vmatpush1.bf16.msra.mxu0 0
  %4096 = vmatprep.subr.bf16.mxu0 0
  %4097 = vmatpush1.bf16.msra.mxu0 0
  %4098 = vmatprep.mubr.bf16.mxu0 0
  %4099 = vmatmul.mubr.bf16.gmra.mrb[0].mxu0 %v3951
  %v4100 = vpop.f32.mrb[0].mxu0
  %v4101 = vadd.f32 0.0, %v4100
  %v4102 = vpop.f32.mrb[0].mxu0
  %v4103 = vadd.f32 0.0, %v4102
  %v4104 = vpop.f32.mrb[0].mxu0
  %v4105 = vadd.f32 0.0, %v4104
  %v4106 = vpop.f32.mrb[0].mxu0
  %v4107 = vadd.f32 0.0, %v4106
  %4108 = vmatprep.mubr.bf16.mxu0 0
  %4109 = vmatmul.mubr.bf16.gmra.mrb[0].mxu0 %v3954
  %v4110 = vpop.f32.mrb[0].mxu0
  %v4111 = vadd.f32 0.0, %v4110
  %v4112 = vpop.f32.mrb[0].mxu0
  %v4113 = vadd.f32 0.0, %v4112
  %v4114 = vpop.f32.mrb[0].mxu0
  %v4115 = vadd.f32 0.0, %v4114
  %v4116 = vpop.f32.mrb[0].mxu0
  %v4117 = vadd.f32 0.0, %v4116
  %4118 = vmatprep.mubr.bf16.mxu0 0
  %4119 = vmatmul.mubr.bf16.gmra.mrb[0].mxu0 %v3957
  %v4120 = vpop.f32.mrb[0].mxu0
  %v4121 = vadd.f32 0.0, %v4120
  %v4122 = vpop.f32.mrb[0].mxu0
  %v4123 = vadd.f32 0.0, %v4122
  %v4124 = vpop.f32.mrb[0].mxu0
  %v4125 = vadd.f32 0.0, %v4124
  %v4126 = vpop.f32.mrb[0].mxu0
  %v4127 = vadd.f32 0.0, %v4126
  %4128 = vmatprep.mubr.bf16.mxu0 0
  %4129 = vmatmul.mubr.bf16.gmra.mrb[0].mxu0 %v3960
  %v4130 = vpop.f32.mrb[0].mxu0
  %v4131 = vadd.f32 0.0, %v4130
  %v4132 = vpop.f32.mrb[0].mxu0
  %v4133 = vadd.f32 0.0, %v4132
  %v4134 = vpop.f32.mrb[0].mxu0
  %v4135 = vadd.f32 0.0, %v4134
  %v4136 = vpop.f32.mrb[0].mxu0
  %v4137 = vadd.f32 0.0, %v4136
  %4138 = vmatprep.mubr.bf16.mxu0 0
  %4139 = vmatmul.mubr.bf16.gmra.mrb[0].mxu0 %v3963
  %v4140 = vpop.f32.mrb[0].mxu0
  %v4141 = vadd.f32 0.0, %v4140
  %v4142 = vpop.f32.mrb[0].mxu0
  %v4143 = vadd.f32 0.0, %v4142
  %v4144 = vpop.f32.mrb[0].mxu0
  %v4145 = vadd.f32 0.0, %v4144
  %v4146 = vpop.f32.mrb[0].mxu0
  %v4147 = vadd.f32 0.0, %v4146
  %4148 = vdwg.mxu0
  %4149 = vmatprep.subr.bf16.mxu0 %v3912
  %4150 = vmatpush1.bf16.msra.mxu0 %v3911
  %4151 = vmatprep.subr.bf16.mxu0 %v3918
  %4152 = vmatpush1.bf16.msra.mxu0 %v3917
  %4153 = vmatprep.subr.bf16.mxu0 %v3981
  %4154 = vmatpush1.bf16.msra.mxu0 %v3978
  %4155 = vmatprep.subr.bf16.mxu0 0
  %4156 = vmatpush1.bf16.msra.mxu0 0
  %4157 = vmatprep.subr.bf16.mxu0 0
  %4158 = vmatpush1.bf16.msra.mxu0 0
  %4159 = vmatprep.subr.bf16.mxu0 0
  %4160 = vmatpush1.bf16.msra.mxu0 0
  %4161 = vmatprep.subr.bf16.mxu0 0
  %4162 = vmatpush1.bf16.msra.mxu0 0
  %4163 = vmatprep.subr.bf16.mxu0 0
  %4164 = vmatpush1.bf16.msra.mxu0 0
  %4165 = vmatprep.subr.bf16.mxu0 0
  %4166 = vmatpush1.bf16.msra.mxu0 0
  %4167 = vmatprep.subr.bf16.mxu0 0
  %4168 = vmatpush1.bf16.msra.mxu0 0
  %4169 = vmatprep.subr.bf16.mxu0 0
  %4170 = vmatpush1.bf16.msra.mxu0 0
  %4171 = vmatprep.subr.bf16.mxu0 0
  %4172 = vmatpush1.bf16.msra.mxu0 0
  %4173 = vmatprep.subr.bf16.mxu0 0
  %4174 = vmatpush1.bf16.msra.mxu0 0
  %4175 = vmatprep.subr.bf16.mxu0 0
  %4176 = vmatpush1.bf16.msra.mxu0 0
  %4177 = vmatprep.subr.bf16.mxu0 0
  %4178 = vmatpush1.bf16.msra.mxu0 0
  %4179 = vmatprep.subr.bf16.mxu0 0
  %4180 = vmatpush1.bf16.msra.mxu0 0
  %4181 = vmatprep.mubr.bf16.mxu0 0
  %4182 = vmatmul.mubr.bf16.gmra.mrb[0].mxu0 %v3951
  %v4183 = vpop.f32.mrb[0].mxu0
  %v4184 = vadd.f32 0.0, %v4183
  %v4185 = vpop.f32.mrb[0].mxu0
  %v4186 = vadd.f32 0.0, %v4185
  %v4187 = vpop.f32.mrb[0].mxu0
  %v4188 = vadd.f32 0.0, %v4187
  %v4189 = vpop.f32.mrb[0].mxu0
  %v4190 = vadd.f32 0.0, %v4189
  %4191 = vmatprep.mubr.bf16.mxu0 0
  %4192 = vmatmul.mubr.bf16.gmra.mrb[0].mxu0 %v3954
  %v4193 = vpop.f32.mrb[0].mxu0
  %v4194 = vadd.f32 0.0, %v4193
  %v4195 = vpop.f32.mrb[0].mxu0
  %v4196 = vadd.f32 0.0, %v4195
  %v4197 = vpop.f32.mrb[0].mxu0
  %v4198 = vadd.f32 0.0, %v4197
  %v4199 = vpop.f32.mrb[0].mxu0
  %v4200 = vadd.f32 0.0, %v4199
  %4201 = vmatprep.mubr.bf16.mxu0 0
  %4202 = vmatmul.mubr.bf16.gmra.mrb[0].mxu0 %v3957
  %v4203 = vpop.f32.mrb[0].mxu0
  %v4204 = vadd.f32 0.0, %v4203
  %v4205 = vpop.f32.mrb[0].mxu0
  %v4206 = vadd.f32 0.0, %v4205
  %v4207 = vpop.f32.mrb[0].mxu0
  %v4208 = vadd.f32 0.0, %v4207
  %v4209 = vpop.f32.mrb[0].mxu0
  %v4210 = vadd.f32 0.0, %v4209
  %4211 = vmatprep.mubr.bf16.mxu0 0
  %4212 = vmatmul.mubr.bf16.gmra.mrb[0].mxu0 %v3960
  %v4213 = vpop.f32.mrb[0].mxu0
  %v4214 = vadd.f32 0.0, %v4213
  %v4215 = vpop.f32.mrb[0].mxu0
  %v4216 = vadd.f32 0.0, %v4215
  %v4217 = vpop.f32.mrb[0].mxu0
  %v4218 = vadd.f32 0.0, %v4217
  %v4219 = vpop.f32.mrb[0].mxu0
  %v4220 = vadd.f32 0.0, %v4219
  %4221 = vmatprep.mubr.bf16.mxu0 0
  %4222 = vmatmul.mubr.bf16.gmra.mrb[0].mxu0 %v3963
  %v4223 = vpop.f32.mrb[0].mxu0
  %v4224 = vadd.f32 0.0, %v4223
  %v4225 = vpop.f32.mrb[0].mxu0
  %v4226 = vadd.f32 0.0, %v4225
  %v4227 = vpop.f32.mrb[0].mxu0
  %v4228 = vadd.f32 0.0, %v4227
  %v4229 = vpop.f32.mrb[0].mxu0
  %v4230 = vadd.f32 0.0, %v4229
  %4231 = vdwg.mxu0
  %v4232 = vadd.f32 %v3745, %v4018
  %v4233 = vadd.f32 %v3746, %v4020
  %v4234 = vadd.f32 %v3747, %v4101
  %v4235 = vadd.f32 %v3748, %v4103
  %v4236 = vadd.f32 %v3749, %v4184
  %v4237 = vadd.f32 %v3750, %v4186
  %v4238 = vadd.f32 %v3751, %v4022
  %v4239 = vadd.f32 %v3752, %v4024
  %v4240 = vadd.f32 %v3753, %v4105
  %v4241 = vadd.f32 %v3754, %v4107
  %v4242 = vadd.f32 %v3755, %v4188
  %v4243 = vadd.f32 %v3756, %v4190
  %v4244 = vadd.f32 %v3757, %v4028
  %v4245 = vadd.f32 %v3758, %v4030
  %v4246 = vadd.f32 %v3759, %v4111
  %v4247 = vadd.f32 %v3760, %v4113
  %v4248 = vadd.f32 %v3761, %v4194
  %v4249 = vadd.f32 %v3762, %v4196
  %v4250 = vadd.f32 %v3763, %v4032
  %v4251 = vadd.f32 %v3764, %v4034
  %v4252 = vadd.f32 %v3765, %v4115
  %v4253 = vadd.f32 %v3766, %v4117
  %v4254 = vadd.f32 %v3767, %v4198
  %v4255 = vadd.f32 %v3768, %v4200
  %v4256 = vadd.f32 %v3769, %v4038
  %v4257 = vadd.f32 %v3770, %v4040
  %v4258 = vadd.f32 %v3771, %v4121
  %v4259 = vadd.f32 %v3772, %v4123
  %v4260 = vadd.f32 %v3773, %v4204
  %v4261 = vadd.f32 %v3774, %v4206
  %v4262 = vadd.f32 %v3775, %v4042
  %v4263 = vadd.f32 %v3776, %v4044
  %v4264 = vadd.f32 %v3777, %v4125
  %v4265 = vadd.f32 %v3778, %v4127
  %v4266 = vadd.f32 %v3779, %v4208
  %v4267 = vadd.f32 %v3780, %v4210
  %v4268 = vadd.f32 %v3781, %v4048
  %v4269 = vadd.f32 %v3782, %v4050
  %v4270 = vadd.f32 %v3783, %v4131
  %v4271 = vadd.f32 %v3784, %v4133
  %v4272 = vadd.f32 %v3785, %v4214
  %v4273 = vadd.f32 %v3786, %v4216
  %v4274 = vadd.f32 %v3787, %v4052
  %v4275 = vadd.f32 %v3788, %v4054
  %v4276 = vadd.f32 %v3789, %v4135
  %v4277 = vadd.f32 %v3790, %v4137
  %v4278 = vadd.f32 %v3791, %v4218
  %v4279 = vadd.f32 %v3792, %v4220
  %v4280 = vadd.f32 %v3793, %v4058
  %v4281 = vadd.f32 %v3794, %v4060
  %v4282 = vadd.f32 %v3795, %v4141
  %v4283 = vadd.f32 %v3796, %v4143
  %v4284 = vadd.f32 %v3797, %v4224
  %v4285 = vadd.f32 %v3798, %v4226
  %v4286 = vadd.f32 %v3799, %v4062
  %v4287 = vadd.f32 %v3800, %v4064
  %v4288 = vadd.f32 %v3801, %v4145
  %v4289 = vadd.f32 %v3802, %v4147
  %v4290 = vadd.f32 %v3803, %v4228
  %v4291 = vadd.f32 %v3804, %v4230
  %v4292 = vld [vmem:[%s2] sm:$0xff]
  %v4293 = vld [vmem:[%s2 + $0x8] sm:$0xff]
  %v4294 = vld [vmem:[%s2 + $0x10] sm:$0xff]
  %v4295 = vld [vmem:[%s2 + $0x18] sm:$0xff]
  %v4296 = vld [vmem:[%s2 + $0x20] sm:$0xff]
  %v4297 = vld [vmem:[%s2 + $0x28] sm:$0xff]
  %v4298 = vld [vmem:[%s2 + $0x30] sm:$0xff]
  %v4299 = vld [vmem:[%s2 + $0x38] sm:$0xff]
  %v4300 = vld [vmem:[%s2 + $0x40] sm:$0xff]
  %v4301 = vld [vmem:[%s2 + $0x48] sm:$0xff]
  %4303 = vset.pattern.permute.xlu0 0
  %4304 = vperm.xlu0 %4303, %v4292
  %v4305 = vpop.permute.xlu0 %4304
  %4308 = vset.pattern.permute.xlu0 0
  %4309 = vperm.xlu0 %4308, %v4293
  %v4310 = vpop.permute.xlu0 %4309
  %4313 = vset.pattern.permute.xlu0 0
  %4314 = vperm.xlu0 %4313, %v4294
  %v4315 = vpop.permute.xlu0 %4314
  %4318 = vset.pattern.permute.xlu0 0
  %4319 = vperm.xlu0 %4318, %v4295
  %v4320 = vpop.permute.xlu0 %4319
  %4323 = vset.pattern.permute.xlu0 0
  %4324 = vperm.xlu0 %4323, %v4296
  %v4325 = vpop.permute.xlu0 %4324
  %4328 = vset.pattern.permute.xlu0 0
  %4329 = vperm.xlu0 %4328, %v4297
  %v4330 = vpop.permute.xlu0 %4329
  %4333 = vset.pattern.permute.xlu0 0
  %4334 = vperm.xlu0 %4333, %v4298
  %v4335 = vpop.permute.xlu0 %4334
  %4338 = vset.pattern.permute.xlu0 0
  %4339 = vperm.xlu0 %4338, %v4299
  %v4340 = vpop.permute.xlu0 %4339
  %4343 = vset.pattern.permute.xlu0 0
  %4344 = vperm.xlu0 %4343, %v4300
  %v4345 = vpop.permute.xlu0 %4344
  %4348 = vset.pattern.permute.xlu0 0
  %4349 = vperm.xlu0 %4348, %v4301
  %v4350 = vpop.permute.xlu0 %4349
  %v4352 = vadd.f32 %v4232, %v4305
  %v4353 = vadd.f32 %v4233, %v4305
  %v4354 = vadd.f32 %v4234, %v4305
  %v4355 = vadd.f32 %v4235, %v4305
  %v4356 = vadd.f32 %v4236, %v4305
  %v4357 = vadd.f32 %v4237, %v4305
  %v4358 = vadd.f32 %v4238, %v4310
  %v4359 = vadd.f32 %v4239, %v4310
  %v4360 = vadd.f32 %v4240, %v4310
  %v4361 = vadd.f32 %v4241, %v4310
  %v4362 = vadd.f32 %v4242, %v4310
  %v4363 = vadd.f32 %v4243, %v4310
  %v4364 = vadd.f32 %v4244, %v4315
  %v4365 = vadd.f32 %v4245, %v4315
  %v4366 = vadd.f32 %v4246, %v4315
  %v4367 = vadd.f32 %v4247, %v4315
  %v4368 = vadd.f32 %v4248, %v4315
  %v4369 = vadd.f32 %v4249, %v4315
  %v4370 = vadd.f32 %v4250, %v4320
  %v4371 = vadd.f32 %v4251, %v4320
  %v4372 = vadd.f32 %v4252, %v4320
  %v4373 = vadd.f32 %v4253, %v4320
  %v4374 = vadd.f32 %v4254, %v4320
  %v4375 = vadd.f32 %v4255, %v4320
  %v4376 = vadd.f32 %v4256, %v4325
  %v4377 = vadd.f32 %v4257, %v4325
  %v4378 = vadd.f32 %v4258, %v4325
  %v4379 = vadd.f32 %v4259, %v4325
  %v4380 = vadd.f32 %v4260, %v4325
  %v4381 = vadd.f32 %v4261, %v4325
  %v4382 = vadd.f32 %v4262, %v4330
  %v4383 = vadd.f32 %v4263, %v4330
  %v4384 = vadd.f32 %v4264, %v4330
  %v4385 = vadd.f32 %v4265, %v4330
  %v4386 = vadd.f32 %v4266, %v4330
  %v4387 = vadd.f32 %v4267, %v4330
  %v4388 = vadd.f32 %v4268, %v4335
  %v4389 = vadd.f32 %v4269, %v4335
  %v4390 = vadd.f32 %v4270, %v4335
  %v4391 = vadd.f32 %v4271, %v4335
  %v4392 = vadd.f32 %v4272, %v4335
  %v4393 = vadd.f32 %v4273, %v4335
  %v4394 = vadd.f32 %v4274, %v4340
  %v4395 = vadd.f32 %v4275, %v4340
  %v4396 = vadd.f32 %v4276, %v4340
  %v4397 = vadd.f32 %v4277, %v4340
  %v4398 = vadd.f32 %v4278, %v4340
  %v4399 = vadd.f32 %v4279, %v4340
  %v4400 = vadd.f32 %v4280, %v4345
  %v4401 = vadd.f32 %v4281, %v4345
  %v4402 = vadd.f32 %v4282, %v4345
  %v4403 = vadd.f32 %v4283, %v4345
  %v4404 = vadd.f32 %v4284, %v4345
  %v4405 = vadd.f32 %v4285, %v4345
  %v4406 = vadd.f32 %v4286, %v4350
  %v4407 = vadd.f32 %v4287, %v4350
  %v4408 = vadd.f32 %v4288, %v4350
  %v4409 = vadd.f32 %v4289, %v4350
  %v4410 = vadd.f32 %v4290, %v4350
  %v4411 = vadd.f32 %v4291, %v4350
  %v4412 = vsub.f32 0.0, %v4364
  %v4413 = vsub.f32 0.0, %v4365
  %v4414 = vsub.f32 0.0, %v4366
  %v4415 = vsub.f32 0.0, %v4367
  %v4416 = vsub.f32 0.0, %v4368
  %v4417 = vsub.f32 0.0, %v4369
  %v4418 = vsub.f32 0.0, %v4370
  %v4419 = vsub.f32 0.0, %v4371
  %v4420 = vsub.f32 0.0, %v4372
  %v4421 = vsub.f32 0.0, %v4373
  %v4422 = vsub.f32 0.0, %v4374
  %v4423 = vsub.f32 0.0, %v4375
  %v4424 = vxor.u32 %v4412, 2147483648
  %v4425 = vxor.u32 %v4413, 2147483648
  %v4426 = vxor.u32 %v4414, 2147483648
  %v4427 = vxor.u32 %v4415, 2147483648
  %v4428 = vxor.u32 %v4416, 2147483648
  %v4429 = vxor.u32 %v4417, 2147483648
  %v4430 = vxor.u32 %v4418, 2147483648
  %v4431 = vxor.u32 %v4419, 2147483648
  %v4432 = vxor.u32 %v4420, 2147483648
  %v4433 = vxor.u32 %v4421, 2147483648
  %v4434 = vxor.u32 %v4422, 2147483648
  %v4435 = vxor.u32 %v4423, 2147483648
  %v4436 = vmul.f32 %v4424, 1.442695
  %v4437 = vpow.pop %v4436
  %v4438 = vmul.f32 %v4425, 1.442695
  %v4439 = vpow.pop %v4438
  %v4440 = vmul.f32 %v4426, 1.442695
  %v4441 = vpow.pop %v4440
  %v4442 = vmul.f32 %v4427, 1.442695
  %v4443 = vpow.pop %v4442
  %v4444 = vmul.f32 %v4428, 1.442695
  %v4445 = vpow.pop %v4444
  %v4446 = vmul.f32 %v4429, 1.442695
  %v4447 = vpow.pop %v4446
  %v4448 = vmul.f32 %v4430, 1.442695
  %v4449 = vpow.pop %v4448
  %v4450 = vmul.f32 %v4431, 1.442695
  %v4451 = vpow.pop %v4450
  %v4452 = vmul.f32 %v4432, 1.442695
  %v4453 = vpow.pop %v4452
  %v4454 = vmul.f32 %v4433, 1.442695
  %v4455 = vpow.pop %v4454
  %v4456 = vmul.f32 %v4434, 1.442695
  %v4457 = vpow.pop %v4456
  %v4458 = vmul.f32 %v4435, 1.442695
  %v4459 = vpow.pop %v4458
  %v4460 = vadd.f32 %v4437, 1.0
  %v4461 = vadd.f32 %v4439, 1.0
  %v4462 = vadd.f32 %v4441, 1.0
  %v4463 = vadd.f32 %v4443, 1.0
  %v4464 = vadd.f32 %v4445, 1.0
  %v4465 = vadd.f32 %v4447, 1.0
  %v4466 = vadd.f32 %v4449, 1.0
  %v4467 = vadd.f32 %v4451, 1.0
  %v4468 = vadd.f32 %v4453, 1.0
  %v4469 = vadd.f32 %v4455, 1.0
  %v4470 = vadd.f32 %v4457, 1.0
  %v4471 = vadd.f32 %v4459, 1.0
  %v4472 = vrcp.pop %v4460
  %v4473 = vmul.f32 1.0, %v4472
  %v4474 = vrcp.pop %v4461
  %v4475 = vmul.f32 1.0, %v4474
  %v4476 = vrcp.pop %v4462
  %v4477 = vmul.f32 1.0, %v4476
  %v4478 = vrcp.pop %v4463
  %v4479 = vmul.f32 1.0, %v4478
  %v4480 = vrcp.pop %v4464
  %v4481 = vmul.f32 1.0, %v4480
  %v4482 = vrcp.pop %v4465
  %v4483 = vmul.f32 1.0, %v4482
  %v4484 = vrcp.pop %v4466
  %v4485 = vmul.f32 1.0, %v4484
  %v4486 = vrcp.pop %v4467
  %v4487 = vmul.f32 1.0, %v4486
  %v4488 = vrcp.pop %v4468
  %v4489 = vmul.f32 1.0, %v4488
  %v4490 = vrcp.pop %v4469
  %v4491 = vmul.f32 1.0, %v4490
  %v4492 = vrcp.pop %v4470
  %v4493 = vmul.f32 1.0, %v4492
  %v4494 = vrcp.pop %v4471
  %v4495 = vmul.f32 1.0, %v4494
  %v4496 = vsub.f32 0.0, %v4376
  %v4497 = vsub.f32 0.0, %v4377
  %v4498 = vsub.f32 0.0, %v4378
  %v4499 = vsub.f32 0.0, %v4379
  %v4500 = vsub.f32 0.0, %v4380
  %v4501 = vsub.f32 0.0, %v4381
  %v4502 = vsub.f32 0.0, %v4382
  %v4503 = vsub.f32 0.0, %v4383
  %v4504 = vsub.f32 0.0, %v4384
  %v4505 = vsub.f32 0.0, %v4385
  %v4506 = vsub.f32 0.0, %v4386
  %v4507 = vsub.f32 0.0, %v4387
  %v4508 = vxor.u32 %v4496, 2147483648
  %v4509 = vxor.u32 %v4497, 2147483648
  %v4510 = vxor.u32 %v4498, 2147483648
  %v4511 = vxor.u32 %v4499, 2147483648
  %v4512 = vxor.u32 %v4500, 2147483648
  %v4513 = vxor.u32 %v4501, 2147483648
  %v4514 = vxor.u32 %v4502, 2147483648
  %v4515 = vxor.u32 %v4503, 2147483648
  %v4516 = vxor.u32 %v4504, 2147483648
  %v4517 = vxor.u32 %v4505, 2147483648
  %v4518 = vxor.u32 %v4506, 2147483648
  %v4519 = vxor.u32 %v4507, 2147483648
  %v4520 = vmul.f32 %v4508, 1.442695
  %v4521 = vpow.pop %v4520
  %v4522 = vmul.f32 %v4509, 1.442695
  %v4523 = vpow.pop %v4522
  %v4524 = vmul.f32 %v4510, 1.442695
  %v4525 = vpow.pop %v4524
  %v4526 = vmul.f32 %v4511, 1.442695
  %v4527 = vpow.pop %v4526
  %v4528 = vmul.f32 %v4512, 1.442695
  %v4529 = vpow.pop %v4528
  %v4530 = vmul.f32 %v4513, 1.442695
  %v4531 = vpow.pop %v4530
  %v4532 = vmul.f32 %v4514, 1.442695
  %v4533 = vpow.pop %v4532
  %v4534 = vmul.f32 %v4515, 1.442695
  %v4535 = vpow.pop %v4534
  %v4536 = vmul.f32 %v4516, 1.442695
  %v4537 = vpow.pop %v4536
  %v4538 = vmul.f32 %v4517, 1.442695
  %v4539 = vpow.pop %v4538
  %v4540 = vmul.f32 %v4518, 1.442695
  %v4541 = vpow.pop %v4540
  %v4542 = vmul.f32 %v4519, 1.442695
  %v4543 = vpow.pop %v4542
  %v4544 = vadd.f32 %v4521, 1.0
  %v4545 = vadd.f32 %v4523, 1.0
  %v4546 = vadd.f32 %v4525, 1.0
  %v4547 = vadd.f32 %v4527, 1.0
  %v4548 = vadd.f32 %v4529, 1.0
  %v4549 = vadd.f32 %v4531, 1.0
  %v4550 = vadd.f32 %v4533, 1.0
  %v4551 = vadd.f32 %v4535, 1.0
  %v4552 = vadd.f32 %v4537, 1.0
  %v4553 = vadd.f32 %v4539, 1.0
  %v4554 = vadd.f32 %v4541, 1.0
  %v4555 = vadd.f32 %v4543, 1.0
  %v4556 = vrcp.pop %v4544
  %v4557 = vmul.f32 1.0, %v4556
  %v4558 = vrcp.pop %v4545
  %v4559 = vmul.f32 1.0, %v4558
  %v4560 = vrcp.pop %v4546
  %v4561 = vmul.f32 1.0, %v4560
  %v4562 = vrcp.pop %v4547
  %v4563 = vmul.f32 1.0, %v4562
  %v4564 = vrcp.pop %v4548
  %v4565 = vmul.f32 1.0, %v4564
  %v4566 = vrcp.pop %v4549
  %v4567 = vmul.f32 1.0, %v4566
  %v4568 = vrcp.pop %v4550
  %v4569 = vmul.f32 1.0, %v4568
  %v4570 = vrcp.pop %v4551
  %v4571 = vmul.f32 1.0, %v4570
  %v4572 = vrcp.pop %v4552
  %v4573 = vmul.f32 1.0, %v4572
  %v4574 = vrcp.pop %v4553
  %v4575 = vmul.f32 1.0, %v4574
  %v4576 = vrcp.pop %v4554
  %v4577 = vmul.f32 1.0, %v4576
  %v4578 = vrcp.pop %v4555
  %v4579 = vmul.f32 1.0, %v4578
  %v4580 = vsub.f32 0.0, %v4388
  %v4581 = vsub.f32 0.0, %v4389
  %v4582 = vsub.f32 0.0, %v4390
  %v4583 = vsub.f32 0.0, %v4391
  %v4584 = vsub.f32 0.0, %v4392
  %v4585 = vsub.f32 0.0, %v4393
  %v4586 = vsub.f32 0.0, %v4394
  %v4587 = vsub.f32 0.0, %v4395
  %v4588 = vsub.f32 0.0, %v4396
  %v4589 = vsub.f32 0.0, %v4397
  %v4590 = vsub.f32 0.0, %v4398
  %v4591 = vsub.f32 0.0, %v4399
  %v4592 = vxor.u32 %v4580, 2147483648
  %v4593 = vxor.u32 %v4581, 2147483648
  %v4594 = vxor.u32 %v4582, 2147483648
  %v4595 = vxor.u32 %v4583, 2147483648
  %v4596 = vxor.u32 %v4584, 2147483648
  %v4597 = vxor.u32 %v4585, 2147483648
  %v4598 = vxor.u32 %v4586, 2147483648
  %v4599 = vxor.u32 %v4587, 2147483648
  %v4600 = vxor.u32 %v4588, 2147483648
  %v4601 = vxor.u32 %v4589, 2147483648
  %v4602 = vxor.u32 %v4590, 2147483648
  %v4603 = vxor.u32 %v4591, 2147483648
  %v4604 = vmul.f32 %v4592, 1.442695
  %v4605 = vpow.pop %v4604
  %v4606 = vmul.f32 %v4593, 1.442695
  %v4607 = vpow.pop %v4606
  %v4608 = vmul.f32 %v4594, 1.442695
  %v4609 = vpow.pop %v4608
  %v4610 = vmul.f32 %v4595, 1.442695
  %v4611 = vpow.pop %v4610
  %v4612 = vmul.f32 %v4596, 1.442695
  %v4613 = vpow.pop %v4612
  %v4614 = vmul.f32 %v4597, 1.442695
  %v4615 = vpow.pop %v4614
  %v4616 = vmul.f32 %v4598, 1.442695
  %v4617 = vpow.pop %v4616
  %v4618 = vmul.f32 %v4599, 1.442695
  %v4619 = vpow.pop %v4618
  %v4620 = vmul.f32 %v4600, 1.442695
  %v4621 = vpow.pop %v4620
  %v4622 = vmul.f32 %v4601, 1.442695
  %v4623 = vpow.pop %v4622
  %v4624 = vmul.f32 %v4602, 1.442695
  %v4625 = vpow.pop %v4624
  %v4626 = vmul.f32 %v4603, 1.442695
  %v4627 = vpow.pop %v4626
  %v4628 = vadd.f32 %v4605, 1.0
  %v4629 = vadd.f32 %v4607, 1.0
  %v4630 = vadd.f32 %v4609, 1.0
  %v4631 = vadd.f32 %v4611, 1.0
  %v4632 = vadd.f32 %v4613, 1.0
  %v4633 = vadd.f32 %v4615, 1.0
  %v4634 = vadd.f32 %v4617, 1.0
  %v4635 = vadd.f32 %v4619, 1.0
  %v4636 = vadd.f32 %v4621, 1.0
  %v4637 = vadd.f32 %v4623, 1.0
  %v4638 = vadd.f32 %v4625, 1.0
  %v4639 = vadd.f32 %v4627, 1.0
  %v4640 = vrcp.pop %v4628
  %v4641 = vmul.f32 1.0, %v4640
  %v4642 = vrcp.pop %v4629
  %v4643 = vmul.f32 1.0, %v4642
  %v4644 = vrcp.pop %v4630
  %v4645 = vmul.f32 1.0, %v4644
  %v4646 = vrcp.pop %v4631
  %v4647 = vmul.f32 1.0, %v4646
  %v4648 = vrcp.pop %v4632
  %v4649 = vmul.f32 1.0, %v4648
  %v4650 = vrcp.pop %v4633
  %v4651 = vmul.f32 1.0, %v4650
  %v4652 = vrcp.pop %v4634
  %v4653 = vmul.f32 1.0, %v4652
  %v4654 = vrcp.pop %v4635
  %v4655 = vmul.f32 1.0, %v4654
  %v4656 = vrcp.pop %v4636
  %v4657 = vmul.f32 1.0, %v4656
  %v4658 = vrcp.pop %v4637
  %v4659 = vmul.f32 1.0, %v4658
  %v4660 = vrcp.pop %v4638
  %v4661 = vmul.f32 1.0, %v4660
  %v4662 = vrcp.pop %v4639
  %v4663 = vmul.f32 1.0, %v4662
  %v4664 = vsub.f32 0.0, %v4400
  %v4665 = vsub.f32 0.0, %v4401
  %v4666 = vsub.f32 0.0, %v4402
  %v4667 = vsub.f32 0.0, %v4403
  %v4668 = vsub.f32 0.0, %v4404
  %v4669 = vsub.f32 0.0, %v4405
  %v4670 = vsub.f32 0.0, %v4406
  %v4671 = vsub.f32 0.0, %v4407
  %v4672 = vsub.f32 0.0, %v4408
  %v4673 = vsub.f32 0.0, %v4409
  %v4674 = vsub.f32 0.0, %v4410
  %v4675 = vsub.f32 0.0, %v4411
  %v4676 = vxor.u32 %v4664, 2147483648
  %v4677 = vxor.u32 %v4665, 2147483648
  %v4678 = vxor.u32 %v4666, 2147483648
  %v4679 = vxor.u32 %v4667, 2147483648
  %v4680 = vxor.u32 %v4668, 2147483648
  %v4681 = vxor.u32 %v4669, 2147483648
  %v4682 = vxor.u32 %v4670, 2147483648
  %v4683 = vxor.u32 %v4671, 2147483648
  %v4684 = vxor.u32 %v4672, 2147483648
  %v4685 = vxor.u32 %v4673, 2147483648
  %v4686 = vxor.u32 %v4674, 2147483648
  %v4687 = vxor.u32 %v4675, 2147483648
  %v4688 = vmul.f32 %v4676, 1.442695
  %v4689 = vpow.pop %v4688
  %v4690 = vmul.f32 %v4677, 1.442695
  %v4691 = vpow.pop %v4690
  %v4692 = vmul.f32 %v4678, 1.442695
  %v4693 = vpow.pop %v4692
  %v4694 = vmul.f32 %v4679, 1.442695
  %v4695 = vpow.pop %v4694
  %v4696 = vmul.f32 %v4680, 1.442695
  %v4697 = vpow.pop %v4696
  %v4698 = vmul.f32 %v4681, 1.442695
  %v4699 = vpow.pop %v4698
  %v4700 = vmul.f32 %v4682, 1.442695
  %v4701 = vpow.pop %v4700
  %v4702 = vmul.f32 %v4683, 1.442695
  %v4703 = vpow.pop %v4702
  %v4704 = vmul.f32 %v4684, 1.442695
  %v4705 = vpow.pop %v4704
  %v4706 = vmul.f32 %v4685, 1.442695
  %v4707 = vpow.pop %v4706
  %v4708 = vmul.f32 %v4686, 1.442695
  %v4709 = vpow.pop %v4708
  %v4710 = vmul.f32 %v4687, 1.442695
  %v4711 = vpow.pop %v4710
  %v4712 = vadd.f32 %v4689, 1.0
  %v4713 = vadd.f32 %v4691, 1.0
  %v4714 = vadd.f32 %v4693, 1.0
  %v4715 = vadd.f32 %v4695, 1.0
  %v4716 = vadd.f32 %v4697, 1.0
  %v4717 = vadd.f32 %v4699, 1.0
  %v4718 = vadd.f32 %v4701, 1.0
  %v4719 = vadd.f32 %v4703, 1.0
  %v4720 = vadd.f32 %v4705, 1.0
  %v4721 = vadd.f32 %v4707, 1.0
  %v4722 = vadd.f32 %v4709, 1.0
  %v4723 = vadd.f32 %v4711, 1.0
  %v4724 = vrcp.pop %v4712
  %v4725 = vmul.f32 1.0, %v4724
  %v4726 = vrcp.pop %v4713
  %v4727 = vmul.f32 1.0, %v4726
  %v4728 = vrcp.pop %v4714
  %v4729 = vmul.f32 1.0, %v4728
  %v4730 = vrcp.pop %v4715
  %v4731 = vmul.f32 1.0, %v4730
  %v4732 = vrcp.pop %v4716
  %v4733 = vmul.f32 1.0, %v4732
  %v4734 = vrcp.pop %v4717
  %v4735 = vmul.f32 1.0, %v4734
  %v4736 = vrcp.pop %v4718
  %v4737 = vmul.f32 1.0, %v4736
  %v4738 = vrcp.pop %v4719
  %v4739 = vmul.f32 1.0, %v4738
  %v4740 = vrcp.pop %v4720
  %v4741 = vmul.f32 1.0, %v4740
  %v4742 = vrcp.pop %v4721
  %v4743 = vmul.f32 1.0, %v4742
  %v4744 = vrcp.pop %v4722
  %v4745 = vmul.f32 1.0, %v4744
  %v4746 = vrcp.pop %v4723
  %v4747 = vmul.f32 1.0, %v4746
  %v4748 = vmul.f32 %v4473, %v4352
  %v4749 = vmul.f32 %v4475, %v4353
  %v4750 = vmul.f32 %v4477, %v4354
  %v4751 = vmul.f32 %v4479, %v4355
  %v4752 = vmul.f32 %v4481, %v4356
  %v4753 = vmul.f32 %v4483, %v4357
  %v4754 = vmul.f32 %v4485, %v4358
  %v4755 = vmul.f32 %v4487, %v4359
  %v4756 = vmul.f32 %v4489, %v4360
  %v4757 = vmul.f32 %v4491, %v4361
  %v4758 = vmul.f32 %v4493, %v4362
  %v4759 = vmul.f32 %v4495, %v4363
  %v4760 = vmul.f32 %v4641, %v1938
  %v4761 = vmul.f32 %v4643, %v1933
  %v4762 = vmul.f32 %v4645, %v1928
  %v4763 = vmul.f32 %v4647, %v1923
  %v4764 = vmul.f32 %v4649, %v1918
  %v4765 = vmul.f32 %v4651, %v1943
  %v4766 = vmul.f32 %v4653, %v1939
  %v4767 = vmul.f32 %v4655, %v1934
  %v4768 = vmul.f32 %v4657, %v1929
  %v4769 = vmul.f32 %v4659, %v1924
  %v4770 = vmul.f32 %v4661, %v1919
  %v4771 = vmul.f32 %v4663, %v1944
  %v4772 = vadd.f32 %v4748, %v4760
  %v4773 = vadd.f32 %v4749, %v4761
  %v4774 = vadd.f32 %v4750, %v4762
  %v4775 = vadd.f32 %v4751, %v4763
  %v4776 = vadd.f32 %v4752, %v4764
  %v4777 = vadd.f32 %v4753, %v4765
  %v4778 = vadd.f32 %v4754, %v4766
  %v4779 = vadd.f32 %v4755, %v4767
  %v4780 = vadd.f32 %v4756, %v4768
  %v4781 = vadd.f32 %v4757, %v4769
  %v4782 = vadd.f32 %v4758, %v4770
  %v4783 = vadd.f32 %v4759, %v4771
  %v4784 = vmax.f32 %v4772, 0.0
  %v4785 = vmax.f32 %v4773, 0.0
  %v4786 = vmax.f32 %v4774, 0.0
  %v4787 = vmax.f32 %v4775, 0.0
  %v4788 = vmax.f32 %v4776, 0.0
  %v4789 = vmax.f32 %v4777, 0.0
  %v4790 = vmax.f32 %v4778, 0.0
  %v4791 = vmax.f32 %v4779, 0.0
  %v4792 = vmax.f32 %v4780, 0.0
  %v4793 = vmax.f32 %v4781, 0.0
  %v4794 = vmax.f32 %v4782, 0.0
  %v4795 = vmax.f32 %v4783, 0.0
  %v4796 = vmul.f32 %v4557, %v4352
  %v4797 = vmul.f32 %v4559, %v4353
  %v4798 = vmul.f32 %v4561, %v4354
  %v4799 = vmul.f32 %v4563, %v4355
  %v4800 = vmul.f32 %v4565, %v4356
  %v4801 = vmul.f32 %v4567, %v4357
  %v4802 = vmul.f32 %v4569, %v4358
  %v4803 = vmul.f32 %v4571, %v4359
  %v4804 = vmul.f32 %v4573, %v4360
  %v4805 = vmul.f32 %v4575, %v4361
  %v4806 = vmul.f32 %v4577, %v4362
  %v4807 = vmul.f32 %v4579, %v4363
  %v4808 = vmul.f32 %v4725, %v1940
  %v4809 = vmul.f32 %v4727, %v1935
  %v4810 = vmul.f32 %v4729, %v1930
  %v4811 = vmul.f32 %v4731, %v1925
  %v4812 = vmul.f32 %v4733, %v1920
  %v4813 = vmul.f32 %v4735, %v1945
  %v4814 = vmul.f32 %v4737, %v1941
  %v4815 = vmul.f32 %v4739, %v1936
  %v4816 = vmul.f32 %v4741, %v1931
  %v4817 = vmul.f32 %v4743, %v1926
  %v4818 = vmul.f32 %v4745, %v1921
  %v4819 = vmul.f32 %v4747, %v1946
  %v4820 = vadd.f32 %v4796, %v4808
  %v4821 = vadd.f32 %v4797, %v4809
  %v4822 = vadd.f32 %v4798, %v4810
  %v4823 = vadd.f32 %v4799, %v4811
  %v4824 = vadd.f32 %v4800, %v4812
  %v4825 = vadd.f32 %v4801, %v4813
  %v4826 = vadd.f32 %v4802, %v4814
  %v4827 = vadd.f32 %v4803, %v4815
  %v4828 = vadd.f32 %v4804, %v4816
  %v4829 = vadd.f32 %v4805, %v4817
  %v4830 = vadd.f32 %v4806, %v4818
  %v4831 = vadd.f32 %v4807, %v4819
  %v4832 = vmax.f32 %v4820, 0.0
  %v4833 = vmax.f32 %v4821, 0.0
  %v4834 = vmax.f32 %v4822, 0.0
  %v4835 = vmax.f32 %v4823, 0.0
  %v4836 = vmax.f32 %v4824, 0.0
  %v4837 = vmax.f32 %v4825, 0.0
  %v4838 = vmax.f32 %v4826, 0.0
  %v4839 = vmax.f32 %v4827, 0.0
  %v4840 = vmax.f32 %v4828, 0.0
  %v4841 = vmax.f32 %v4829, 0.0
  %v4842 = vmax.f32 %v4830, 0.0
  %v4843 = vmax.f32 %v4831, 0.0
  %4844 = vst [vmem:[%s3] sm:$0xff] %v4784
  %4845 = vst [vmem:[%s3 + $0x8] sm:$0xff] %v4785
  %4846 = vst [vmem:[%s3 + $0x10] sm:$0xff] %v4786
  %4847 = vst [vmem:[%s3 + $0x18] sm:$0xff] %v4787
  %4848 = vst [vmem:[%s3 + $0x20] sm:$0xff] %v4788
  %4849 = vst [vmem:[%s3 + $0x28] sm:$0xff] %v4789
  %4850 = vst [vmem:[%s3 + $0x30] sm:$0xff] %v4790
  %4851 = vst [vmem:[%s3 + $0x38] sm:$0xff] %v4791
  %4852 = vst [vmem:[%s3 + $0x40] sm:$0xff] %v4792
  %4853 = vst [vmem:[%s3 + $0x48] sm:$0xff] %v4793
  %4854 = vst [vmem:[%s3 + $0x50] sm:$0xff] %v4794
  %4855 = vst [vmem:[%s3 + $0x58] sm:$0xff] %v4795
  %4856 = vst [vmem:[%s3 + $0x60] sm:$0xff] %v4832
  %4857 = vst [vmem:[%s3 + $0x68] sm:$0xff] %v4833
  %4858 = vst [vmem:[%s3 + $0x70] sm:$0xff] %v4834
  %4859 = vst [vmem:[%s3 + $0x78] sm:$0xff] %v4835
  %4860 = vst [vmem:[%s3 + $0x80] sm:$0xff] %v4836
  %4861 = vst [vmem:[%s3 + $0x88] sm:$0xff] %v4837
  %4862 = vst [vmem:[%s3 + $0x90] sm:$0xff] %v4838
  %4863 = vst [vmem:[%s3 + $0x98] sm:$0xff] %v4839
  %4864 = vst [vmem:[%s3 + $0xa0] sm:$0xff] %v4840
  %4865 = vst [vmem:[%s3 + $0xa8] sm:$0xff] %v4841
  %4866 = vst [vmem:[%s3 + $0xb0] sm:$0xff] %v4842
  %4867 = vst [vmem:[%s3 + $0xb8] sm:$0xff] %v4843
  // Predicated region
  $region14: #{reciprocal_gated_cell.1} parent=0 // pred_check
    _
  $region15: #{reciprocal_gated_cell.1} parent=0 // pred_check_branch
    %4869 = sbr.rel (0) target = $region17
  $region16: #{reciprocal_gated_cell.1} parent=0 // pred_region
    _
  $region17: #{reciprocal_gated_cell.1} parent=0 // pred_fallthru
    _
  // Predicated region
  $region18: #{reciprocal_gated_cell.1} parent=0 // pred_check
    _
  $region19: #{reciprocal_gated_cell.1} parent=0 // pred_check_branch
    %4871 = sbr.rel (0) target = $region21
  $region20: #{reciprocal_gated_cell.1} parent=0 // pred_region
    _
  $region21: #{reciprocal_gated_cell.1} parent=0 // pred_fallthru
    _

</llo_original>
